<compile_context>
chip_gen: v7x
topology: tpu7x:2x2x1
jax: 0.10.0
libtpu: 0.0.40
codegen_flags: <defaults>
</compile_context>

<pallas_src>
import functools

import jax
import jax.numpy as jnp
from jax import lax
from jax.experimental import pallas as pl
from jax.experimental.pallas import tpu as pltpu

# Keep every contraction (reference einsums AND the kernel's dots, including
# the interpreted-on-TPU path) at f32 accuracy so kernel vs. reference agree.
jax.config.update("jax_default_matmul_precision", "highest")

_NEG_BIG = -1e30  # bias for padded (dead) output classes -> exp() underflows to 0


def _round_up(x, m):
    return (x + m - 1) // m * m


# ----------------------------------------------------------------------------
# Kernel: one grid step = TB examples, flattened to N = TB*L path-contexts.
# ----------------------------------------------------------------------------
def _code2vec_kernel(idx_ref, ecat_ref, wt_ref, at_ref, wot_ref, bo_ref,
                     out_ref, *, tb, seq_len):
    n = tb * seq_len
    vcat = ecat_ref.shape[0]
    emb = wt_ref.shape[1]

    # ---- embedding gather + concat as an exact one-hot matmul ---------------
    # idx columns already carry the [node | path | node] concat-table offsets.
    idx = idx_ref[...]                                     # (N, 3) int32
    lanes = lax.broadcasted_iota(jnp.int32, (n, vcat), 1)
    onehot = ((lanes == idx[:, 0:1]) |
              (lanes == idx[:, 1:2]) |
              (lanes == idx[:, 2:3])).astype(ecat_ref.dtype)
    # c = [start | path | end] embeddings; contraction dim already padded to 128
    c = jnp.dot(onehot, ecat_ref[...], preferred_element_type=jnp.float32)

    # ---- x = tanh(c @ W^T) ---------------------------------------------------
    x = jnp.tanh(jnp.dot(c.astype(wt_ref.dtype), wt_ref[...],
                         preferred_element_type=jnp.float32))       # (N, E) f32

    # ---- attention softmax over L (lane-axis reductions, exact divide) -------
    x3 = x.reshape(tb, seq_len, emb)                       # (TB, L, E)
    a3 = at_ref[...].reshape(1, 1, emb)
    zlog = jnp.sum(x3 * a3, axis=-1)                       # (TB, L)
    zlog = zlog - jnp.max(zlog, axis=-1, keepdims=True)
    ez = jnp.exp(zlog)
    z = ez / jnp.sum(ez, axis=-1, keepdims=True)

    # ---- code vector v = sum_L z * x ------------------------------------------
    v = jnp.sum(x3 * z[:, :, None], axis=1)                # (TB, E)

    # ---- output linear + class softmax (padded classes get -1e30 bias) -------
    logits = jnp.dot(v.astype(wot_ref.dtype), wot_ref[...],
                     preferred_element_type=jnp.float32) + bo_ref[...]  # (TB, O_pad)
    logits = logits - jnp.max(logits, axis=-1, keepdims=True)
    el = jnp.exp(logits)
    out_ref[...] = el / jnp.sum(el, axis=-1, keepdims=True)


# ----------------------------------------------------------------------------
# One-time parameter preparation (hoisted out of the per-call forward).
# ----------------------------------------------------------------------------
def prepare_code2vec_params(params, *, mxu_dtype=jnp.float32):
    """Build padded, kernel-ready tables once. mxu_dtype=jnp.bfloat16 is
    recommended on v6e/v7x; f32 (default) is the numerically validated path."""
    node_emb = params["node_embedding"].astype(jnp.float32)   # (Vn, E)
    path_emb = params["path_embedding"].astype(jnp.float32)   # (Vp, E)
    W = params["W"].astype(jnp.float32)[0]                    # (E, 3E)
    a = params["a"].astype(jnp.float32)[0]                    # (E, 1)
    Wo = params["out_w"].astype(jnp.float32)                  # (O, E)
    bo = params["out_b"].astype(jnp.float32).reshape(1, -1)   # (1, O)

    Vn, E = node_emb.shape
    Vp = path_emb.shape[0]
    O = Wo.shape[0]
    K_pad = _round_up(3 * E, 128)          # lane-dense contraction dim
    O_pad = _round_up(O, 128)              # lane-dense output stores
    Vcat = 2 * Vn + Vp
    Vcat_pad = _round_up(Vcat, 8)

    # Block-diagonal [node | path | node] table: onehot @ ecat reproduces
    # torch.cat((emb_start, emb_path, emb_end), dim=2) exactly.
    ecat = jnp.zeros((Vcat_pad, K_pad), jnp.float32)
    ecat = ecat.at[:Vn, 0:E].set(node_emb)
    ecat = ecat.at[Vn:Vn + Vp, E:2 * E].set(path_emb)
    ecat = ecat.at[Vn + Vp:Vcat, 2 * E:3 * E].set(node_emb)

    tables = {
        "ecat": ecat.astype(mxu_dtype),
        "wt": jnp.zeros((K_pad, E), jnp.float32).at[:3 * E, :].set(W.T).astype(mxu_dtype),
        "a_t": a.reshape(1, E),                                           # f32 (VPU)
        "wot": jnp.zeros((E, O_pad), jnp.float32).at[:, :O].set(Wo.T).astype(mxu_dtype),
        "bo": jnp.full((1, O_pad), _NEG_BIG, jnp.float32).at[:, :O].set(bo),  # f32
    }
    dims = {"nodes_dim": Vn, "paths_dim": Vp, "out_dim": O}
    return tables, dims


# ----------------------------------------------------------------------------
# Forward (jittable): index pack + one pallas_call.
# ----------------------------------------------------------------------------
def code2vec_forward(starts, paths, ends, tables, *, dims):
    Vn, Vp, O = dims["nodes_dim"], dims["paths_dim"], dims["out_dim"]
    ecat, wt, a_t, wot, bo = (tables["ecat"], tables["wt"], tables["a_t"],
                              tables["wot"], tables["bo"])
    Vcat_pad, K_pad = ecat.shape
    E = wt.shape[1]
    O_pad = wot.shape[1]

    B, L = starts.shape

    # ---- tiling: target ~512 rows per step, keep >=2 grid steps when B allows
    tb_min = _round_up(max(1, pl.cdiv(128, L)), 8)     # >= 128 MXU rows, TB % 8 == 0
    tb_target = _round_up(max(1, pl.cdiv(512, L)), 8)  # ~512 rows amortizes per-step cost
    tb_cap = _round_up(max(1, pl.cdiv(B, 2)), 8)       # keep 2+ steps for v7x's 2 TCs
    TB = max(tb_min, min(tb_target, tb_cap))
    B_pad = _round_up(B, TB)
    tbl = TB * L

    # ---- pack indices: clamp, add concat-table offsets, one (N, 3) operand ---
    s = jnp.clip(starts.astype(jnp.int32), 0, Vn - 1)
    p = jnp.clip(paths.astype(jnp.int32), 0, Vp - 1) + Vn
    e = jnp.clip(ends.astype(jnp.int32), 0, Vn - 1) + Vn + Vp
    idx = jnp.stack([s, p, e], axis=-1)                          # (B, L, 3)
    idx = jnp.pad(idx, ((0, B_pad - B), (0, 0), (0, 0))).reshape(B_pad * L, 3)

    kernel = functools.partial(_code2vec_kernel, tb=TB, seq_len=L)

    out = pl.pallas_call(
        kernel,
        out_shape=jax.ShapeDtypeStruct((B_pad, O_pad), jnp.float32),
        grid_spec=pltpu.PrefetchScalarGridSpec(
            num_scalar_prefetch=0,
            grid=(B_pad // TB,),
            in_specs=[
                pl.BlockSpec((tbl, 3), lambda b: (b, 0)),            # packed indices
                pl.BlockSpec((Vcat_pad, K_pad), lambda b: (0, 0)),   # concat emb table
                pl.BlockSpec((K_pad, E), lambda b: (0, 0)),          # W^T (K padded)
                pl.BlockSpec((1, E), lambda b: (0, 0)),              # a^T
                pl.BlockSpec((E, O_pad), lambda b: (0, 0)),          # Wout^T (O padded)
                pl.BlockSpec((1, O_pad), lambda b: (0, 0)),          # bias (O padded)
            ],
            out_specs=pl.BlockSpec((TB, O_pad), lambda b: (b, 0)),
        ),
        compiler_params=pltpu.CompilerParams(
            dimension_semantics=("parallel",),
            # 32 MiB is comfortable on all of v5e/v6e/v7x at these sizes; resize
            # per generation (64 MiB physical on v7x) if vocab/O/TB grow.
            vmem_limit_bytes=32 * 1024 * 1024,
        ),
    )(idx, ecat, wt, a_t, wot, bo)

    return out[:B, :O]


# ----------------------------------------------------------------------------
# Pure-JAX reference (mirrors the PyTorch module, eval mode) and init.
# ----------------------------------------------------------------------------
def init_params(key, nodes_dim, paths_dim, embedding_dim, output_dim):
    k = jax.random.split(key, 6)
    E, O = embedding_dim, output_dim
    return {
        "node_embedding": jax.random.normal(k[0], (nodes_dim, E), jnp.float32),
        "path_embedding": jax.random.normal(k[1], (paths_dim, E), jnp.float32),
        "W": jax.random.normal(k[2], (1, E, 3 * E), jnp.float32),
        "a": jax.random.normal(k[3], (1, E, 1), jnp.float32),
        "out_w": jax.random.normal(k[4], (O, E), jnp.float32) * 0.1,
        "out_b": jax.random.normal(k[5], (O,), jnp.float32) * 0.1,
    }


def reference_forward(starts, paths, ends, params):
    hp = lax.Precision.HIGHEST
    es = jnp.take(params["node_embedding"], starts, axis=0)
    ep = jnp.take(params["path_embedding"], paths, axis=0)
    ee = jnp.take(params["node_embedding"], ends, axis=0)
    c = jnp.concatenate([es, ep, ee], axis=2)                            # (B, L, 3E)
    x = jnp.tanh(jnp.einsum("bld,ed->ble", c, params["W"][0], precision=hp))
    z = jnp.einsum("ble,eo->blo", x, params["a"][0], precision=hp)[..., 0]
    z = jax.nn.softmax(z, axis=1)[..., None]                             # (B, L, 1)
    v = jnp.sum(x * z, axis=1)                                           # (B, E)
    out = jnp.einsum("be,oe->bo", v, params["out_w"], precision=hp) + params["out_b"]
    return jax.nn.softmax(out, axis=1)


if __name__ == "__main__":
    # small shapes consistent with the module
    B, L = 2, 8
    nodes_dim, paths_dim = 50, 60
    embedding_dim, output_dim = 32, 16

    key = jax.random.PRNGKey(0)
    kp, ks, kq, ke = jax.random.split(key, 4)
    params = init_params(kp, nodes_dim, paths_dim, embedding_dim, output_dim)

    # one-time parameter prep (hoisted); jitted per-call forward
    tables, dims = prepare_code2vec_params(params)
    fwd = jax.jit(functools.partial(code2vec_forward, dims=dims))

    # Tolerance 2e-3: covers MXU accumulation-order differences and any residual
    # default-precision einsum effects; a structurally wrong kernel errs at ~1e-1.
    TOL = 2e-3

    starts = jax.random.randint(ks, (B, L), 0, nodes_dim, dtype=jnp.int32)
    paths = jax.random.randint(kq, (B, L), 0, paths_dim, dtype=jnp.int32)
    ends = jax.random.randint(ke, (B, L), 0, nodes_dim, dtype=jnp.int32)

    out = jax.block_until_ready(fwd(starts, paths, ends, tables))
    ref = reference_forward(starts, paths, ends, params)
    assert out.shape == (B, output_dim)
    assert jnp.allclose(out, ref, atol=TOL, rtol=TOL), "mismatch vs reference (small)"

    # second shape: exercises batch padding + a multi-block 'parallel' grid
    B2 = 40
    ks2, kq2, ke2 = jax.random.split(jax.random.PRNGKey(1), 3)
    starts2 = jax.random.randint(ks2, (B2, L), 0, nodes_dim, dtype=jnp.int32)
    paths2 = jax.random.randint(kq2, (B2, L), 0, paths_dim, dtype=jnp.int32)
    ends2 = jax.random.randint(ke2, (B2, L), 0, nodes_dim, dtype=jnp.int32)
    out2 = jax.block_until_ready(fwd(starts2, paths2, ends2, tables))
    ref2 = reference_forward(starts2, paths2, ends2, params)
    assert out2.shape == (B2, output_dim)
    assert jnp.allclose(out2, ref2, atol=TOL, rtol=TOL), "mismatch vs reference (batched)"

    print("KERNEL_OK")
</pallas_src>

<mosaic_0001>
module attributes {stable_mosaic.version = 11 : i64} {
  func.func @_code2vec_kernel(%arg0: i32, %arg1: memref<128x3xi32, #tpu.memory_space<vmem>>, %arg2: memref<160x128xf32, #tpu.memory_space<vmem>>, %arg3: memref<128x32xf32, #tpu.memory_space<vmem>>, %arg4: memref<1x32xf32, #tpu.memory_space<vmem>>, %arg5: memref<32x128xf32, #tpu.memory_space<vmem>>, %arg6: memref<1x128xf32, #tpu.memory_space<vmem>>, %arg7: memref<16x128xf32, #tpu.memory_space<vmem>>) attributes {dimension_semantics = [#tpu.dimension_semantics<parallel>], iteration_bounds = array<i64: 1>, scalar_prefetch = 0 : i64, scratch_operands = 0 : i64, tpu.core_type = #tpu.core_type<tc>, window_params = [{transform_indices = @transform_0, window_bounds = array<i64: 128, 3>}, {pipeline_mode = #tpu.pipeline_mode<synchronous>, transform_indices = @transform_1, window_bounds = array<i64: 160, 128>}, {pipeline_mode = #tpu.pipeline_mode<synchronous>, transform_indices = @transform_2, window_bounds = array<i64: 128, 32>}, {pipeline_mode = #tpu.pipeline_mode<synchronous>, transform_indices = @transform_3, window_bounds = array<i64: 1, 32>}, {pipeline_mode = #tpu.pipeline_mode<synchronous>, transform_indices = @transform_4, window_bounds = array<i64: 32, 128>}, {pipeline_mode = #tpu.pipeline_mode<synchronous>, transform_indices = @transform_5, window_bounds = array<i64: 1, 128>}, {transform_indices = @transform_6, window_bounds = array<i64: 16, 128>}]} {
    %c0 = arith.constant 0 : index
    %c0_0 = arith.constant 0 : index
    %0 = vector.load %arg1[%c0, %c0_0] : memref<128x3xi32, #tpu.memory_space<vmem>>, vector<128x3xi32>
    %1 = tpu.iota {dimensions = array<i32: 1>} : vector<128x160xi32>
    %2 = vector.extract_strided_slice %0 {offsets = [0, 0], sizes = [128, 1], strides = [1, 1]} : vector<128x3xi32> to vector<128x1xi32>
    %3 = vector.broadcast %2 : vector<128x1xi32> to vector<128x160xi32>
    %4 = arith.cmpi eq, %1, %3 : vector<128x160xi32>
    %5 = vector.extract_strided_slice %0 {offsets = [0, 1], sizes = [128, 1], strides = [1, 1]} : vector<128x3xi32> to vector<128x1xi32>
    %6 = vector.broadcast %5 : vector<128x1xi32> to vector<128x160xi32>
    %7 = arith.cmpi eq, %1, %6 : vector<128x160xi32>
    %8 = arith.ori %4, %7 : vector<128x160xi1>
    %9 = vector.extract_strided_slice %0 {offsets = [0, 2], sizes = [128, 1], strides = [1, 1]} : vector<128x3xi32> to vector<128x1xi32>
    %10 = vector.broadcast %9 : vector<128x1xi32> to vector<128x160xi32>
    %11 = arith.cmpi eq, %1, %10 : vector<128x160xi32>
    %12 = arith.ori %8, %11 : vector<128x160xi1>
    %13 = arith.extui %12 : vector<128x160xi1> to vector<128x160xi32>
    %14 = arith.sitofp %13 : vector<128x160xi32> to vector<128x160xf32>
    %c0_1 = arith.constant 0 : index
    %c0_2 = arith.constant 0 : index
    %15 = vector.load %arg2[%c0_1, %c0_2] : memref<160x128xf32, #tpu.memory_space<vmem>>, vector<160x128xf32>
    %cst = arith.constant dense<0.000000e+00> : vector<128x128xf32>
    %16 = tpu.matmul %14, %15, %cst {dimension_numbers = #tpu.dot_dimension_numbers<[1], [0], [0], [1], [0, 0, 1, 1], [], []>, precision = #tpu.contract_precision<fp32>} : vector<128x160xf32>, vector<160x128xf32>, vector<128x128xf32> -> vector<128x128xf32>
    %c0_3 = arith.constant 0 : index
    %c0_4 = arith.constant 0 : index
    %17 = vector.load %arg3[%c0_3, %c0_4] : memref<128x32xf32, #tpu.memory_space<vmem>>, vector<128x32xf32>
    %cst_5 = arith.constant dense<0.000000e+00> : vector<128x32xf32>
    %18 = tpu.matmul %16, %17, %cst_5 {dimension_numbers = #tpu.dot_dimension_numbers<[1], [0], [0], [1], [0, 0, 1, 1], [], []>, precision = #tpu.contract_precision<fp32>} : vector<128x128xf32>, vector<128x32xf32>, vector<128x32xf32> -> vector<128x32xf32>
    %19 = math.tanh %18 : vector<128x32xf32>
    %20 = vector.shape_cast %19 : vector<128x32xf32> to vector<16x8x32xf32>
    %c0_6 = arith.constant 0 : index
    %c0_7 = arith.constant 0 : index
    %21 = vector.load %arg4[%c0_6, %c0_7] : memref<1x32xf32, #tpu.memory_space<vmem>>, vector<1x32xf32>
    %22 = vector.shape_cast %21 : vector<1x32xf32> to vector<1x1x32xf32>
    %23 = vector.broadcast %22 : vector<1x1x32xf32> to vector<16x8x32xf32>
    %24 = arith.mulf %20, %23 : vector<16x8x32xf32>
    %cst_8 = arith.constant dense<0.000000e+00> : vector<16x8xf32>
    %25 = vector.multi_reduction <add>, %24, %cst_8 [2] : vector<16x8x32xf32> to vector<16x8xf32>
    %cst_9 = arith.constant dense<0xFF800000> : vector<16xf32>
    %26 = vector.multi_reduction <maximumf>, %25, %cst_9 [1] : vector<16x8xf32> to vector<16xf32>
    %27 = vector.shape_cast %26 : vector<16xf32> to vector<16x1xf32>
    %28 = vector.broadcast %27 : vector<16x1xf32> to vector<16x8xf32>
    %29 = arith.subf %25, %28 : vector<16x8xf32>
    %30 = math.exp %29 : vector<16x8xf32>
    %cst_10 = arith.constant dense<0.000000e+00> : vector<16xf32>
    %31 = vector.multi_reduction <add>, %30, %cst_10 [1] : vector<16x8xf32> to vector<16xf32>
    %32 = vector.shape_cast %31 : vector<16xf32> to vector<16x1xf32>
    %33 = vector.broadcast %32 : vector<16x1xf32> to vector<16x8xf32>
    %34 = arith.divf %30, %33 : vector<16x8xf32>
    %35 = vector.shape_cast %34 : vector<16x8xf32> to vector<16x8x1xf32>
    %36 = vector.broadcast %35 : vector<16x8x1xf32> to vector<16x8x32xf32>
    %37 = arith.mulf %20, %36 : vector<16x8x32xf32>
    %cst_11 = arith.constant dense<0.000000e+00> : vector<16x32xf32>
    %38 = vector.multi_reduction <add>, %37, %cst_11 [1] : vector<16x8x32xf32> to vector<16x32xf32>
    %c0_12 = arith.constant 0 : index
    %c0_13 = arith.constant 0 : index
    %39 = vector.load %arg5[%c0_12, %c0_13] : memref<32x128xf32, #tpu.memory_space<vmem>>, vector<32x128xf32>
    %cst_14 = arith.constant dense<0.000000e+00> : vector<16x128xf32>
    %40 = tpu.matmul %38, %39, %cst_14 {dimension_numbers = #tpu.dot_dimension_numbers<[1], [0], [0], [1], [0, 0, 1, 1], [], []>, precision = #tpu.contract_precision<fp32>} : vector<16x32xf32>, vector<32x128xf32>, vector<16x128xf32> -> vector<16x128xf32>
    %c0_15 = arith.constant 0 : index
    %c0_16 = arith.constant 0 : index
    %41 = vector.load %arg6[%c0_15, %c0_16] : memref<1x128xf32, #tpu.memory_space<vmem>>, vector<1x128xf32>
    %42 = vector.broadcast %41 : vector<1x128xf32> to vector<16x128xf32>
    %43 = arith.addf %40, %42 : vector<16x128xf32>
    %cst_17 = arith.constant dense<0xFF800000> : vector<16xf32>
    %44 = vector.multi_reduction <maximumf>, %43, %cst_17 [1] : vector<16x128xf32> to vector<16xf32>
    %45 = vector.shape_cast %44 : vector<16xf32> to vector<16x1xf32>
    %46 = vector.broadcast %45 : vector<16x1xf32> to vector<16x128xf32>
    %47 = arith.subf %43, %46 : vector<16x128xf32>
    %48 = math.exp %47 : vector<16x128xf32>
    %cst_18 = arith.constant dense<0.000000e+00> : vector<16xf32>
    %49 = vector.multi_reduction <add>, %48, %cst_18 [1] : vector<16x128xf32> to vector<16xf32>
    %50 = vector.shape_cast %49 : vector<16xf32> to vector<16x1xf32>
    %51 = vector.broadcast %50 : vector<16x1xf32> to vector<16x128xf32>
    %52 = arith.divf %48, %51 : vector<16x128xf32>
    %c0_19 = arith.constant 0 : index
    %c0_20 = arith.constant 0 : index
    %53 = vector.load %arg7[%c0_19, %c0_20] : memref<16x128xf32, #tpu.memory_space<vmem>>, vector<16x128xf32>
    tpu.vector_store %arg7[%c0_19, %c0_20], %52 {strides = array<i32>} : memref<16x128xf32, #tpu.memory_space<vmem>>, vector<16x128xf32>,
    return
  }
  func.func @transform_0(%arg0: i32) -> (i32, i32) {
    %c0_i32 = arith.constant 0 : i32
    %c0_i32_0 = arith.constant 0 : i32
    return %arg0, %c0_i32 : i32, i32
  }
  func.func @transform_1(%arg0: i32) -> (i32, i32) {
    %c0_i32 = arith.constant 0 : i32
    %c0_i32_0 = arith.constant 0 : i32
    %c0_i32_1 = arith.constant 0 : i32
    return %c0_i32, %c0_i32_0 : i32, i32
  }
  func.func @transform_2(%arg0: i32) -> (i32, i32) {
    %c0_i32 = arith.constant 0 : i32
    %c0_i32_0 = arith.constant 0 : i32
    %c0_i32_1 = arith.constant 0 : i32
    return %c0_i32, %c0_i32_0 : i32, i32
  }
  func.func @transform_3(%arg0: i32) -> (i32, i32) {
    %c0_i32 = arith.constant 0 : i32
    %c0_i32_0 = arith.constant 0 : i32
    %c0_i32_1 = arith.constant 0 : i32
    return %c0_i32, %c0_i32_0 : i32, i32
  }
  func.func @transform_4(%arg0: i32) -> (i32, i32) {
    %c0_i32 = arith.constant 0 : i32
    %c0_i32_0 = arith.constant 0 : i32
    %c0_i32_1 = arith.constant 0 : i32
    return %c0_i32, %c0_i32_0 : i32, i32
  }
  func.func @transform_5(%arg0: i32) -> (i32, i32) {
    %c0_i32 = arith.constant 0 : i32
    %c0_i32_0 = arith.constant 0 : i32
    %c0_i32_1 = arith.constant 0 : i32
    return %c0_i32, %c0_i32_0 : i32, i32
  }
  func.func @transform_6(%arg0: i32) -> (i32, i32) {
    %c0_i32 = arith.constant 0 : i32
    %c0_i32_0 = arith.constant 0 : i32
    return %arg0, %c0_i32 : i32, i32
  }
}

</mosaic_0001>

<llo_original>
// kernel: code2vec_forward.1
$region0: #{code2vec_forward.1}
  #allocation0 [shape = 'u32[]', space=smem, size = 0x4, offset = 0x4, fixed_abs, tag = 'smem constant byte address 0x4 - core index']
  #allocation1 [shape = 'u32[144,128]{1,0:T(1,128)}', space=vmem, size = 0x12000, scoped, tag = 'internal scratch']
  %s0 = inlined_call_operand.vmem [shape: s32[128,3], index: 0, kind: input, shape index: {}]
  %s1 = inlined_call_operand.vmem [shape: f32[160,128], index: 1, kind: input, shape index: {}]
  %s2 = inlined_call_operand.vmem [shape: f32[128,32], index: 2, kind: input, shape index: {}]
  %s3 = inlined_call_operand.vmem [shape: f32[1,32], index: 3, kind: input, shape index: {}]
  %s4 = inlined_call_operand.vmem [shape: f32[32,128], index: 4, kind: input, shape index: {}]
  %s5 = inlined_call_operand.vmem [shape: f32[1,128], index: 5, kind: input, shape index: {}]
  %s6 = inlined_call_operand.vmem [shape: f32[16,128], index: 6, kind: output, shape index: {}]
  %s7 = sld [smem:[#allocation0]]
  $region34: #{code2vec_forward.1} parent=0
    _
  %s9 = ssub.s32 1, %s7
  %s10 = scalar_select 0, %s9, %s7
  // Predicated region
  $region2: #{code2vec_forward.1} parent=0 // pred_check
    _
  $region3: #{code2vec_forward.1} parent=0 // pred_check_branch
    %12 = sbr.rel (0) target = $region5
  $region4: #{code2vec_forward.1} parent=0 // pred_region
    _
  $region5: #{code2vec_forward.1} parent=0 // pred_fallthru
    _
  // Predicated region
  $region6: #{code2vec_forward.1} parent=0 // pred_check
    _
  $region7: #{code2vec_forward.1} parent=0 // pred_check_branch
    %14 = sbr.rel (0) target = $region9
  $region8: #{code2vec_forward.1} parent=0 // pred_region
    _
  $region9: #{code2vec_forward.1} parent=0 // pred_fallthru
    _
  // Predicated region
  $region10: #{code2vec_forward.1} parent=0 // pred_check
    _
  $region11: #{code2vec_forward.1} parent=0 // pred_check_branch
    %16 = sbr.rel (0) target = $region13
  $region12: #{code2vec_forward.1} parent=0 // pred_region
    _
  $region13: #{code2vec_forward.1} parent=0 // pred_fallthru
    _
  // Predicated region
  $region14: #{code2vec_forward.1} parent=0 // pred_check
    _
  $region15: #{code2vec_forward.1} parent=0 // pred_check_branch
    %18 = sbr.rel (0) target = $region17
  $region16: #{code2vec_forward.1} parent=0 // pred_region
    _
  $region17: #{code2vec_forward.1} parent=0 // pred_fallthru
    _
  // Predicated region
  $region18: #{code2vec_forward.1} parent=0 // pred_check
    _
  $region19: #{code2vec_forward.1} parent=0 // pred_check_branch
    %20 = sbr.rel (0) target = $region21
  $region20: #{code2vec_forward.1} parent=0 // pred_region
    _
  $region21: #{code2vec_forward.1} parent=0 // pred_fallthru
    _
  // Predicated region
  $region22: #{code2vec_forward.1} parent=0 // pred_check
    _
  $region23: #{code2vec_forward.1} parent=0 // pred_check_branch
    %22 = sbr.rel (0) target = $region25
  $region24: #{code2vec_forward.1} parent=0 // pred_region
    _
  $region25: #{code2vec_forward.1} parent=0 // pred_fallthru
    _
  %v23 = vld [vmem:[%s0] sm:$0xff]
  %v24 = vld [vmem:[%s0 + $0x8] sm:$0xff]
  %v25 = vld [vmem:[%s0 + $0x10] sm:$0xff]
  %v26 = vld [vmem:[%s0 + $0x18] sm:$0xff]
  %v27 = vld [vmem:[%s0 + $0x20] sm:$0xff]
  %v28 = vld [vmem:[%s0 + $0x28] sm:$0xff]
  %v29 = vld [vmem:[%s0 + $0x30] sm:$0xff]
  %v30 = vld [vmem:[%s0 + $0x38] sm:$0xff]
  %v31 = vld [vmem:[%s0 + $0x40] sm:$0xff]
  %v32 = vld [vmem:[%s0 + $0x48] sm:$0xff]
  %v33 = vld [vmem:[%s0 + $0x50] sm:$0xff]
  %v34 = vld [vmem:[%s0 + $0x58] sm:$0xff]
  %v35 = vld [vmem:[%s0 + $0x60] sm:$0xff]
  %v36 = vld [vmem:[%s0 + $0x68] sm:$0xff]
  %v37 = vld [vmem:[%s0 + $0x70] sm:$0xff]
  %v38 = vld [vmem:[%s0 + $0x78] sm:$0xff]
  %v39 = vlaneseq
  %v40 = vand.u32 %v39, 127
  %v41 = vadd.s32 %v40, 128
  %42 = vset.pattern.permute.xlu0 0
  %43 = vperm.xlu0 %42, %v23
  %v44 = vpop.permute.xlu0 %43
  %45 = vset.pattern.permute.xlu0 0
  %46 = vperm.xlu0 %45, %v24
  %v47 = vpop.permute.xlu0 %46
  %48 = vset.pattern.permute.xlu0 0
  %49 = vperm.xlu0 %48, %v25
  %v50 = vpop.permute.xlu0 %49
  %51 = vset.pattern.permute.xlu0 0
  %52 = vperm.xlu0 %51, %v26
  %v53 = vpop.permute.xlu0 %52
  %54 = vset.pattern.permute.xlu0 0
  %55 = vperm.xlu0 %54, %v27
  %v56 = vpop.permute.xlu0 %55
  %57 = vset.pattern.permute.xlu0 0
  %58 = vperm.xlu0 %57, %v28
  %v59 = vpop.permute.xlu0 %58
  %60 = vset.pattern.permute.xlu0 0
  %61 = vperm.xlu0 %60, %v29
  %v62 = vpop.permute.xlu0 %61
  %63 = vset.pattern.permute.xlu0 0
  %64 = vperm.xlu0 %63, %v30
  %v65 = vpop.permute.xlu0 %64
  %66 = vset.pattern.permute.xlu0 0
  %67 = vperm.xlu0 %66, %v31
  %v68 = vpop.permute.xlu0 %67
  %69 = vset.pattern.permute.xlu0 0
  %70 = vperm.xlu0 %69, %v32
  %v71 = vpop.permute.xlu0 %70
  %72 = vset.pattern.permute.xlu0 0
  %73 = vperm.xlu0 %72, %v33
  %v74 = vpop.permute.xlu0 %73
  %75 = vset.pattern.permute.xlu0 0
  %76 = vperm.xlu0 %75, %v34
  %v77 = vpop.permute.xlu0 %76
  %78 = vset.pattern.permute.xlu0 0
  %79 = vperm.xlu0 %78, %v35
  %v80 = vpop.permute.xlu0 %79
  %81 = vset.pattern.permute.xlu0 0
  %82 = vperm.xlu0 %81, %v36
  %v83 = vpop.permute.xlu0 %82
  %84 = vset.pattern.permute.xlu0 0
  %85 = vperm.xlu0 %84, %v37
  %v86 = vpop.permute.xlu0 %85
  %87 = vset.pattern.permute.xlu0 0
  %88 = vperm.xlu0 %87, %v38
  %v89 = vpop.permute.xlu0 %88
  %vm90 = vcmp.eq.s32.totalorder %v40, %v44
  %vm91 = vcmp.eq.s32.totalorder %v41, %v44
  %vm92 = vcmp.eq.s32.totalorder %v40, %v47
  %vm93 = vcmp.eq.s32.totalorder %v41, %v47
  %vm94 = vcmp.eq.s32.totalorder %v40, %v50
  %vm95 = vcmp.eq.s32.totalorder %v41, %v50
  %vm96 = vcmp.eq.s32.totalorder %v40, %v53
  %vm97 = vcmp.eq.s32.totalorder %v41, %v53
  %vm98 = vcmp.eq.s32.totalorder %v40, %v56
  %vm99 = vcmp.eq.s32.totalorder %v41, %v56
  %vm100 = vcmp.eq.s32.totalorder %v40, %v59
  %vm101 = vcmp.eq.s32.totalorder %v41, %v59
  %vm102 = vcmp.eq.s32.totalorder %v40, %v62
  %vm103 = vcmp.eq.s32.totalorder %v41, %v62
  %vm104 = vcmp.eq.s32.totalorder %v40, %v65
  %vm105 = vcmp.eq.s32.totalorder %v41, %v65
  %vm106 = vcmp.eq.s32.totalorder %v40, %v68
  %vm107 = vcmp.eq.s32.totalorder %v41, %v68
  %vm108 = vcmp.eq.s32.totalorder %v40, %v71
  %vm109 = vcmp.eq.s32.totalorder %v41, %v71
  %vm110 = vcmp.eq.s32.totalorder %v40, %v74
  %vm111 = vcmp.eq.s32.totalorder %v41, %v74
  %vm112 = vcmp.eq.s32.totalorder %v40, %v77
  %vm113 = vcmp.eq.s32.totalorder %v41, %v77
  %vm114 = vcmp.eq.s32.totalorder %v40, %v80
  %vm115 = vcmp.eq.s32.totalorder %v41, %v80
  %vm116 = vcmp.eq.s32.totalorder %v40, %v83
  %vm117 = vcmp.eq.s32.totalorder %v41, %v83
  %vm118 = vcmp.eq.s32.totalorder %v40, %v86
  %vm119 = vcmp.eq.s32.totalorder %v41, %v86
  %vm120 = vcmp.eq.s32.totalorder %v40, %v89
  %vm121 = vcmp.eq.s32.totalorder %v41, %v89
  %122 = vset.pattern.permute.xlu0 1
  %123 = vperm.xlu0 %122, %v23
  %v124 = vpop.permute.xlu0 %123
  %125 = vset.pattern.permute.xlu0 1
  %126 = vperm.xlu0 %125, %v24
  %v127 = vpop.permute.xlu0 %126
  %128 = vset.pattern.permute.xlu0 1
  %129 = vperm.xlu0 %128, %v25
  %v130 = vpop.permute.xlu0 %129
  %131 = vset.pattern.permute.xlu0 1
  %132 = vperm.xlu0 %131, %v26
  %v133 = vpop.permute.xlu0 %132
  %134 = vset.pattern.permute.xlu0 1
  %135 = vperm.xlu0 %134, %v27
  %v136 = vpop.permute.xlu0 %135
  %137 = vset.pattern.permute.xlu0 1
  %138 = vperm.xlu0 %137, %v28
  %v139 = vpop.permute.xlu0 %138
  %140 = vset.pattern.permute.xlu0 1
  %141 = vperm.xlu0 %140, %v29
  %v142 = vpop.permute.xlu0 %141
  %143 = vset.pattern.permute.xlu0 1
  %144 = vperm.xlu0 %143, %v30
  %v145 = vpop.permute.xlu0 %144
  %146 = vset.pattern.permute.xlu0 1
  %147 = vperm.xlu0 %146, %v31
  %v148 = vpop.permute.xlu0 %147
  %149 = vset.pattern.permute.xlu0 1
  %150 = vperm.xlu0 %149, %v32
  %v151 = vpop.permute.xlu0 %150
  %152 = vset.pattern.permute.xlu0 1
  %153 = vperm.xlu0 %152, %v33
  %v154 = vpop.permute.xlu0 %153
  %155 = vset.pattern.permute.xlu0 1
  %156 = vperm.xlu0 %155, %v34
  %v157 = vpop.permute.xlu0 %156
  %158 = vset.pattern.permute.xlu0 1
  %159 = vperm.xlu0 %158, %v35
  %v160 = vpop.permute.xlu0 %159
  %161 = vset.pattern.permute.xlu0 1
  %162 = vperm.xlu0 %161, %v36
  %v163 = vpop.permute.xlu0 %162
  %164 = vset.pattern.permute.xlu0 1
  %165 = vperm.xlu0 %164, %v37
  %v166 = vpop.permute.xlu0 %165
  %167 = vset.pattern.permute.xlu0 1
  %168 = vperm.xlu0 %167, %v38
  %v169 = vpop.permute.xlu0 %168
  %vm170 = vcmp.eq.s32.totalorder %v40, %v124
  %vm171 = vcmp.eq.s32.totalorder %v41, %v124
  %vm172 = vcmp.eq.s32.totalorder %v40, %v127
  %vm173 = vcmp.eq.s32.totalorder %v41, %v127
  %vm174 = vcmp.eq.s32.totalorder %v40, %v130
  %vm175 = vcmp.eq.s32.totalorder %v41, %v130
  %vm176 = vcmp.eq.s32.totalorder %v40, %v133
  %vm177 = vcmp.eq.s32.totalorder %v41, %v133
  %vm178 = vcmp.eq.s32.totalorder %v40, %v136
  %vm179 = vcmp.eq.s32.totalorder %v41, %v136
  %vm180 = vcmp.eq.s32.totalorder %v40, %v139
  %vm181 = vcmp.eq.s32.totalorder %v41, %v139
  %vm182 = vcmp.eq.s32.totalorder %v40, %v142
  %vm183 = vcmp.eq.s32.totalorder %v41, %v142
  %vm184 = vcmp.eq.s32.totalorder %v40, %v145
  %vm185 = vcmp.eq.s32.totalorder %v41, %v145
  %vm186 = vcmp.eq.s32.totalorder %v40, %v148
  %vm187 = vcmp.eq.s32.totalorder %v41, %v148
  %vm188 = vcmp.eq.s32.totalorder %v40, %v151
  %vm189 = vcmp.eq.s32.totalorder %v41, %v151
  %vm190 = vcmp.eq.s32.totalorder %v40, %v154
  %vm191 = vcmp.eq.s32.totalorder %v41, %v154
  %vm192 = vcmp.eq.s32.totalorder %v40, %v157
  %vm193 = vcmp.eq.s32.totalorder %v41, %v157
  %vm194 = vcmp.eq.s32.totalorder %v40, %v160
  %vm195 = vcmp.eq.s32.totalorder %v41, %v160
  %vm196 = vcmp.eq.s32.totalorder %v40, %v163
  %vm197 = vcmp.eq.s32.totalorder %v41, %v163
  %vm198 = vcmp.eq.s32.totalorder %v40, %v166
  %vm199 = vcmp.eq.s32.totalorder %v41, %v166
  %vm200 = vcmp.eq.s32.totalorder %v40, %v169
  %vm201 = vcmp.eq.s32.totalorder %v41, %v169
  %vm202 = vmor %vm90, %vm170
  %vm203 = vmor %vm91, %vm171
  %vm204 = vmor %vm92, %vm172
  %vm205 = vmor %vm93, %vm173
  %vm206 = vmor %vm94, %vm174
  %vm207 = vmor %vm95, %vm175
  %vm208 = vmor %vm96, %vm176
  %vm209 = vmor %vm97, %vm177
  %vm210 = vmor %vm98, %vm178
  %vm211 = vmor %vm99, %vm179
  %vm212 = vmor %vm100, %vm180
  %vm213 = vmor %vm101, %vm181
  %vm214 = vmor %vm102, %vm182
  %vm215 = vmor %vm103, %vm183
  %vm216 = vmor %vm104, %vm184
  %vm217 = vmor %vm105, %vm185
  %vm218 = vmor %vm106, %vm186
  %vm219 = vmor %vm107, %vm187
  %vm220 = vmor %vm108, %vm188
  %vm221 = vmor %vm109, %vm189
  %vm222 = vmor %vm110, %vm190
  %vm223 = vmor %vm111, %vm191
  %vm224 = vmor %vm112, %vm192
  %vm225 = vmor %vm113, %vm193
  %vm226 = vmor %vm114, %vm194
  %vm227 = vmor %vm115, %vm195
  %vm228 = vmor %vm116, %vm196
  %vm229 = vmor %vm117, %vm197
  %vm230 = vmor %vm118, %vm198
  %vm231 = vmor %vm119, %vm199
  %vm232 = vmor %vm120, %vm200
  %vm233 = vmor %vm121, %vm201
  %234 = vset.pattern.permute.xlu0 2
  %235 = vperm.xlu0 %234, %v23
  %v236 = vpop.permute.xlu0 %235
  %237 = vset.pattern.permute.xlu0 2
  %238 = vperm.xlu0 %237, %v24
  %v239 = vpop.permute.xlu0 %238
  %240 = vset.pattern.permute.xlu0 2
  %241 = vperm.xlu0 %240, %v25
  %v242 = vpop.permute.xlu0 %241
  %243 = vset.pattern.permute.xlu0 2
  %244 = vperm.xlu0 %243, %v26
  %v245 = vpop.permute.xlu0 %244
  %246 = vset.pattern.permute.xlu0 2
  %247 = vperm.xlu0 %246, %v27
  %v248 = vpop.permute.xlu0 %247
  %249 = vset.pattern.permute.xlu0 2
  %250 = vperm.xlu0 %249, %v28
  %v251 = vpop.permute.xlu0 %250
  %252 = vset.pattern.permute.xlu0 2
  %253 = vperm.xlu0 %252, %v29
  %v254 = vpop.permute.xlu0 %253
  %255 = vset.pattern.permute.xlu0 2
  %256 = vperm.xlu0 %255, %v30
  %v257 = vpop.permute.xlu0 %256
  %258 = vset.pattern.permute.xlu0 2
  %259 = vperm.xlu0 %258, %v31
  %v260 = vpop.permute.xlu0 %259
  %261 = vset.pattern.permute.xlu0 2
  %262 = vperm.xlu0 %261, %v32
  %v263 = vpop.permute.xlu0 %262
  %264 = vset.pattern.permute.xlu0 2
  %265 = vperm.xlu0 %264, %v33
  %v266 = vpop.permute.xlu0 %265
  %267 = vset.pattern.permute.xlu0 2
  %268 = vperm.xlu0 %267, %v34
  %v269 = vpop.permute.xlu0 %268
  %270 = vset.pattern.permute.xlu0 2
  %271 = vperm.xlu0 %270, %v35
  %v272 = vpop.permute.xlu0 %271
  %273 = vset.pattern.permute.xlu0 2
  %274 = vperm.xlu0 %273, %v36
  %v275 = vpop.permute.xlu0 %274
  %276 = vset.pattern.permute.xlu0 2
  %277 = vperm.xlu0 %276, %v37
  %v278 = vpop.permute.xlu0 %277
  %279 = vset.pattern.permute.xlu0 2
  %280 = vperm.xlu0 %279, %v38
  %v281 = vpop.permute.xlu0 %280
  %vm282 = vcmp.eq.s32.totalorder %v40, %v236
  %vm283 = vcmp.eq.s32.totalorder %v41, %v236
  %vm284 = vcmp.eq.s32.totalorder %v40, %v239
  %vm285 = vcmp.eq.s32.totalorder %v41, %v239
  %vm286 = vcmp.eq.s32.totalorder %v40, %v242
  %vm287 = vcmp.eq.s32.totalorder %v41, %v242
  %vm288 = vcmp.eq.s32.totalorder %v40, %v245
  %vm289 = vcmp.eq.s32.totalorder %v41, %v245
  %vm290 = vcmp.eq.s32.totalorder %v40, %v248
  %vm291 = vcmp.eq.s32.totalorder %v41, %v248
  %vm292 = vcmp.eq.s32.totalorder %v40, %v251
  %vm293 = vcmp.eq.s32.totalorder %v41, %v251
  %vm294 = vcmp.eq.s32.totalorder %v40, %v254
  %vm295 = vcmp.eq.s32.totalorder %v41, %v254
  %vm296 = vcmp.eq.s32.totalorder %v40, %v257
  %vm297 = vcmp.eq.s32.totalorder %v41, %v257
  %vm298 = vcmp.eq.s32.totalorder %v40, %v260
  %vm299 = vcmp.eq.s32.totalorder %v41, %v260
  %vm300 = vcmp.eq.s32.totalorder %v40, %v263
  %vm301 = vcmp.eq.s32.totalorder %v41, %v263
  %vm302 = vcmp.eq.s32.totalorder %v40, %v266
  %vm303 = vcmp.eq.s32.totalorder %v41, %v266
  %vm304 = vcmp.eq.s32.totalorder %v40, %v269
  %vm305 = vcmp.eq.s32.totalorder %v41, %v269
  %vm306 = vcmp.eq.s32.totalorder %v40, %v272
  %vm307 = vcmp.eq.s32.totalorder %v41, %v272
  %vm308 = vcmp.eq.s32.totalorder %v40, %v275
  %vm309 = vcmp.eq.s32.totalorder %v41, %v275
  %vm310 = vcmp.eq.s32.totalorder %v40, %v278
  %vm311 = vcmp.eq.s32.totalorder %v41, %v278
  %vm312 = vcmp.eq.s32.totalorder %v40, %v281
  %vm313 = vcmp.eq.s32.totalorder %v41, %v281
  %vm314 = vmor %vm202, %vm282
  %vm315 = vmor %vm203, %vm283
  %vm316 = vmor %vm204, %vm284
  %vm317 = vmor %vm205, %vm285
  %vm318 = vmor %vm206, %vm286
  %vm319 = vmor %vm207, %vm287
  %vm320 = vmor %vm208, %vm288
  %vm321 = vmor %vm209, %vm289
  %vm322 = vmor %vm210, %vm290
  %vm323 = vmor %vm211, %vm291
  %vm324 = vmor %vm212, %vm292
  %vm325 = vmor %vm213, %vm293
  %vm326 = vmor %vm214, %vm294
  %vm327 = vmor %vm215, %vm295
  %vm328 = vmor %vm216, %vm296
  %vm329 = vmor %vm217, %vm297
  %vm330 = vmor %vm218, %vm298
  %vm331 = vmor %vm219, %vm299
  %vm332 = vmor %vm220, %vm300
  %vm333 = vmor %vm221, %vm301
  %vm334 = vmor %vm222, %vm302
  %vm335 = vmor %vm223, %vm303
  %vm336 = vmor %vm224, %vm304
  %vm337 = vmor %vm225, %vm305
  %vm338 = vmor %vm226, %vm306
  %vm339 = vmor %vm227, %vm307
  %vm340 = vmor %vm228, %vm308
  %vm341 = vmor %vm229, %vm309
  %vm342 = vmor %vm230, %vm310
  %vm343 = vmor %vm231, %vm311
  %vm344 = vmor %vm232, %vm312
  %vm345 = vmor %vm233, %vm313
  %v346 = vsel %vm314, 1, 0
  %v347 = vsel %vm315, 1, 0
  %v348 = vsel %vm316, 1, 0
  %v349 = vsel %vm317, 1, 0
  %v350 = vsel %vm318, 1, 0
  %v351 = vsel %vm319, 1, 0
  %v352 = vsel %vm320, 1, 0
  %v353 = vsel %vm321, 1, 0
  %v354 = vsel %vm322, 1, 0
  %v355 = vsel %vm323, 1, 0
  %v356 = vsel %vm324, 1, 0
  %v357 = vsel %vm325, 1, 0
  %v358 = vsel %vm326, 1, 0
  %v359 = vsel %vm327, 1, 0
  %v360 = vsel %vm328, 1, 0
  %v361 = vsel %vm329, 1, 0
  %v362 = vsel %vm330, 1, 0
  %v363 = vsel %vm331, 1, 0
  %v364 = vsel %vm332, 1, 0
  %v365 = vsel %vm333, 1, 0
  %v366 = vsel %vm334, 1, 0
  %v367 = vsel %vm335, 1, 0
  %v368 = vsel %vm336, 1, 0
  %v369 = vsel %vm337, 1, 0
  %v370 = vsel %vm338, 1, 0
  %v371 = vsel %vm339, 1, 0
  %v372 = vsel %vm340, 1, 0
  %v373 = vsel %vm341, 1, 0
  %v374 = vsel %vm342, 1, 0
  %v375 = vsel %vm343, 1, 0
  %v376 = vsel %vm344, 1, 0
  %v377 = vsel %vm345, 1, 0
  %v378 = vcvt.s32.f32 %v346
  %v379 = vcvt.s32.f32 %v347
  %v380 = vcvt.s32.f32 %v348
  %v381 = vcvt.s32.f32 %v349
  %v382 = vcvt.s32.f32 %v350
  %v383 = vcvt.s32.f32 %v351
  %v384 = vcvt.s32.f32 %v352
  %v385 = vcvt.s32.f32 %v353
  %v386 = vcvt.s32.f32 %v354
  %v387 = vcvt.s32.f32 %v355
  %v388 = vcvt.s32.f32 %v356
  %v389 = vcvt.s32.f32 %v357
  %v390 = vcvt.s32.f32 %v358
  %v391 = vcvt.s32.f32 %v359
  %v392 = vcvt.s32.f32 %v360
  %v393 = vcvt.s32.f32 %v361
  %v394 = vcvt.s32.f32 %v362
  %v395 = vcvt.s32.f32 %v363
  %v396 = vcvt.s32.f32 %v364
  %v397 = vcvt.s32.f32 %v365
  %v398 = vcvt.s32.f32 %v366
  %v399 = vcvt.s32.f32 %v367
  %v400 = vcvt.s32.f32 %v368
  %v401 = vcvt.s32.f32 %v369
  %v402 = vcvt.s32.f32 %v370
  %v403 = vcvt.s32.f32 %v371
  %v404 = vcvt.s32.f32 %v372
  %v405 = vcvt.s32.f32 %v373
  %v406 = vcvt.s32.f32 %v374
  %v407 = vcvt.s32.f32 %v375
  %v408 = vcvt.s32.f32 %v376
  %v409 = vcvt.s32.f32 %v377
  %v410 = vld [vmem:[%s1] sm:$0xff]
  %v411 = vld [vmem:[%s1 + $0x8] sm:$0xff]
  %v412 = vld [vmem:[%s1 + $0x10] sm:$0xff]
  %v413 = vld [vmem:[%s1 + $0x18] sm:$0xff]
  %v414 = vld [vmem:[%s1 + $0x20] sm:$0xff]
  %v415 = vld [vmem:[%s1 + $0x28] sm:$0xff]
  %v416 = vld [vmem:[%s1 + $0x30] sm:$0xff]
  %v417 = vld [vmem:[%s1 + $0x38] sm:$0xff]
  %v418 = vld [vmem:[%s1 + $0x40] sm:$0xff]
  %v419 = vld [vmem:[%s1 + $0x48] sm:$0xff]
  %v420 = vld [vmem:[%s1 + $0x50] sm:$0xff]
  %v421 = vld [vmem:[%s1 + $0x58] sm:$0xff]
  %v422 = vld [vmem:[%s1 + $0x60] sm:$0xff]
  %v423 = vld [vmem:[%s1 + $0x68] sm:$0xff]
  %v424 = vld [vmem:[%s1 + $0x70] sm:$0xff]
  %v425 = vld [vmem:[%s1 + $0x78] sm:$0xff]
  %v426 = vld [vmem:[%s1 + $0x80] sm:$0xff]
  %v427 = vld [vmem:[%s1 + $0x88] sm:$0xff]
  %v428 = vld [vmem:[%s1 + $0x90] sm:$0xff]
  %v429 = vld [vmem:[%s1 + $0x98] sm:$0xff]
  %vm430 = vcmask 261120
  %v432 = vsel %vm430, %v379, 0
  %v435 = vsel %vm430, %v381, 0
  %v438 = vsel %vm430, %v383, 0
  %v441 = vsel %vm430, %v385, 0
  %v444 = vsel %vm430, %v387, 0
  %v447 = vsel %vm430, %v389, 0
  %v450 = vsel %vm430, %v391, 0
  %v453 = vsel %vm430, %v393, 0
  %v456 = vsel %vm430, %v395, 0
  %v459 = vsel %vm430, %v397, 0
  %v462 = vsel %vm430, %v399, 0
  %v465 = vsel %vm430, %v401, 0
  %v468 = vsel %vm430, %v403, 0
  %v471 = vsel %vm430, %v405, 0
  %v474 = vsel %vm430, %v407, 0
  %v477 = vsel %vm430, %v409, 0
  %479 = vmatprep.subr.mxu0 0.0
  %v480 = vand.u32 %v410, 4294901760
  %481 = vmatpush1.msra.mxu0 %v480
  %482 = vmatprep.subr.mxu0 0.0
  %v483 = vand.u32 %v411, 4294901760
  %484 = vmatpush1.msra.mxu0 %v483
  %485 = vmatprep.subr.mxu0 0.0
  %v486 = vand.u32 %v412, 4294901760
  %487 = vmatpush1.msra.mxu0 %v486
  %488 = vmatprep.subr.mxu0 0.0
  %v489 = vand.u32 %v413, 4294901760
  %490 = vmatpush1.msra.mxu0 %v489
  %491 = vmatprep.subr.mxu0 0.0
  %v492 = vand.u32 %v414, 4294901760
  %493 = vmatpush1.msra.mxu0 %v492
  %494 = vmatprep.subr.mxu0 0.0
  %v495 = vand.u32 %v415, 4294901760
  %496 = vmatpush1.msra.mxu0 %v495
  %497 = vmatprep.subr.mxu0 0.0
  %v498 = vand.u32 %v416, 4294901760
  %499 = vmatpush1.msra.mxu0 %v498
  %500 = vmatprep.subr.mxu0 0.0
  %v501 = vand.u32 %v417, 4294901760
  %502 = vmatpush1.msra.mxu0 %v501
  %503 = vmatprep.subr.mxu0 0.0
  %v504 = vand.u32 %v418, 4294901760
  %505 = vmatpush1.msra.mxu0 %v504
  %506 = vmatprep.subr.mxu0 0.0
  %v507 = vand.u32 %v419, 4294901760
  %508 = vmatpush1.msra.mxu0 %v507
  %509 = vmatprep.subr.mxu0 0.0
  %v510 = vand.u32 %v420, 4294901760
  %511 = vmatpush1.msra.mxu0 %v510
  %512 = vmatprep.subr.mxu0 0.0
  %v513 = vand.u32 %v421, 4294901760
  %514 = vmatpush1.msra.mxu0 %v513
  %515 = vmatprep.subr.mxu0 0.0
  %v516 = vand.u32 %v422, 4294901760
  %517 = vmatpush1.msra.mxu0 %v516
  %518 = vmatprep.subr.mxu0 0.0
  %v519 = vand.u32 %v423, 4294901760
  %520 = vmatpush1.msra.mxu0 %v519
  %521 = vmatprep.subr.mxu0 0.0
  %v522 = vand.u32 %v424, 4294901760
  %523 = vmatpush1.msra.mxu0 %v522
  %524 = vmatprep.subr.mxu0 0.0
  %v525 = vand.u32 %v425, 4294901760
  %526 = vmatpush1.msra.mxu0 %v525
  %527 = vmatprep.subr.mxu0 0.0
  %v528 = vand.u32 %v426, 4294901760
  %529 = vmatpush1.msra.mxu0 %v528
  %530 = vmatprep.subr.mxu0 0.0
  %v531 = vand.u32 %v427, 4294901760
  %532 = vmatpush1.msra.mxu0 %v531
  %533 = vmatprep.subr.mxu0 0.0
  %v534 = vand.u32 %v428, 4294901760
  %535 = vmatpush1.msra.mxu0 %v534
  %536 = vmatprep.subr.mxu0 0.0
  %v537 = vand.u32 %v429, 4294901760
  %538 = vmatpush1.msra.mxu0 %v537
  %539 = vmatprep.subr.mxu0 0.0
  %540 = vmatpush1.msra.mxu0 0.0
  %541 = vmatprep.subr.mxu0 0.0
  %542 = vmatpush1.msra.mxu0 0.0
  %543 = vmatprep.subr.mxu0 0.0
  %544 = vmatpush1.msra.mxu0 0.0
  %545 = vmatprep.subr.mxu0 0.0
  %546 = vmatpush1.msra.mxu0 0.0
  %547 = vmatprep.subr.mxu0 0.0
  %548 = vmatpush1.msra.mxu0 0.0
  %549 = vmatprep.subr.mxu0 0.0
  %550 = vmatpush1.msra.mxu0 0.0
  %551 = vmatprep.subr.mxu0 0.0
  %552 = vmatpush1.msra.mxu0 0.0
  %553 = vmatprep.subr.mxu0 0.0
  %554 = vmatpush1.msra.mxu0 0.0
  %555 = vmatprep.subr.mxu0 0.0
  %556 = vmatpush1.msra.mxu0 0.0
  %557 = vmatprep.subr.mxu0 0.0
  %558 = vmatpush1.msra.mxu0 0.0
  %559 = vmatprep.subr.mxu0 0.0
  %560 = vmatpush1.msra.mxu0 0.0
  %561 = vmatprep.subr.mxu0 0.0
  %562 = vmatpush1.msra.mxu0 0.0
  %v563 = vand.u32 %v432, 4294901760
  %v564 = vsub.f32 %v432, %v563
  %v565 = vand.u32 %v564, 4294901760
  %v566 = vsub.f32 %v564, %v565
  %v567 = vand.u32 %v566, 4294901760
  %568 = vmatprep.mubr.f32.mxu0 %v567
  %v569 = vand.u32 %v378, 4294901760
  %v570 = vsub.f32 %v378, %v569
  %v571 = vand.u32 %v570, 4294901760
  %v572 = vsub.f32 %v570, %v571
  %v573 = vand.u32 %v572, 4294901760
  %574 = vmatmul.mubr.f32.gmra.mrb[0].mxu0 %v573
  %v575 = vpop.f32.mrb[0].mxu0
  %v576 = vadd.f32 0.0, %v575
  %v577 = vpop.f32.mrb[0].mxu0
  %v578 = vand.u32 %v435, 4294901760
  %v579 = vsub.f32 %v435, %v578
  %v580 = vand.u32 %v579, 4294901760
  %v581 = vsub.f32 %v579, %v580
  %v582 = vand.u32 %v581, 4294901760
  %583 = vmatprep.mubr.f32.mxu0 %v582
  %v584 = vand.u32 %v380, 4294901760
  %v585 = vsub.f32 %v380, %v584
  %v586 = vand.u32 %v585, 4294901760
  %v587 = vsub.f32 %v585, %v586
  %v588 = vand.u32 %v587, 4294901760
  %589 = vmatmul.mubr.f32.gmra.mrb[0].mxu0 %v588
  %v590 = vpop.f32.mrb[0].mxu0
  %v591 = vadd.f32 0.0, %v590
  %v592 = vpop.f32.mrb[0].mxu0
  %v593 = vand.u32 %v438, 4294901760
  %v594 = vsub.f32 %v438, %v593
  %v595 = vand.u32 %v594, 4294901760
  %v596 = vsub.f32 %v594, %v595
  %v597 = vand.u32 %v596, 4294901760
  %598 = vmatprep.mubr.f32.mxu0 %v597
  %v599 = vand.u32 %v382, 4294901760
  %v600 = vsub.f32 %v382, %v599
  %v601 = vand.u32 %v600, 4294901760
  %v602 = vsub.f32 %v600, %v601
  %v603 = vand.u32 %v602, 4294901760
  %604 = vmatmul.mubr.f32.gmra.mrb[0].mxu0 %v603
  %v605 = vpop.f32.mrb[0].mxu0
  %v606 = vadd.f32 0.0, %v605
  %v607 = vpop.f32.mrb[0].mxu0
  %v608 = vand.u32 %v441, 4294901760
  %v609 = vsub.f32 %v441, %v608
  %v610 = vand.u32 %v609, 4294901760
  %v611 = vsub.f32 %v609, %v610
  %v612 = vand.u32 %v611, 4294901760
  %613 = vmatprep.mubr.f32.mxu0 %v612
  %v614 = vand.u32 %v384, 4294901760
  %v615 = vsub.f32 %v384, %v614
  %v616 = vand.u32 %v615, 4294901760
  %v617 = vsub.f32 %v615, %v616
  %v618 = vand.u32 %v617, 4294901760
  %619 = vmatmul.mubr.f32.gmra.mrb[0].mxu0 %v618
  %v620 = vpop.f32.mrb[0].mxu0
  %v621 = vadd.f32 0.0, %v620
  %v622 = vpop.f32.mrb[0].mxu0
  %v623 = vand.u32 %v444, 4294901760
  %v624 = vsub.f32 %v444, %v623
  %v625 = vand.u32 %v624, 4294901760
  %v626 = vsub.f32 %v624, %v625
  %v627 = vand.u32 %v626, 4294901760
  %628 = vmatprep.mubr.f32.mxu0 %v627
  %v629 = vand.u32 %v386, 4294901760
  %v630 = vsub.f32 %v386, %v629
  %v631 = vand.u32 %v630, 4294901760
  %v632 = vsub.f32 %v630, %v631
  %v633 = vand.u32 %v632, 4294901760
  %634 = vmatmul.mubr.f32.gmra.mrb[0].mxu0 %v633
  %v635 = vpop.f32.mrb[0].mxu0
  %v636 = vadd.f32 0.0, %v635
  %v637 = vpop.f32.mrb[0].mxu0
  %v638 = vand.u32 %v447, 4294901760
  %v639 = vsub.f32 %v447, %v638
  %v640 = vand.u32 %v639, 4294901760
  %v641 = vsub.f32 %v639, %v640
  %v642 = vand.u32 %v641, 4294901760
  %643 = vmatprep.mubr.f32.mxu0 %v642
  %v644 = vand.u32 %v388, 4294901760
  %v645 = vsub.f32 %v388, %v644
  %v646 = vand.u32 %v645, 4294901760
  %v647 = vsub.f32 %v645, %v646
  %v648 = vand.u32 %v647, 4294901760
  %649 = vmatmul.mubr.f32.gmra.mrb[0].mxu0 %v648
  %v650 = vpop.f32.mrb[0].mxu0
  %v651 = vadd.f32 0.0, %v650
  %v652 = vpop.f32.mrb[0].mxu0
  %v653 = vand.u32 %v450, 4294901760
  %v654 = vsub.f32 %v450, %v653
  %v655 = vand.u32 %v654, 4294901760
  %v656 = vsub.f32 %v654, %v655
  %v657 = vand.u32 %v656, 4294901760
  %658 = vmatprep.mubr.f32.mxu0 %v657
  %v659 = vand.u32 %v390, 4294901760
  %v660 = vsub.f32 %v390, %v659
  %v661 = vand.u32 %v660, 4294901760
  %v662 = vsub.f32 %v660, %v661
  %v663 = vand.u32 %v662, 4294901760
  %664 = vmatmul.mubr.f32.gmra.mrb[0].mxu0 %v663
  %v665 = vpop.f32.mrb[0].mxu0
  %v666 = vadd.f32 0.0, %v665
  %v667 = vpop.f32.mrb[0].mxu0
  %v668 = vand.u32 %v453, 4294901760
  %v669 = vsub.f32 %v453, %v668
  %v670 = vand.u32 %v669, 4294901760
  %v671 = vsub.f32 %v669, %v670
  %v672 = vand.u32 %v671, 4294901760
  %673 = vmatprep.mubr.f32.mxu0 %v672
  %v674 = vand.u32 %v392, 4294901760
  %v675 = vsub.f32 %v392, %v674
  %v676 = vand.u32 %v675, 4294901760
  %v677 = vsub.f32 %v675, %v676
  %v678 = vand.u32 %v677, 4294901760
  %679 = vmatmul.mubr.f32.gmra.mrb[0].mxu0 %v678
  %v680 = vpop.f32.mrb[0].mxu0
  %v681 = vadd.f32 0.0, %v680
  %v682 = vpop.f32.mrb[0].mxu0
  %v683 = vand.u32 %v456, 4294901760
  %v684 = vsub.f32 %v456, %v683
  %v685 = vand.u32 %v684, 4294901760
  %v686 = vsub.f32 %v684, %v685
  %v687 = vand.u32 %v686, 4294901760
  %688 = vmatprep.mubr.f32.mxu0 %v687
  %v689 = vand.u32 %v394, 4294901760
  %v690 = vsub.f32 %v394, %v689
  %v691 = vand.u32 %v690, 4294901760
  %v692 = vsub.f32 %v690, %v691
  %v693 = vand.u32 %v692, 4294901760
  %694 = vmatmul.mubr.f32.gmra.mrb[0].mxu0 %v693
  %v695 = vpop.f32.mrb[0].mxu0
  %v696 = vadd.f32 0.0, %v695
  %v697 = vpop.f32.mrb[0].mxu0
  %v698 = vand.u32 %v459, 4294901760
  %v699 = vsub.f32 %v459, %v698
  %v700 = vand.u32 %v699, 4294901760
  %v701 = vsub.f32 %v699, %v700
  %v702 = vand.u32 %v701, 4294901760
  %703 = vmatprep.mubr.f32.mxu0 %v702
  %v704 = vand.u32 %v396, 4294901760
  %v705 = vsub.f32 %v396, %v704
  %v706 = vand.u32 %v705, 4294901760
  %v707 = vsub.f32 %v705, %v706
  %v708 = vand.u32 %v707, 4294901760
  %709 = vmatmul.mubr.f32.gmra.mrb[0].mxu0 %v708
  %v710 = vpop.f32.mrb[0].mxu0
  %v711 = vadd.f32 0.0, %v710
  %v712 = vpop.f32.mrb[0].mxu0
  %v713 = vand.u32 %v462, 4294901760
  %v714 = vsub.f32 %v462, %v713
  %v715 = vand.u32 %v714, 4294901760
  %v716 = vsub.f32 %v714, %v715
  %v717 = vand.u32 %v716, 4294901760
  %718 = vmatprep.mubr.f32.mxu0 %v717
  %v719 = vand.u32 %v398, 4294901760
  %v720 = vsub.f32 %v398, %v719
  %v721 = vand.u32 %v720, 4294901760
  %v722 = vsub.f32 %v720, %v721
  %v723 = vand.u32 %v722, 4294901760
  %724 = vmatmul.mubr.f32.gmra.mrb[0].mxu0 %v723
  %v725 = vpop.f32.mrb[0].mxu0
  %v726 = vadd.f32 0.0, %v725
  %v727 = vpop.f32.mrb[0].mxu0
  %v728 = vand.u32 %v465, 4294901760
  %v729 = vsub.f32 %v465, %v728
  %v730 = vand.u32 %v729, 4294901760
  %v731 = vsub.f32 %v729, %v730
  %v732 = vand.u32 %v731, 4294901760
  %733 = vmatprep.mubr.f32.mxu0 %v732
  %v734 = vand.u32 %v400, 4294901760
  %v735 = vsub.f32 %v400, %v734
  %v736 = vand.u32 %v735, 4294901760
  %v737 = vsub.f32 %v735, %v736
  %v738 = vand.u32 %v737, 4294901760
  %739 = vmatmul.mubr.f32.gmra.mrb[0].mxu0 %v738
  %v740 = vpop.f32.mrb[0].mxu0
  %v741 = vadd.f32 0.0, %v740
  %v742 = vpop.f32.mrb[0].mxu0
  %v743 = vand.u32 %v468, 4294901760
  %v744 = vsub.f32 %v468, %v743
  %v745 = vand.u32 %v744, 4294901760
  %v746 = vsub.f32 %v744, %v745
  %v747 = vand.u32 %v746, 4294901760
  %748 = vmatprep.mubr.f32.mxu0 %v747
  %v749 = vand.u32 %v402, 4294901760
  %v750 = vsub.f32 %v402, %v749
  %v751 = vand.u32 %v750, 4294901760
  %v752 = vsub.f32 %v750, %v751
  %v753 = vand.u32 %v752, 4294901760
  %754 = vmatmul.mubr.f32.gmra.mrb[0].mxu0 %v753
  %v755 = vpop.f32.mrb[0].mxu0
  %v756 = vadd.f32 0.0, %v755
  %v757 = vpop.f32.mrb[0].mxu0
  %v758 = vand.u32 %v471, 4294901760
  %v759 = vsub.f32 %v471, %v758
  %v760 = vand.u32 %v759, 4294901760
  %v761 = vsub.f32 %v759, %v760
  %v762 = vand.u32 %v761, 4294901760
  %763 = vmatprep.mubr.f32.mxu0 %v762
  %v764 = vand.u32 %v404, 4294901760
  %v765 = vsub.f32 %v404, %v764
  %v766 = vand.u32 %v765, 4294901760
  %v767 = vsub.f32 %v765, %v766
  %v768 = vand.u32 %v767, 4294901760
  %769 = vmatmul.mubr.f32.gmra.mrb[0].mxu0 %v768
  %v770 = vpop.f32.mrb[0].mxu0
  %v771 = vadd.f32 0.0, %v770
  %v772 = vpop.f32.mrb[0].mxu0
  %v773 = vand.u32 %v474, 4294901760
  %v774 = vsub.f32 %v474, %v773
  %v775 = vand.u32 %v774, 4294901760
  %v776 = vsub.f32 %v774, %v775
  %v777 = vand.u32 %v776, 4294901760
  %778 = vmatprep.mubr.f32.mxu0 %v777
  %v779 = vand.u32 %v406, 4294901760
  %v780 = vsub.f32 %v406, %v779
  %v781 = vand.u32 %v780, 4294901760
  %v782 = vsub.f32 %v780, %v781
  %v783 = vand.u32 %v782, 4294901760
  %784 = vmatmul.mubr.f32.gmra.mrb[0].mxu0 %v783
  %v785 = vpop.f32.mrb[0].mxu0
  %v786 = vadd.f32 0.0, %v785
  %v787 = vpop.f32.mrb[0].mxu0
  %v788 = vand.u32 %v477, 4294901760
  %v789 = vsub.f32 %v477, %v788
  %v790 = vand.u32 %v789, 4294901760
  %v791 = vsub.f32 %v789, %v790
  %v792 = vand.u32 %v791, 4294901760
  %793 = vmatprep.mubr.f32.mxu0 %v792
  %v794 = vand.u32 %v408, 4294901760
  %v795 = vsub.f32 %v408, %v794
  %v796 = vand.u32 %v795, 4294901760
  %v797 = vsub.f32 %v795, %v796
  %v798 = vand.u32 %v797, 4294901760
  %799 = vmatmul.mubr.f32.gmra.mrb[0].mxu0 %v798
  %v800 = vpop.f32.mrb[0].mxu0
  %v801 = vadd.f32 0.0, %v800
  %v802 = vpop.f32.mrb[0].mxu0
  %803 = vdwg.mxu0
  %804 = vmatprep.subr.mxu0 0.0
  %v805 = vand.u32 %v410, 4294901760
  %v806 = vsub.f32 %v410, %v805
  %v807 = vand.u32 %v806, 4294901760
  %v808 = vsub.f32 %v806, %v807
  %v809 = vand.u32 %v808, 4294901760
  %810 = vmatpush1.msra.mxu0 %v809
  %811 = vmatprep.subr.mxu0 0.0
  %v812 = vand.u32 %v411, 4294901760
  %v813 = vsub.f32 %v411, %v812
  %v814 = vand.u32 %v813, 4294901760
  %v815 = vsub.f32 %v813, %v814
  %v816 = vand.u32 %v815, 4294901760
  %817 = vmatpush1.msra.mxu0 %v816
  %818 = vmatprep.subr.mxu0 0.0
  %v819 = vand.u32 %v412, 4294901760
  %v820 = vsub.f32 %v412, %v819
  %v821 = vand.u32 %v820, 4294901760
  %v822 = vsub.f32 %v820, %v821
  %v823 = vand.u32 %v822, 4294901760
  %824 = vmatpush1.msra.mxu0 %v823
  %825 = vmatprep.subr.mxu0 0.0
  %v826 = vand.u32 %v413, 4294901760
  %v827 = vsub.f32 %v413, %v826
  %v828 = vand.u32 %v827, 4294901760
  %v829 = vsub.f32 %v827, %v828
  %v830 = vand.u32 %v829, 4294901760
  %831 = vmatpush1.msra.mxu0 %v830
  %832 = vmatprep.subr.mxu0 0.0
  %v833 = vand.u32 %v414, 4294901760
  %v834 = vsub.f32 %v414, %v833
  %v835 = vand.u32 %v834, 4294901760
  %v836 = vsub.f32 %v834, %v835
  %v837 = vand.u32 %v836, 4294901760
  %838 = vmatpush1.msra.mxu0 %v837
  %839 = vmatprep.subr.mxu0 0.0
  %v840 = vand.u32 %v415, 4294901760
  %v841 = vsub.f32 %v415, %v840
  %v842 = vand.u32 %v841, 4294901760
  %v843 = vsub.f32 %v841, %v842
  %v844 = vand.u32 %v843, 4294901760
  %845 = vmatpush1.msra.mxu0 %v844
  %846 = vmatprep.subr.mxu0 0.0
  %v847 = vand.u32 %v416, 4294901760
  %v848 = vsub.f32 %v416, %v847
  %v849 = vand.u32 %v848, 4294901760
  %v850 = vsub.f32 %v848, %v849
  %v851 = vand.u32 %v850, 4294901760
  %852 = vmatpush1.msra.mxu0 %v851
  %853 = vmatprep.subr.mxu0 0.0
  %v854 = vand.u32 %v417, 4294901760
  %v855 = vsub.f32 %v417, %v854
  %v856 = vand.u32 %v855, 4294901760
  %v857 = vsub.f32 %v855, %v856
  %v858 = vand.u32 %v857, 4294901760
  %859 = vmatpush1.msra.mxu0 %v858
  %860 = vmatprep.subr.mxu0 0.0
  %v861 = vand.u32 %v418, 4294901760
  %v862 = vsub.f32 %v418, %v861
  %v863 = vand.u32 %v862, 4294901760
  %v864 = vsub.f32 %v862, %v863
  %v865 = vand.u32 %v864, 4294901760
  %866 = vmatpush1.msra.mxu0 %v865
  %867 = vmatprep.subr.mxu0 0.0
  %v868 = vand.u32 %v419, 4294901760
  %v869 = vsub.f32 %v419, %v868
  %v870 = vand.u32 %v869, 4294901760
  %v871 = vsub.f32 %v869, %v870
  %v872 = vand.u32 %v871, 4294901760
  %873 = vmatpush1.msra.mxu0 %v872
  %874 = vmatprep.subr.mxu0 0.0
  %v875 = vand.u32 %v420, 4294901760
  %v876 = vsub.f32 %v420, %v875
  %v877 = vand.u32 %v876, 4294901760
  %v878 = vsub.f32 %v876, %v877
  %v879 = vand.u32 %v878, 4294901760
  %880 = vmatpush1.msra.mxu0 %v879
  %881 = vmatprep.subr.mxu0 0.0
  %v882 = vand.u32 %v421, 4294901760
  %v883 = vsub.f32 %v421, %v882
  %v884 = vand.u32 %v883, 4294901760
  %v885 = vsub.f32 %v883, %v884
  %v886 = vand.u32 %v885, 4294901760
  %887 = vmatpush1.msra.mxu0 %v886
  %888 = vmatprep.subr.mxu0 0.0
  %v889 = vand.u32 %v422, 4294901760
  %v890 = vsub.f32 %v422, %v889
  %v891 = vand.u32 %v890, 4294901760
  %v892 = vsub.f32 %v890, %v891
  %v893 = vand.u32 %v892, 4294901760
  %894 = vmatpush1.msra.mxu0 %v893
  %895 = vmatprep.subr.mxu0 0.0
  %v896 = vand.u32 %v423, 4294901760
  %v897 = vsub.f32 %v423, %v896
  %v898 = vand.u32 %v897, 4294901760
  %v899 = vsub.f32 %v897, %v898
  %v900 = vand.u32 %v899, 4294901760
  %901 = vmatpush1.msra.mxu0 %v900
  %902 = vmatprep.subr.mxu0 0.0
  %v903 = vand.u32 %v424, 4294901760
  %v904 = vsub.f32 %v424, %v903
  %v905 = vand.u32 %v904, 4294901760
  %v906 = vsub.f32 %v904, %v905
  %v907 = vand.u32 %v906, 4294901760
  %908 = vmatpush1.msra.mxu0 %v907
  %909 = vmatprep.subr.mxu0 0.0
  %v910 = vand.u32 %v425, 4294901760
  %v911 = vsub.f32 %v425, %v910
  %v912 = vand.u32 %v911, 4294901760
  %v913 = vsub.f32 %v911, %v912
  %v914 = vand.u32 %v913, 4294901760
  %915 = vmatpush1.msra.mxu0 %v914
  %916 = vmatprep.subr.mxu0 0.0
  %v917 = vand.u32 %v426, 4294901760
  %v918 = vsub.f32 %v426, %v917
  %v919 = vand.u32 %v918, 4294901760
  %v920 = vsub.f32 %v918, %v919
  %v921 = vand.u32 %v920, 4294901760
  %922 = vmatpush1.msra.mxu0 %v921
  %923 = vmatprep.subr.mxu0 0.0
  %v924 = vand.u32 %v427, 4294901760
  %v925 = vsub.f32 %v427, %v924
  %v926 = vand.u32 %v925, 4294901760
  %v927 = vsub.f32 %v925, %v926
  %v928 = vand.u32 %v927, 4294901760
  %929 = vmatpush1.msra.mxu0 %v928
  %930 = vmatprep.subr.mxu0 0.0
  %v931 = vand.u32 %v428, 4294901760
  %v932 = vsub.f32 %v428, %v931
  %v933 = vand.u32 %v932, 4294901760
  %v934 = vsub.f32 %v932, %v933
  %v935 = vand.u32 %v934, 4294901760
  %936 = vmatpush1.msra.mxu0 %v935
  %937 = vmatprep.subr.mxu0 0.0
  %v938 = vand.u32 %v429, 4294901760
  %v939 = vsub.f32 %v429, %v938
  %v940 = vand.u32 %v939, 4294901760
  %v941 = vsub.f32 %v939, %v940
  %v942 = vand.u32 %v941, 4294901760
  %943 = vmatpush1.msra.mxu0 %v942
  %944 = vmatprep.subr.mxu0 0.0
  %945 = vmatpush1.msra.mxu0 0.0
  %946 = vmatprep.subr.mxu0 0.0
  %947 = vmatpush1.msra.mxu0 0.0
  %948 = vmatprep.subr.mxu0 0.0
  %949 = vmatpush1.msra.mxu0 0.0
  %950 = vmatprep.subr.mxu0 0.0
  %951 = vmatpush1.msra.mxu0 0.0
  %952 = vmatprep.subr.mxu0 0.0
  %953 = vmatpush1.msra.mxu0 0.0
  %954 = vmatprep.subr.mxu0 0.0
  %955 = vmatpush1.msra.mxu0 0.0
  %956 = vmatprep.subr.mxu0 0.0
  %957 = vmatpush1.msra.mxu0 0.0
  %958 = vmatprep.subr.mxu0 0.0
  %959 = vmatpush1.msra.mxu0 0.0
  %960 = vmatprep.subr.mxu0 0.0
  %961 = vmatpush1.msra.mxu0 0.0
  %962 = vmatprep.subr.mxu0 0.0
  %963 = vmatpush1.msra.mxu0 0.0
  %964 = vmatprep.subr.mxu0 0.0
  %965 = vmatpush1.msra.mxu0 0.0
  %966 = vmatprep.subr.mxu0 0.0
  %967 = vmatpush1.msra.mxu0 0.0
  %v968 = vand.u32 %v432, 4294901760
  %969 = vmatprep.mubr.f32.mxu0 %v968
  %v970 = vand.u32 %v378, 4294901760
  %971 = vmatmul.mubr.f32.gmra.mrb[0].mxu0 %v970
  %v972 = vpop.f32.mrb[0].mxu0
  %v973 = vadd.f32 %v576, %v972
  %v974 = vpop.f32.mrb[0].mxu0
  %v975 = vand.u32 %v435, 4294901760
  %976 = vmatprep.mubr.f32.mxu0 %v975
  %v977 = vand.u32 %v380, 4294901760
  %978 = vmatmul.mubr.f32.gmra.mrb[0].mxu0 %v977
  %v979 = vpop.f32.mrb[0].mxu0
  %v980 = vadd.f32 %v591, %v979
  %v981 = vpop.f32.mrb[0].mxu0
  %v982 = vand.u32 %v438, 4294901760
  %983 = vmatprep.mubr.f32.mxu0 %v982
  %v984 = vand.u32 %v382, 4294901760
  %985 = vmatmul.mubr.f32.gmra.mrb[0].mxu0 %v984
  %v986 = vpop.f32.mrb[0].mxu0
  %v987 = vadd.f32 %v606, %v986
  %v988 = vpop.f32.mrb[0].mxu0
  %v989 = vand.u32 %v441, 4294901760
  %990 = vmatprep.mubr.f32.mxu0 %v989
  %v991 = vand.u32 %v384, 4294901760
  %992 = vmatmul.mubr.f32.gmra.mrb[0].mxu0 %v991
  %v993 = vpop.f32.mrb[0].mxu0
  %v994 = vadd.f32 %v621, %v993
  %v995 = vpop.f32.mrb[0].mxu0
  %v996 = vand.u32 %v444, 4294901760
  %997 = vmatprep.mubr.f32.mxu0 %v996
  %v998 = vand.u32 %v386, 4294901760
  %999 = vmatmul.mubr.f32.gmra.mrb[0].mxu0 %v998
  %v1000 = vpop.f32.mrb[0].mxu0
  %v1001 = vadd.f32 %v636, %v1000
  %v1002 = vpop.f32.mrb[0].mxu0
  %v1003 = vand.u32 %v447, 4294901760
  %1004 = vmatprep.mubr.f32.mxu0 %v1003
  %v1005 = vand.u32 %v388, 4294901760
  %1006 = vmatmul.mubr.f32.gmra.mrb[0].mxu0 %v1005
  %v1007 = vpop.f32.mrb[0].mxu0
  %v1008 = vadd.f32 %v651, %v1007
  %v1009 = vpop.f32.mrb[0].mxu0
  %v1010 = vand.u32 %v450, 4294901760
  %1011 = vmatprep.mubr.f32.mxu0 %v1010
  %v1012 = vand.u32 %v390, 4294901760
  %1013 = vmatmul.mubr.f32.gmra.mrb[0].mxu0 %v1012
  %v1014 = vpop.f32.mrb[0].mxu0
  %v1015 = vadd.f32 %v666, %v1014
  %v1016 = vpop.f32.mrb[0].mxu0
  %v1017 = vand.u32 %v453, 4294901760
  %1018 = vmatprep.mubr.f32.mxu0 %v1017
  %v1019 = vand.u32 %v392, 4294901760
  %1020 = vmatmul.mubr.f32.gmra.mrb[0].mxu0 %v1019
  %v1021 = vpop.f32.mrb[0].mxu0
  %v1022 = vadd.f32 %v681, %v1021
  %v1023 = vpop.f32.mrb[0].mxu0
  %v1024 = vand.u32 %v456, 4294901760
  %1025 = vmatprep.mubr.f32.mxu0 %v1024
  %v1026 = vand.u32 %v394, 4294901760
  %1027 = vmatmul.mubr.f32.gmra.mrb[0].mxu0 %v1026
  %v1028 = vpop.f32.mrb[0].mxu0
  %v1029 = vadd.f32 %v696, %v1028
  %v1030 = vpop.f32.mrb[0].mxu0
  %v1031 = vand.u32 %v459, 4294901760
  %1032 = vmatprep.mubr.f32.mxu0 %v1031
  %v1033 = vand.u32 %v396, 4294901760
  %1034 = vmatmul.mubr.f32.gmra.mrb[0].mxu0 %v1033
  %v1035 = vpop.f32.mrb[0].mxu0
  %v1036 = vadd.f32 %v711, %v1035
  %v1037 = vpop.f32.mrb[0].mxu0
  %v1038 = vand.u32 %v462, 4294901760
  %1039 = vmatprep.mubr.f32.mxu0 %v1038
  %v1040 = vand.u32 %v398, 4294901760
  %1041 = vmatmul.mubr.f32.gmra.mrb[0].mxu0 %v1040
  %v1042 = vpop.f32.mrb[0].mxu0
  %v1043 = vadd.f32 %v726, %v1042
  %v1044 = vpop.f32.mrb[0].mxu0
  %v1045 = vand.u32 %v465, 4294901760
  %1046 = vmatprep.mubr.f32.mxu0 %v1045
  %v1047 = vand.u32 %v400, 4294901760
  %1048 = vmatmul.mubr.f32.gmra.mrb[0].mxu0 %v1047
  %v1049 = vpop.f32.mrb[0].mxu0
  %v1050 = vadd.f32 %v741, %v1049
  %v1051 = vpop.f32.mrb[0].mxu0
  %v1052 = vand.u32 %v468, 4294901760
  %1053 = vmatprep.mubr.f32.mxu0 %v1052
  %v1054 = vand.u32 %v402, 4294901760
  %1055 = vmatmul.mubr.f32.gmra.mrb[0].mxu0 %v1054
  %v1056 = vpop.f32.mrb[0].mxu0
  %v1057 = vadd.f32 %v756, %v1056
  %v1058 = vpop.f32.mrb[0].mxu0
  %v1059 = vand.u32 %v471, 4294901760
  %1060 = vmatprep.mubr.f32.mxu0 %v1059
  %v1061 = vand.u32 %v404, 4294901760
  %1062 = vmatmul.mubr.f32.gmra.mrb[0].mxu0 %v1061
  %v1063 = vpop.f32.mrb[0].mxu0
  %v1064 = vadd.f32 %v771, %v1063
  %v1065 = vpop.f32.mrb[0].mxu0
  %v1066 = vand.u32 %v474, 4294901760
  %1067 = vmatprep.mubr.f32.mxu0 %v1066
  %v1068 = vand.u32 %v406, 4294901760
  %1069 = vmatmul.mubr.f32.gmra.mrb[0].mxu0 %v1068
  %v1070 = vpop.f32.mrb[0].mxu0
  %v1071 = vadd.f32 %v786, %v1070
  %v1072 = vpop.f32.mrb[0].mxu0
  %v1073 = vand.u32 %v477, 4294901760
  %1074 = vmatprep.mubr.f32.mxu0 %v1073
  %v1075 = vand.u32 %v408, 4294901760
  %1076 = vmatmul.mubr.f32.gmra.mrb[0].mxu0 %v1075
  %v1077 = vpop.f32.mrb[0].mxu0
  %v1078 = vadd.f32 %v801, %v1077
  %v1079 = vpop.f32.mrb[0].mxu0
  %1080 = vdwg.mxu0
  %1081 = vmatprep.subr.mxu0 0.0
  %v1082 = vand.u32 %v410, 4294901760
  %v1083 = vsub.f32 %v410, %v1082
  %1084 = vmatpush1.msra.mxu0 %v1083
  %1085 = vmatprep.subr.mxu0 0.0
  %v1086 = vand.u32 %v411, 4294901760
  %v1087 = vsub.f32 %v411, %v1086
  %1088 = vmatpush1.msra.mxu0 %v1087
  %1089 = vmatprep.subr.mxu0 0.0
  %v1090 = vand.u32 %v412, 4294901760
  %v1091 = vsub.f32 %v412, %v1090
  %1092 = vmatpush1.msra.mxu0 %v1091
  %1093 = vmatprep.subr.mxu0 0.0
  %v1094 = vand.u32 %v413, 4294901760
  %v1095 = vsub.f32 %v413, %v1094
  %1096 = vmatpush1.msra.mxu0 %v1095
  %1097 = vmatprep.subr.mxu0 0.0
  %v1098 = vand.u32 %v414, 4294901760
  %v1099 = vsub.f32 %v414, %v1098
  %1100 = vmatpush1.msra.mxu0 %v1099
  %1101 = vmatprep.subr.mxu0 0.0
  %v1102 = vand.u32 %v415, 4294901760
  %v1103 = vsub.f32 %v415, %v1102
  %1104 = vmatpush1.msra.mxu0 %v1103
  %1105 = vmatprep.subr.mxu0 0.0
  %v1106 = vand.u32 %v416, 4294901760
  %v1107 = vsub.f32 %v416, %v1106
  %1108 = vmatpush1.msra.mxu0 %v1107
  %1109 = vmatprep.subr.mxu0 0.0
  %v1110 = vand.u32 %v417, 4294901760
  %v1111 = vsub.f32 %v417, %v1110
  %1112 = vmatpush1.msra.mxu0 %v1111
  %1113 = vmatprep.subr.mxu0 0.0
  %v1114 = vand.u32 %v418, 4294901760
  %v1115 = vsub.f32 %v418, %v1114
  %1116 = vmatpush1.msra.mxu0 %v1115
  %1117 = vmatprep.subr.mxu0 0.0
  %v1118 = vand.u32 %v419, 4294901760
  %v1119 = vsub.f32 %v419, %v1118
  %1120 = vmatpush1.msra.mxu0 %v1119
  %1121 = vmatprep.subr.mxu0 0.0
  %v1122 = vand.u32 %v420, 4294901760
  %v1123 = vsub.f32 %v420, %v1122
  %1124 = vmatpush1.msra.mxu0 %v1123
  %1125 = vmatprep.subr.mxu0 0.0
  %v1126 = vand.u32 %v421, 4294901760
  %v1127 = vsub.f32 %v421, %v1126
  %1128 = vmatpush1.msra.mxu0 %v1127
  %1129 = vmatprep.subr.mxu0 0.0
  %v1130 = vand.u32 %v422, 4294901760
  %v1131 = vsub.f32 %v422, %v1130
  %1132 = vmatpush1.msra.mxu0 %v1131
  %1133 = vmatprep.subr.mxu0 0.0
  %v1134 = vand.u32 %v423, 4294901760
  %v1135 = vsub.f32 %v423, %v1134
  %1136 = vmatpush1.msra.mxu0 %v1135
  %1137 = vmatprep.subr.mxu0 0.0
  %v1138 = vand.u32 %v424, 4294901760
  %v1139 = vsub.f32 %v424, %v1138
  %1140 = vmatpush1.msra.mxu0 %v1139
  %1141 = vmatprep.subr.mxu0 0.0
  %v1142 = vand.u32 %v425, 4294901760
  %v1143 = vsub.f32 %v425, %v1142
  %1144 = vmatpush1.msra.mxu0 %v1143
  %1145 = vmatprep.subr.mxu0 0.0
  %v1146 = vand.u32 %v426, 4294901760
  %v1147 = vsub.f32 %v426, %v1146
  %1148 = vmatpush1.msra.mxu0 %v1147
  %1149 = vmatprep.subr.mxu0 0.0
  %v1150 = vand.u32 %v427, 4294901760
  %v1151 = vsub.f32 %v427, %v1150
  %1152 = vmatpush1.msra.mxu0 %v1151
  %1153 = vmatprep.subr.mxu0 0.0
  %v1154 = vand.u32 %v428, 4294901760
  %v1155 = vsub.f32 %v428, %v1154
  %1156 = vmatpush1.msra.mxu0 %v1155
  %1157 = vmatprep.subr.mxu0 0.0
  %v1158 = vand.u32 %v429, 4294901760
  %v1159 = vsub.f32 %v429, %v1158
  %1160 = vmatpush1.msra.mxu0 %v1159
  %1161 = vmatprep.subr.mxu0 0.0
  %1162 = vmatpush1.msra.mxu0 0.0
  %1163 = vmatprep.subr.mxu0 0.0
  %1164 = vmatpush1.msra.mxu0 0.0
  %1165 = vmatprep.subr.mxu0 0.0
  %1166 = vmatpush1.msra.mxu0 0.0
  %1167 = vmatprep.subr.mxu0 0.0
  %1168 = vmatpush1.msra.mxu0 0.0
  %1169 = vmatprep.subr.mxu0 0.0
  %1170 = vmatpush1.msra.mxu0 0.0
  %1171 = vmatprep.subr.mxu0 0.0
  %1172 = vmatpush1.msra.mxu0 0.0
  %1173 = vmatprep.subr.mxu0 0.0
  %1174 = vmatpush1.msra.mxu0 0.0
  %1175 = vmatprep.subr.mxu0 0.0
  %1176 = vmatpush1.msra.mxu0 0.0
  %1177 = vmatprep.subr.mxu0 0.0
  %1178 = vmatpush1.msra.mxu0 0.0
  %1179 = vmatprep.subr.mxu0 0.0
  %1180 = vmatpush1.msra.mxu0 0.0
  %1181 = vmatprep.subr.mxu0 0.0
  %1182 = vmatpush1.msra.mxu0 0.0
  %1183 = vmatprep.subr.mxu0 0.0
  %1184 = vmatpush1.msra.mxu0 0.0
  %v1185 = vand.u32 %v432, 4294901760
  %v1186 = vsub.f32 %v432, %v1185
  %1187 = vmatprep.mubr.f32.mxu0 %v1186
  %v1188 = vand.u32 %v378, 4294901760
  %v1189 = vsub.f32 %v378, %v1188
  %1190 = vmatmul.mubr.f32.gmra.mrb[0].mxu0 %v1189
  %v1191 = vpop.f32.mrb[0].mxu0
  %v1192 = vadd.f32 %v973, %v1191
  %v1193 = vpop.f32.mrb[0].mxu0
  %v1194 = vand.u32 %v435, 4294901760
  %v1195 = vsub.f32 %v435, %v1194
  %1196 = vmatprep.mubr.f32.mxu0 %v1195
  %v1197 = vand.u32 %v380, 4294901760
  %v1198 = vsub.f32 %v380, %v1197
  %1199 = vmatmul.mubr.f32.gmra.mrb[0].mxu0 %v1198
  %v1200 = vpop.f32.mrb[0].mxu0
  %v1201 = vadd.f32 %v980, %v1200
  %v1202 = vpop.f32.mrb[0].mxu0
  %v1203 = vand.u32 %v438, 4294901760
  %v1204 = vsub.f32 %v438, %v1203
  %1205 = vmatprep.mubr.f32.mxu0 %v1204
  %v1206 = vand.u32 %v382, 4294901760
  %v1207 = vsub.f32 %v382, %v1206
  %1208 = vmatmul.mubr.f32.gmra.mrb[0].mxu0 %v1207
  %v1209 = vpop.f32.mrb[0].mxu0
  %v1210 = vadd.f32 %v987, %v1209
  %v1211 = vpop.f32.mrb[0].mxu0
  %v1212 = vand.u32 %v441, 4294901760
  %v1213 = vsub.f32 %v441, %v1212
  %1214 = vmatprep.mubr.f32.mxu0 %v1213
  %v1215 = vand.u32 %v384, 4294901760
  %v1216 = vsub.f32 %v384, %v1215
  %1217 = vmatmul.mubr.f32.gmra.mrb[0].mxu0 %v1216
  %v1218 = vpop.f32.mrb[0].mxu0
  %v1219 = vadd.f32 %v994, %v1218
  %v1220 = vpop.f32.mrb[0].mxu0
  %v1221 = vand.u32 %v444, 4294901760
  %v1222 = vsub.f32 %v444, %v1221
  %1223 = vmatprep.mubr.f32.mxu0 %v1222
  %v1224 = vand.u32 %v386, 4294901760
  %v1225 = vsub.f32 %v386, %v1224
  %1226 = vmatmul.mubr.f32.gmra.mrb[0].mxu0 %v1225
  %v1227 = vpop.f32.mrb[0].mxu0
  %v1228 = vadd.f32 %v1001, %v1227
  %v1229 = vpop.f32.mrb[0].mxu0
  %v1230 = vand.u32 %v447, 4294901760
  %v1231 = vsub.f32 %v447, %v1230
  %1232 = vmatprep.mubr.f32.mxu0 %v1231
  %v1233 = vand.u32 %v388, 4294901760
  %v1234 = vsub.f32 %v388, %v1233
  %1235 = vmatmul.mubr.f32.gmra.mrb[0].mxu0 %v1234
  %v1236 = vpop.f32.mrb[0].mxu0
  %v1237 = vadd.f32 %v1008, %v1236
  %v1238 = vpop.f32.mrb[0].mxu0
  %v1239 = vand.u32 %v450, 4294901760
  %v1240 = vsub.f32 %v450, %v1239
  %1241 = vmatprep.mubr.f32.mxu0 %v1240
  %v1242 = vand.u32 %v390, 4294901760
  %v1243 = vsub.f32 %v390, %v1242
  %1244 = vmatmul.mubr.f32.gmra.mrb[0].mxu0 %v1243
  %v1245 = vpop.f32.mrb[0].mxu0
  %v1246 = vadd.f32 %v1015, %v1245
  %v1247 = vpop.f32.mrb[0].mxu0
  %v1248 = vand.u32 %v453, 4294901760
  %v1249 = vsub.f32 %v453, %v1248
  %1250 = vmatprep.mubr.f32.mxu0 %v1249
  %v1251 = vand.u32 %v392, 4294901760
  %v1252 = vsub.f32 %v392, %v1251
  %1253 = vmatmul.mubr.f32.gmra.mrb[0].mxu0 %v1252
  %v1254 = vpop.f32.mrb[0].mxu0
  %v1255 = vadd.f32 %v1022, %v1254
  %v1256 = vpop.f32.mrb[0].mxu0
  %v1257 = vand.u32 %v456, 4294901760
  %v1258 = vsub.f32 %v456, %v1257
  %1259 = vmatprep.mubr.f32.mxu0 %v1258
  %v1260 = vand.u32 %v394, 4294901760
  %v1261 = vsub.f32 %v394, %v1260
  %1262 = vmatmul.mubr.f32.gmra.mrb[0].mxu0 %v1261
  %v1263 = vpop.f32.mrb[0].mxu0
  %v1264 = vadd.f32 %v1029, %v1263
  %v1265 = vpop.f32.mrb[0].mxu0
  %v1266 = vand.u32 %v459, 4294901760
  %v1267 = vsub.f32 %v459, %v1266
  %1268 = vmatprep.mubr.f32.mxu0 %v1267
  %v1269 = vand.u32 %v396, 4294901760
  %v1270 = vsub.f32 %v396, %v1269
  %1271 = vmatmul.mubr.f32.gmra.mrb[0].mxu0 %v1270
  %v1272 = vpop.f32.mrb[0].mxu0
  %v1273 = vadd.f32 %v1036, %v1272
  %v1274 = vpop.f32.mrb[0].mxu0
  %v1275 = vand.u32 %v462, 4294901760
  %v1276 = vsub.f32 %v462, %v1275
  %1277 = vmatprep.mubr.f32.mxu0 %v1276
  %v1278 = vand.u32 %v398, 4294901760
  %v1279 = vsub.f32 %v398, %v1278
  %1280 = vmatmul.mubr.f32.gmra.mrb[0].mxu0 %v1279
  %v1281 = vpop.f32.mrb[0].mxu0
  %v1282 = vadd.f32 %v1043, %v1281
  %v1283 = vpop.f32.mrb[0].mxu0
  %v1284 = vand.u32 %v465, 4294901760
  %v1285 = vsub.f32 %v465, %v1284
  %1286 = vmatprep.mubr.f32.mxu0 %v1285
  %v1287 = vand.u32 %v400, 4294901760
  %v1288 = vsub.f32 %v400, %v1287
  %1289 = vmatmul.mubr.f32.gmra.mrb[0].mxu0 %v1288
  %v1290 = vpop.f32.mrb[0].mxu0
  %v1291 = vadd.f32 %v1050, %v1290
  %v1292 = vpop.f32.mrb[0].mxu0
  %v1293 = vand.u32 %v468, 4294901760
  %v1294 = vsub.f32 %v468, %v1293
  %1295 = vmatprep.mubr.f32.mxu0 %v1294
  %v1296 = vand.u32 %v402, 4294901760
  %v1297 = vsub.f32 %v402, %v1296
  %1298 = vmatmul.mubr.f32.gmra.mrb[0].mxu0 %v1297
  %v1299 = vpop.f32.mrb[0].mxu0
  %v1300 = vadd.f32 %v1057, %v1299
  %v1301 = vpop.f32.mrb[0].mxu0
  %v1302 = vand.u32 %v471, 4294901760
  %v1303 = vsub.f32 %v471, %v1302
  %1304 = vmatprep.mubr.f32.mxu0 %v1303
  %v1305 = vand.u32 %v404, 4294901760
  %v1306 = vsub.f32 %v404, %v1305
  %1307 = vmatmul.mubr.f32.gmra.mrb[0].mxu0 %v1306
  %v1308 = vpop.f32.mrb[0].mxu0
  %v1309 = vadd.f32 %v1064, %v1308
  %v1310 = vpop.f32.mrb[0].mxu0
  %v1311 = vand.u32 %v474, 4294901760
  %v1312 = vsub.f32 %v474, %v1311
  %1313 = vmatprep.mubr.f32.mxu0 %v1312
  %v1314 = vand.u32 %v406, 4294901760
  %v1315 = vsub.f32 %v406, %v1314
  %1316 = vmatmul.mubr.f32.gmra.mrb[0].mxu0 %v1315
  %v1317 = vpop.f32.mrb[0].mxu0
  %v1318 = vadd.f32 %v1071, %v1317
  %v1319 = vpop.f32.mrb[0].mxu0
  %v1320 = vand.u32 %v477, 4294901760
  %v1321 = vsub.f32 %v477, %v1320
  %1322 = vmatprep.mubr.f32.mxu0 %v1321
  %v1323 = vand.u32 %v408, 4294901760
  %v1324 = vsub.f32 %v408, %v1323
  %1325 = vmatmul.mubr.f32.gmra.mrb[0].mxu0 %v1324
  %v1326 = vpop.f32.mrb[0].mxu0
  %v1327 = vadd.f32 %v1078, %v1326
  %v1328 = vpop.f32.mrb[0].mxu0
  %1329 = vdwg.mxu0
  %1330 = vmatprep.subr.mxu0 0.0
  %v1331 = vand.u32 %v410, 4294901760
  %1332 = vmatpush1.msra.mxu0 %v1331
  %1333 = vmatprep.subr.mxu0 0.0
  %v1334 = vand.u32 %v411, 4294901760
  %1335 = vmatpush1.msra.mxu0 %v1334
  %1336 = vmatprep.subr.mxu0 0.0
  %v1337 = vand.u32 %v412, 4294901760
  %1338 = vmatpush1.msra.mxu0 %v1337
  %1339 = vmatprep.subr.mxu0 0.0
  %v1340 = vand.u32 %v413, 4294901760
  %1341 = vmatpush1.msra.mxu0 %v1340
  %1342 = vmatprep.subr.mxu0 0.0
  %v1343 = vand.u32 %v414, 4294901760
  %1344 = vmatpush1.msra.mxu0 %v1343
  %1345 = vmatprep.subr.mxu0 0.0
  %v1346 = vand.u32 %v415, 4294901760
  %1347 = vmatpush1.msra.mxu0 %v1346
  %1348 = vmatprep.subr.mxu0 0.0
  %v1349 = vand.u32 %v416, 4294901760
  %1350 = vmatpush1.msra.mxu0 %v1349
  %1351 = vmatprep.subr.mxu0 0.0
  %v1352 = vand.u32 %v417, 4294901760
  %1353 = vmatpush1.msra.mxu0 %v1352
  %1354 = vmatprep.subr.mxu0 0.0
  %v1355 = vand.u32 %v418, 4294901760
  %1356 = vmatpush1.msra.mxu0 %v1355
  %1357 = vmatprep.subr.mxu0 0.0
  %v1358 = vand.u32 %v419, 4294901760
  %1359 = vmatpush1.msra.mxu0 %v1358
  %1360 = vmatprep.subr.mxu0 0.0
  %v1361 = vand.u32 %v420, 4294901760
  %1362 = vmatpush1.msra.mxu0 %v1361
  %1363 = vmatprep.subr.mxu0 0.0
  %v1364 = vand.u32 %v421, 4294901760
  %1365 = vmatpush1.msra.mxu0 %v1364
  %1366 = vmatprep.subr.mxu0 0.0
  %v1367 = vand.u32 %v422, 4294901760
  %1368 = vmatpush1.msra.mxu0 %v1367
  %1369 = vmatprep.subr.mxu0 0.0
  %v1370 = vand.u32 %v423, 4294901760
  %1371 = vmatpush1.msra.mxu0 %v1370
  %1372 = vmatprep.subr.mxu0 0.0
  %v1373 = vand.u32 %v424, 4294901760
  %1374 = vmatpush1.msra.mxu0 %v1373
  %1375 = vmatprep.subr.mxu0 0.0
  %v1376 = vand.u32 %v425, 4294901760
  %1377 = vmatpush1.msra.mxu0 %v1376
  %1378 = vmatprep.subr.mxu0 0.0
  %v1379 = vand.u32 %v426, 4294901760
  %1380 = vmatpush1.msra.mxu0 %v1379
  %1381 = vmatprep.subr.mxu0 0.0
  %v1382 = vand.u32 %v427, 4294901760
  %1383 = vmatpush1.msra.mxu0 %v1382
  %1384 = vmatprep.subr.mxu0 0.0
  %v1385 = vand.u32 %v428, 4294901760
  %1386 = vmatpush1.msra.mxu0 %v1385
  %1387 = vmatprep.subr.mxu0 0.0
  %v1388 = vand.u32 %v429, 4294901760
  %1389 = vmatpush1.msra.mxu0 %v1388
  %1390 = vmatprep.subr.mxu0 0.0
  %1391 = vmatpush1.msra.mxu0 0.0
  %1392 = vmatprep.subr.mxu0 0.0
  %1393 = vmatpush1.msra.mxu0 0.0
  %1394 = vmatprep.subr.mxu0 0.0
  %1395 = vmatpush1.msra.mxu0 0.0
  %1396 = vmatprep.subr.mxu0 0.0
  %1397 = vmatpush1.msra.mxu0 0.0
  %1398 = vmatprep.subr.mxu0 0.0
  %1399 = vmatpush1.msra.mxu0 0.0
  %1400 = vmatprep.subr.mxu0 0.0
  %1401 = vmatpush1.msra.mxu0 0.0
  %1402 = vmatprep.subr.mxu0 0.0
  %1403 = vmatpush1.msra.mxu0 0.0
  %1404 = vmatprep.subr.mxu0 0.0
  %1405 = vmatpush1.msra.mxu0 0.0
  %1406 = vmatprep.subr.mxu0 0.0
  %1407 = vmatpush1.msra.mxu0 0.0
  %1408 = vmatprep.subr.mxu0 0.0
  %1409 = vmatpush1.msra.mxu0 0.0
  %1410 = vmatprep.subr.mxu0 0.0
  %1411 = vmatpush1.msra.mxu0 0.0
  %1412 = vmatprep.subr.mxu0 0.0
  %1413 = vmatpush1.msra.mxu0 0.0
  %v1414 = vand.u32 %v432, 4294901760
  %v1415 = vsub.f32 %v432, %v1414
  %v1416 = vand.u32 %v1415, 4294901760
  %1417 = vmatprep.mubr.f32.mxu0 %v1416
  %v1418 = vand.u32 %v378, 4294901760
  %v1419 = vsub.f32 %v378, %v1418
  %v1420 = vand.u32 %v1419, 4294901760
  %1421 = vmatmul.mubr.f32.gmra.mrb[0].mxu0 %v1420
  %v1422 = vpop.f32.mrb[0].mxu0
  %v1423 = vadd.f32 %v1192, %v1422
  %v1424 = vpop.f32.mrb[0].mxu0
  %v1425 = vand.u32 %v435, 4294901760
  %v1426 = vsub.f32 %v435, %v1425
  %v1427 = vand.u32 %v1426, 4294901760
  %1428 = vmatprep.mubr.f32.mxu0 %v1427
  %v1429 = vand.u32 %v380, 4294901760
  %v1430 = vsub.f32 %v380, %v1429
  %v1431 = vand.u32 %v1430, 4294901760
  %1432 = vmatmul.mubr.f32.gmra.mrb[0].mxu0 %v1431
  %v1433 = vpop.f32.mrb[0].mxu0
  %v1434 = vadd.f32 %v1201, %v1433
  %v1435 = vpop.f32.mrb[0].mxu0
  %v1436 = vand.u32 %v438, 4294901760
  %v1437 = vsub.f32 %v438, %v1436
  %v1438 = vand.u32 %v1437, 4294901760
  %1439 = vmatprep.mubr.f32.mxu0 %v1438
  %v1440 = vand.u32 %v382, 4294901760
  %v1441 = vsub.f32 %v382, %v1440
  %v1442 = vand.u32 %v1441, 4294901760
  %1443 = vmatmul.mubr.f32.gmra.mrb[0].mxu0 %v1442
  %v1444 = vpop.f32.mrb[0].mxu0
  %v1445 = vadd.f32 %v1210, %v1444
  %v1446 = vpop.f32.mrb[0].mxu0
  %v1447 = vand.u32 %v441, 4294901760
  %v1448 = vsub.f32 %v441, %v1447
  %v1449 = vand.u32 %v1448, 4294901760
  %1450 = vmatprep.mubr.f32.mxu0 %v1449
  %v1451 = vand.u32 %v384, 4294901760
  %v1452 = vsub.f32 %v384, %v1451
  %v1453 = vand.u32 %v1452, 4294901760
  %1454 = vmatmul.mubr.f32.gmra.mrb[0].mxu0 %v1453
  %v1455 = vpop.f32.mrb[0].mxu0
  %v1456 = vadd.f32 %v1219, %v1455
  %v1457 = vpop.f32.mrb[0].mxu0
  %v1458 = vand.u32 %v444, 4294901760
  %v1459 = vsub.f32 %v444, %v1458
  %v1460 = vand.u32 %v1459, 4294901760
  %1461 = vmatprep.mubr.f32.mxu0 %v1460
  %v1462 = vand.u32 %v386, 4294901760
  %v1463 = vsub.f32 %v386, %v1462
  %v1464 = vand.u32 %v1463, 4294901760
  %1465 = vmatmul.mubr.f32.gmra.mrb[0].mxu0 %v1464
  %v1466 = vpop.f32.mrb[0].mxu0
  %v1467 = vadd.f32 %v1228, %v1466
  %v1468 = vpop.f32.mrb[0].mxu0
  %v1469 = vand.u32 %v447, 4294901760
  %v1470 = vsub.f32 %v447, %v1469
  %v1471 = vand.u32 %v1470, 4294901760
  %1472 = vmatprep.mubr.f32.mxu0 %v1471
  %v1473 = vand.u32 %v388, 4294901760
  %v1474 = vsub.f32 %v388, %v1473
  %v1475 = vand.u32 %v1474, 4294901760
  %1476 = vmatmul.mubr.f32.gmra.mrb[0].mxu0 %v1475
  %v1477 = vpop.f32.mrb[0].mxu0
  %v1478 = vadd.f32 %v1237, %v1477
  %v1479 = vpop.f32.mrb[0].mxu0
  %v1480 = vand.u32 %v450, 4294901760
  %v1481 = vsub.f32 %v450, %v1480
  %v1482 = vand.u32 %v1481, 4294901760
  %1483 = vmatprep.mubr.f32.mxu0 %v1482
  %v1484 = vand.u32 %v390, 4294901760
  %v1485 = vsub.f32 %v390, %v1484
  %v1486 = vand.u32 %v1485, 4294901760
  %1487 = vmatmul.mubr.f32.gmra.mrb[0].mxu0 %v1486
  %v1488 = vpop.f32.mrb[0].mxu0
  %v1489 = vadd.f32 %v1246, %v1488
  %v1490 = vpop.f32.mrb[0].mxu0
  %v1491 = vand.u32 %v453, 4294901760
  %v1492 = vsub.f32 %v453, %v1491
  %v1493 = vand.u32 %v1492, 4294901760
  %1494 = vmatprep.mubr.f32.mxu0 %v1493
  %v1495 = vand.u32 %v392, 4294901760
  %v1496 = vsub.f32 %v392, %v1495
  %v1497 = vand.u32 %v1496, 4294901760
  %1498 = vmatmul.mubr.f32.gmra.mrb[0].mxu0 %v1497
  %v1499 = vpop.f32.mrb[0].mxu0
  %v1500 = vadd.f32 %v1255, %v1499
  %v1501 = vpop.f32.mrb[0].mxu0
  %v1502 = vand.u32 %v456, 4294901760
  %v1503 = vsub.f32 %v456, %v1502
  %v1504 = vand.u32 %v1503, 4294901760
  %1505 = vmatprep.mubr.f32.mxu0 %v1504
  %v1506 = vand.u32 %v394, 4294901760
  %v1507 = vsub.f32 %v394, %v1506
  %v1508 = vand.u32 %v1507, 4294901760
  %1509 = vmatmul.mubr.f32.gmra.mrb[0].mxu0 %v1508
  %v1510 = vpop.f32.mrb[0].mxu0
  %v1511 = vadd.f32 %v1264, %v1510
  %v1512 = vpop.f32.mrb[0].mxu0
  %v1513 = vand.u32 %v459, 4294901760
  %v1514 = vsub.f32 %v459, %v1513
  %v1515 = vand.u32 %v1514, 4294901760
  %1516 = vmatprep.mubr.f32.mxu0 %v1515
  %v1517 = vand.u32 %v396, 4294901760
  %v1518 = vsub.f32 %v396, %v1517
  %v1519 = vand.u32 %v1518, 4294901760
  %1520 = vmatmul.mubr.f32.gmra.mrb[0].mxu0 %v1519
  %v1521 = vpop.f32.mrb[0].mxu0
  %v1522 = vadd.f32 %v1273, %v1521
  %v1523 = vpop.f32.mrb[0].mxu0
  %v1524 = vand.u32 %v462, 4294901760
  %v1525 = vsub.f32 %v462, %v1524
  %v1526 = vand.u32 %v1525, 4294901760
  %1527 = vmatprep.mubr.f32.mxu0 %v1526
  %v1528 = vand.u32 %v398, 4294901760
  %v1529 = vsub.f32 %v398, %v1528
  %v1530 = vand.u32 %v1529, 4294901760
  %1531 = vmatmul.mubr.f32.gmra.mrb[0].mxu0 %v1530
  %v1532 = vpop.f32.mrb[0].mxu0
  %v1533 = vadd.f32 %v1282, %v1532
  %v1534 = vpop.f32.mrb[0].mxu0
  %v1535 = vand.u32 %v465, 4294901760
  %v1536 = vsub.f32 %v465, %v1535
  %v1537 = vand.u32 %v1536, 4294901760
  %1538 = vmatprep.mubr.f32.mxu0 %v1537
  %v1539 = vand.u32 %v400, 4294901760
  %v1540 = vsub.f32 %v400, %v1539
  %v1541 = vand.u32 %v1540, 4294901760
  %1542 = vmatmul.mubr.f32.gmra.mrb[0].mxu0 %v1541
  %v1543 = vpop.f32.mrb[0].mxu0
  %v1544 = vadd.f32 %v1291, %v1543
  %v1545 = vpop.f32.mrb[0].mxu0
  %v1546 = vand.u32 %v468, 4294901760
  %v1547 = vsub.f32 %v468, %v1546
  %v1548 = vand.u32 %v1547, 4294901760
  %1549 = vmatprep.mubr.f32.mxu0 %v1548
  %v1550 = vand.u32 %v402, 4294901760
  %v1551 = vsub.f32 %v402, %v1550
  %v1552 = vand.u32 %v1551, 4294901760
  %1553 = vmatmul.mubr.f32.gmra.mrb[0].mxu0 %v1552
  %v1554 = vpop.f32.mrb[0].mxu0
  %v1555 = vadd.f32 %v1300, %v1554
  %v1556 = vpop.f32.mrb[0].mxu0
  %v1557 = vand.u32 %v471, 4294901760
  %v1558 = vsub.f32 %v471, %v1557
  %v1559 = vand.u32 %v1558, 4294901760
  %1560 = vmatprep.mubr.f32.mxu0 %v1559
  %v1561 = vand.u32 %v404, 4294901760
  %v1562 = vsub.f32 %v404, %v1561
  %v1563 = vand.u32 %v1562, 4294901760
  %1564 = vmatmul.mubr.f32.gmra.mrb[0].mxu0 %v1563
  %v1565 = vpop.f32.mrb[0].mxu0
  %v1566 = vadd.f32 %v1309, %v1565
  %v1567 = vpop.f32.mrb[0].mxu0
  %v1568 = vand.u32 %v474, 4294901760
  %v1569 = vsub.f32 %v474, %v1568
  %v1570 = vand.u32 %v1569, 4294901760
  %1571 = vmatprep.mubr.f32.mxu0 %v1570
  %v1572 = vand.u32 %v406, 4294901760
  %v1573 = vsub.f32 %v406, %v1572
  %v1574 = vand.u32 %v1573, 4294901760
  %1575 = vmatmul.mubr.f32.gmra.mrb[0].mxu0 %v1574
  %v1576 = vpop.f32.mrb[0].mxu0
  %v1577 = vadd.f32 %v1318, %v1576
  %v1578 = vpop.f32.mrb[0].mxu0
  %v1579 = vand.u32 %v477, 4294901760
  %v1580 = vsub.f32 %v477, %v1579
  %v1581 = vand.u32 %v1580, 4294901760
  %1582 = vmatprep.mubr.f32.mxu0 %v1581
  %v1583 = vand.u32 %v408, 4294901760
  %v1584 = vsub.f32 %v408, %v1583
  %v1585 = vand.u32 %v1584, 4294901760
  %1586 = vmatmul.mubr.f32.gmra.mrb[0].mxu0 %v1585
  %v1587 = vpop.f32.mrb[0].mxu0
  %v1588 = vadd.f32 %v1327, %v1587
  %v1589 = vpop.f32.mrb[0].mxu0
  %1590 = vdwg.mxu0
  %1591 = vmatprep.subr.mxu0 0.0
  %v1592 = vand.u32 %v410, 4294901760
  %v1593 = vsub.f32 %v410, %v1592
  %v1594 = vand.u32 %v1593, 4294901760
  %1595 = vmatpush1.msra.mxu0 %v1594
  %1596 = vmatprep.subr.mxu0 0.0
  %v1597 = vand.u32 %v411, 4294901760
  %v1598 = vsub.f32 %v411, %v1597
  %v1599 = vand.u32 %v1598, 4294901760
  %1600 = vmatpush1.msra.mxu0 %v1599
  %1601 = vmatprep.subr.mxu0 0.0
  %v1602 = vand.u32 %v412, 4294901760
  %v1603 = vsub.f32 %v412, %v1602
  %v1604 = vand.u32 %v1603, 4294901760
  %1605 = vmatpush1.msra.mxu0 %v1604
  %1606 = vmatprep.subr.mxu0 0.0
  %v1607 = vand.u32 %v413, 4294901760
  %v1608 = vsub.f32 %v413, %v1607
  %v1609 = vand.u32 %v1608, 4294901760
  %1610 = vmatpush1.msra.mxu0 %v1609
  %1611 = vmatprep.subr.mxu0 0.0
  %v1612 = vand.u32 %v414, 4294901760
  %v1613 = vsub.f32 %v414, %v1612
  %v1614 = vand.u32 %v1613, 4294901760
  %1615 = vmatpush1.msra.mxu0 %v1614
  %1616 = vmatprep.subr.mxu0 0.0
  %v1617 = vand.u32 %v415, 4294901760
  %v1618 = vsub.f32 %v415, %v1617
  %v1619 = vand.u32 %v1618, 4294901760
  %1620 = vmatpush1.msra.mxu0 %v1619
  %1621 = vmatprep.subr.mxu0 0.0
  %v1622 = vand.u32 %v416, 4294901760
  %v1623 = vsub.f32 %v416, %v1622
  %v1624 = vand.u32 %v1623, 4294901760
  %1625 = vmatpush1.msra.mxu0 %v1624
  %1626 = vmatprep.subr.mxu0 0.0
  %v1627 = vand.u32 %v417, 4294901760
  %v1628 = vsub.f32 %v417, %v1627
  %v1629 = vand.u32 %v1628, 4294901760
  %1630 = vmatpush1.msra.mxu0 %v1629
  %1631 = vmatprep.subr.mxu0 0.0
  %v1632 = vand.u32 %v418, 4294901760
  %v1633 = vsub.f32 %v418, %v1632
  %v1634 = vand.u32 %v1633, 4294901760
  %1635 = vmatpush1.msra.mxu0 %v1634
  %1636 = vmatprep.subr.mxu0 0.0
  %v1637 = vand.u32 %v419, 4294901760
  %v1638 = vsub.f32 %v419, %v1637
  %v1639 = vand.u32 %v1638, 4294901760
  %1640 = vmatpush1.msra.mxu0 %v1639
  %1641 = vmatprep.subr.mxu0 0.0
  %v1642 = vand.u32 %v420, 4294901760
  %v1643 = vsub.f32 %v420, %v1642
  %v1644 = vand.u32 %v1643, 4294901760
  %1645 = vmatpush1.msra.mxu0 %v1644
  %1646 = vmatprep.subr.mxu0 0.0
  %v1647 = vand.u32 %v421, 4294901760
  %v1648 = vsub.f32 %v421, %v1647
  %v1649 = vand.u32 %v1648, 4294901760
  %1650 = vmatpush1.msra.mxu0 %v1649
  %1651 = vmatprep.subr.mxu0 0.0
  %v1652 = vand.u32 %v422, 4294901760
  %v1653 = vsub.f32 %v422, %v1652
  %v1654 = vand.u32 %v1653, 4294901760
  %1655 = vmatpush1.msra.mxu0 %v1654
  %1656 = vmatprep.subr.mxu0 0.0
  %v1657 = vand.u32 %v423, 4294901760
  %v1658 = vsub.f32 %v423, %v1657
  %v1659 = vand.u32 %v1658, 4294901760
  %1660 = vmatpush1.msra.mxu0 %v1659
  %1661 = vmatprep.subr.mxu0 0.0
  %v1662 = vand.u32 %v424, 4294901760
  %v1663 = vsub.f32 %v424, %v1662
  %v1664 = vand.u32 %v1663, 4294901760
  %1665 = vmatpush1.msra.mxu0 %v1664
  %1666 = vmatprep.subr.mxu0 0.0
  %v1667 = vand.u32 %v425, 4294901760
  %v1668 = vsub.f32 %v425, %v1667
  %v1669 = vand.u32 %v1668, 4294901760
  %1670 = vmatpush1.msra.mxu0 %v1669
  %1671 = vmatprep.subr.mxu0 0.0
  %v1672 = vand.u32 %v426, 4294901760
  %v1673 = vsub.f32 %v426, %v1672
  %v1674 = vand.u32 %v1673, 4294901760
  %1675 = vmatpush1.msra.mxu0 %v1674
  %1676 = vmatprep.subr.mxu0 0.0
  %v1677 = vand.u32 %v427, 4294901760
  %v1678 = vsub.f32 %v427, %v1677
  %v1679 = vand.u32 %v1678, 4294901760
  %1680 = vmatpush1.msra.mxu0 %v1679
  %1681 = vmatprep.subr.mxu0 0.0
  %v1682 = vand.u32 %v428, 4294901760
  %v1683 = vsub.f32 %v428, %v1682
  %v1684 = vand.u32 %v1683, 4294901760
  %1685 = vmatpush1.msra.mxu0 %v1684
  %1686 = vmatprep.subr.mxu0 0.0
  %v1687 = vand.u32 %v429, 4294901760
  %v1688 = vsub.f32 %v429, %v1687
  %v1689 = vand.u32 %v1688, 4294901760
  %1690 = vmatpush1.msra.mxu0 %v1689
  %1691 = vmatprep.subr.mxu0 0.0
  %1692 = vmatpush1.msra.mxu0 0.0
  %1693 = vmatprep.subr.mxu0 0.0
  %1694 = vmatpush1.msra.mxu0 0.0
  %1695 = vmatprep.subr.mxu0 0.0
  %1696 = vmatpush1.msra.mxu0 0.0
  %1697 = vmatprep.subr.mxu0 0.0
  %1698 = vmatpush1.msra.mxu0 0.0
  %1699 = vmatprep.subr.mxu0 0.0
  %1700 = vmatpush1.msra.mxu0 0.0
  %1701 = vmatprep.subr.mxu0 0.0
  %1702 = vmatpush1.msra.mxu0 0.0
  %1703 = vmatprep.subr.mxu0 0.0
  %1704 = vmatpush1.msra.mxu0 0.0
  %1705 = vmatprep.subr.mxu0 0.0
  %1706 = vmatpush1.msra.mxu0 0.0
  %1707 = vmatprep.subr.mxu0 0.0
  %1708 = vmatpush1.msra.mxu0 0.0
  %1709 = vmatprep.subr.mxu0 0.0
  %1710 = vmatpush1.msra.mxu0 0.0
  %1711 = vmatprep.subr.mxu0 0.0
  %1712 = vmatpush1.msra.mxu0 0.0
  %1713 = vmatprep.subr.mxu0 0.0
  %1714 = vmatpush1.msra.mxu0 0.0
  %v1715 = vand.u32 %v432, 4294901760
  %1716 = vmatprep.mubr.f32.mxu0 %v1715
  %v1717 = vand.u32 %v378, 4294901760
  %1718 = vmatmul.mubr.f32.gmra.mrb[0].mxu0 %v1717
  %v1719 = vpop.f32.mrb[0].mxu0
  %v1720 = vadd.f32 %v1423, %v1719
  %v1721 = vpop.f32.mrb[0].mxu0
  %v1722 = vand.u32 %v435, 4294901760
  %1723 = vmatprep.mubr.f32.mxu0 %v1722
  %v1724 = vand.u32 %v380, 4294901760
  %1725 = vmatmul.mubr.f32.gmra.mrb[0].mxu0 %v1724
  %v1726 = vpop.f32.mrb[0].mxu0
  %v1727 = vadd.f32 %v1434, %v1726
  %v1728 = vpop.f32.mrb[0].mxu0
  %v1729 = vand.u32 %v438, 4294901760
  %1730 = vmatprep.mubr.f32.mxu0 %v1729
  %v1731 = vand.u32 %v382, 4294901760
  %1732 = vmatmul.mubr.f32.gmra.mrb[0].mxu0 %v1731
  %v1733 = vpop.f32.mrb[0].mxu0
  %v1734 = vadd.f32 %v1445, %v1733
  %v1735 = vpop.f32.mrb[0].mxu0
  %v1736 = vand.u32 %v441, 4294901760
  %1737 = vmatprep.mubr.f32.mxu0 %v1736
  %v1738 = vand.u32 %v384, 4294901760
  %1739 = vmatmul.mubr.f32.gmra.mrb[0].mxu0 %v1738
  %v1740 = vpop.f32.mrb[0].mxu0
  %v1741 = vadd.f32 %v1456, %v1740
  %v1742 = vpop.f32.mrb[0].mxu0
  %v1743 = vand.u32 %v444, 4294901760
  %1744 = vmatprep.mubr.f32.mxu0 %v1743
  %v1745 = vand.u32 %v386, 4294901760
  %1746 = vmatmul.mubr.f32.gmra.mrb[0].mxu0 %v1745
  %v1747 = vpop.f32.mrb[0].mxu0
  %v1748 = vadd.f32 %v1467, %v1747
  %v1749 = vpop.f32.mrb[0].mxu0
  %v1750 = vand.u32 %v447, 4294901760
  %1751 = vmatprep.mubr.f32.mxu0 %v1750
  %v1752 = vand.u32 %v388, 4294901760
  %1753 = vmatmul.mubr.f32.gmra.mrb[0].mxu0 %v1752
  %v1754 = vpop.f32.mrb[0].mxu0
  %v1755 = vadd.f32 %v1478, %v1754
  %v1756 = vpop.f32.mrb[0].mxu0
  %v1757 = vand.u32 %v450, 4294901760
  %1758 = vmatprep.mubr.f32.mxu0 %v1757
  %v1759 = vand.u32 %v390, 4294901760
  %1760 = vmatmul.mubr.f32.gmra.mrb[0].mxu0 %v1759
  %v1761 = vpop.f32.mrb[0].mxu0
  %v1762 = vadd.f32 %v1489, %v1761
  %v1763 = vpop.f32.mrb[0].mxu0
  %v1764 = vand.u32 %v453, 4294901760
  %1765 = vmatprep.mubr.f32.mxu0 %v1764
  %v1766 = vand.u32 %v392, 4294901760
  %1767 = vmatmul.mubr.f32.gmra.mrb[0].mxu0 %v1766
  %v1768 = vpop.f32.mrb[0].mxu0
  %v1769 = vadd.f32 %v1500, %v1768
  %v1770 = vpop.f32.mrb[0].mxu0
  %v1771 = vand.u32 %v456, 4294901760
  %1772 = vmatprep.mubr.f32.mxu0 %v1771
  %v1773 = vand.u32 %v394, 4294901760
  %1774 = vmatmul.mubr.f32.gmra.mrb[0].mxu0 %v1773
  %v1775 = vpop.f32.mrb[0].mxu0
  %v1776 = vadd.f32 %v1511, %v1775
  %v1777 = vpop.f32.mrb[0].mxu0
  %v1778 = vand.u32 %v459, 4294901760
  %1779 = vmatprep.mubr.f32.mxu0 %v1778
  %v1780 = vand.u32 %v396, 4294901760
  %1781 = vmatmul.mubr.f32.gmra.mrb[0].mxu0 %v1780
  %v1782 = vpop.f32.mrb[0].mxu0
  %v1783 = vadd.f32 %v1522, %v1782
  %v1784 = vpop.f32.mrb[0].mxu0
  %v1785 = vand.u32 %v462, 4294901760
  %1786 = vmatprep.mubr.f32.mxu0 %v1785
  %v1787 = vand.u32 %v398, 4294901760
  %1788 = vmatmul.mubr.f32.gmra.mrb[0].mxu0 %v1787
  %v1789 = vpop.f32.mrb[0].mxu0
  %v1790 = vadd.f32 %v1533, %v1789
  %v1791 = vpop.f32.mrb[0].mxu0
  %v1792 = vand.u32 %v465, 4294901760
  %1793 = vmatprep.mubr.f32.mxu0 %v1792
  %v1794 = vand.u32 %v400, 4294901760
  %1795 = vmatmul.mubr.f32.gmra.mrb[0].mxu0 %v1794
  %v1796 = vpop.f32.mrb[0].mxu0
  %v1797 = vadd.f32 %v1544, %v1796
  %v1798 = vpop.f32.mrb[0].mxu0
  %v1799 = vand.u32 %v468, 4294901760
  %1800 = vmatprep.mubr.f32.mxu0 %v1799
  %v1801 = vand.u32 %v402, 4294901760
  %1802 = vmatmul.mubr.f32.gmra.mrb[0].mxu0 %v1801
  %v1803 = vpop.f32.mrb[0].mxu0
  %v1804 = vadd.f32 %v1555, %v1803
  %v1805 = vpop.f32.mrb[0].mxu0
  %v1806 = vand.u32 %v471, 4294901760
  %1807 = vmatprep.mubr.f32.mxu0 %v1806
  %v1808 = vand.u32 %v404, 4294901760
  %1809 = vmatmul.mubr.f32.gmra.mrb[0].mxu0 %v1808
  %v1810 = vpop.f32.mrb[0].mxu0
  %v1811 = vadd.f32 %v1566, %v1810
  %v1812 = vpop.f32.mrb[0].mxu0
  %v1813 = vand.u32 %v474, 4294901760
  %1814 = vmatprep.mubr.f32.mxu0 %v1813
  %v1815 = vand.u32 %v406, 4294901760
  %1816 = vmatmul.mubr.f32.gmra.mrb[0].mxu0 %v1815
  %v1817 = vpop.f32.mrb[0].mxu0
  %v1818 = vadd.f32 %v1577, %v1817
  %v1819 = vpop.f32.mrb[0].mxu0
  %v1820 = vand.u32 %v477, 4294901760
  %1821 = vmatprep.mubr.f32.mxu0 %v1820
  %v1822 = vand.u32 %v408, 4294901760
  %1823 = vmatmul.mubr.f32.gmra.mrb[0].mxu0 %v1822
  %v1824 = vpop.f32.mrb[0].mxu0
  %v1825 = vadd.f32 %v1588, %v1824
  %v1826 = vpop.f32.mrb[0].mxu0
  %1827 = vdwg.mxu0
  %1828 = vmatprep.subr.mxu0 0.0
  %v1829 = vand.u32 %v410, 4294901760
  %1830 = vmatpush1.msra.mxu0 %v1829
  %1831 = vmatprep.subr.mxu0 0.0
  %v1832 = vand.u32 %v411, 4294901760
  %1833 = vmatpush1.msra.mxu0 %v1832
  %1834 = vmatprep.subr.mxu0 0.0
  %v1835 = vand.u32 %v412, 4294901760
  %1836 = vmatpush1.msra.mxu0 %v1835
  %1837 = vmatprep.subr.mxu0 0.0
  %v1838 = vand.u32 %v413, 4294901760
  %1839 = vmatpush1.msra.mxu0 %v1838
  %1840 = vmatprep.subr.mxu0 0.0
  %v1841 = vand.u32 %v414, 4294901760
  %1842 = vmatpush1.msra.mxu0 %v1841
  %1843 = vmatprep.subr.mxu0 0.0
  %v1844 = vand.u32 %v415, 4294901760
  %1845 = vmatpush1.msra.mxu0 %v1844
  %1846 = vmatprep.subr.mxu0 0.0
  %v1847 = vand.u32 %v416, 4294901760
  %1848 = vmatpush1.msra.mxu0 %v1847
  %1849 = vmatprep.subr.mxu0 0.0
  %v1850 = vand.u32 %v417, 4294901760
  %1851 = vmatpush1.msra.mxu0 %v1850
  %1852 = vmatprep.subr.mxu0 0.0
  %v1853 = vand.u32 %v418, 4294901760
  %1854 = vmatpush1.msra.mxu0 %v1853
  %1855 = vmatprep.subr.mxu0 0.0
  %v1856 = vand.u32 %v419, 4294901760
  %1857 = vmatpush1.msra.mxu0 %v1856
  %1858 = vmatprep.subr.mxu0 0.0
  %v1859 = vand.u32 %v420, 4294901760
  %1860 = vmatpush1.msra.mxu0 %v1859
  %1861 = vmatprep.subr.mxu0 0.0
  %v1862 = vand.u32 %v421, 4294901760
  %1863 = vmatpush1.msra.mxu0 %v1862
  %1864 = vmatprep.subr.mxu0 0.0
  %v1865 = vand.u32 %v422, 4294901760
  %1866 = vmatpush1.msra.mxu0 %v1865
  %1867 = vmatprep.subr.mxu0 0.0
  %v1868 = vand.u32 %v423, 4294901760
  %1869 = vmatpush1.msra.mxu0 %v1868
  %1870 = vmatprep.subr.mxu0 0.0
  %v1871 = vand.u32 %v424, 4294901760
  %1872 = vmatpush1.msra.mxu0 %v1871
  %1873 = vmatprep.subr.mxu0 0.0
  %v1874 = vand.u32 %v425, 4294901760
  %1875 = vmatpush1.msra.mxu0 %v1874
  %1876 = vmatprep.subr.mxu0 0.0
  %v1877 = vand.u32 %v426, 4294901760
  %1878 = vmatpush1.msra.mxu0 %v1877
  %1879 = vmatprep.subr.mxu0 0.0
  %v1880 = vand.u32 %v427, 4294901760
  %1881 = vmatpush1.msra.mxu0 %v1880
  %1882 = vmatprep.subr.mxu0 0.0
  %v1883 = vand.u32 %v428, 4294901760
  %1884 = vmatpush1.msra.mxu0 %v1883
  %1885 = vmatprep.subr.mxu0 0.0
  %v1886 = vand.u32 %v429, 4294901760
  %1887 = vmatpush1.msra.mxu0 %v1886
  %1888 = vmatprep.subr.mxu0 0.0
  %1889 = vmatpush1.msra.mxu0 0.0
  %1890 = vmatprep.subr.mxu0 0.0
  %1891 = vmatpush1.msra.mxu0 0.0
  %1892 = vmatprep.subr.mxu0 0.0
  %1893 = vmatpush1.msra.mxu0 0.0
  %1894 = vmatprep.subr.mxu0 0.0
  %1895 = vmatpush1.msra.mxu0 0.0
  %1896 = vmatprep.subr.mxu0 0.0
  %1897 = vmatpush1.msra.mxu0 0.0
  %1898 = vmatprep.subr.mxu0 0.0
  %1899 = vmatpush1.msra.mxu0 0.0
  %1900 = vmatprep.subr.mxu0 0.0
  %1901 = vmatpush1.msra.mxu0 0.0
  %1902 = vmatprep.subr.mxu0 0.0
  %1903 = vmatpush1.msra.mxu0 0.0
  %1904 = vmatprep.subr.mxu0 0.0
  %1905 = vmatpush1.msra.mxu0 0.0
  %1906 = vmatprep.subr.mxu0 0.0
  %1907 = vmatpush1.msra.mxu0 0.0
  %1908 = vmatprep.subr.mxu0 0.0
  %1909 = vmatpush1.msra.mxu0 0.0
  %1910 = vmatprep.subr.mxu0 0.0
  %1911 = vmatpush1.msra.mxu0 0.0
  %v1912 = vand.u32 %v432, 4294901760
  %1913 = vmatprep.mubr.f32.mxu0 %v1912
  %v1914 = vand.u32 %v378, 4294901760
  %1915 = vmatmul.mubr.f32.gmra.mrb[0].mxu0 %v1914
  %v1916 = vpop.f32.mrb[0].mxu0
  %v1917 = vadd.f32 %v1720, %v1916
  %v1918 = vpop.f32.mrb[0].mxu0
  %v1919 = vand.u32 %v435, 4294901760
  %1920 = vmatprep.mubr.f32.mxu0 %v1919
  %v1921 = vand.u32 %v380, 4294901760
  %1922 = vmatmul.mubr.f32.gmra.mrb[0].mxu0 %v1921
  %v1923 = vpop.f32.mrb[0].mxu0
  %v1924 = vadd.f32 %v1727, %v1923
  %v1925 = vpop.f32.mrb[0].mxu0
  %v1926 = vand.u32 %v438, 4294901760
  %1927 = vmatprep.mubr.f32.mxu0 %v1926
  %v1928 = vand.u32 %v382, 4294901760
  %1929 = vmatmul.mubr.f32.gmra.mrb[0].mxu0 %v1928
  %v1930 = vpop.f32.mrb[0].mxu0
  %v1931 = vadd.f32 %v1734, %v1930
  %v1932 = vpop.f32.mrb[0].mxu0
  %v1933 = vand.u32 %v441, 4294901760
  %1934 = vmatprep.mubr.f32.mxu0 %v1933
  %v1935 = vand.u32 %v384, 4294901760
  %1936 = vmatmul.mubr.f32.gmra.mrb[0].mxu0 %v1935
  %v1937 = vpop.f32.mrb[0].mxu0
  %v1938 = vadd.f32 %v1741, %v1937
  %v1939 = vpop.f32.mrb[0].mxu0
  %v1940 = vand.u32 %v444, 4294901760
  %1941 = vmatprep.mubr.f32.mxu0 %v1940
  %v1942 = vand.u32 %v386, 4294901760
  %1943 = vmatmul.mubr.f32.gmra.mrb[0].mxu0 %v1942
  %v1944 = vpop.f32.mrb[0].mxu0
  %v1945 = vadd.f32 %v1748, %v1944
  %v1946 = vpop.f32.mrb[0].mxu0
  %v1947 = vand.u32 %v447, 4294901760
  %1948 = vmatprep.mubr.f32.mxu0 %v1947
  %v1949 = vand.u32 %v388, 4294901760
  %1950 = vmatmul.mubr.f32.gmra.mrb[0].mxu0 %v1949
  %v1951 = vpop.f32.mrb[0].mxu0
  %v1952 = vadd.f32 %v1755, %v1951
  %v1953 = vpop.f32.mrb[0].mxu0
  %v1954 = vand.u32 %v450, 4294901760
  %1955 = vmatprep.mubr.f32.mxu0 %v1954
  %v1956 = vand.u32 %v390, 4294901760
  %1957 = vmatmul.mubr.f32.gmra.mrb[0].mxu0 %v1956
  %v1958 = vpop.f32.mrb[0].mxu0
  %v1959 = vadd.f32 %v1762, %v1958
  %v1960 = vpop.f32.mrb[0].mxu0
  %v1961 = vand.u32 %v453, 4294901760
  %1962 = vmatprep.mubr.f32.mxu0 %v1961
  %v1963 = vand.u32 %v392, 4294901760
  %1964 = vmatmul.mubr.f32.gmra.mrb[0].mxu0 %v1963
  %v1965 = vpop.f32.mrb[0].mxu0
  %v1966 = vadd.f32 %v1769, %v1965
  %v1967 = vpop.f32.mrb[0].mxu0
  %v1968 = vand.u32 %v456, 4294901760
  %1969 = vmatprep.mubr.f32.mxu0 %v1968
  %v1970 = vand.u32 %v394, 4294901760
  %1971 = vmatmul.mubr.f32.gmra.mrb[0].mxu0 %v1970
  %v1972 = vpop.f32.mrb[0].mxu0
  %v1973 = vadd.f32 %v1776, %v1972
  %v1974 = vpop.f32.mrb[0].mxu0
  %v1975 = vand.u32 %v459, 4294901760
  %1976 = vmatprep.mubr.f32.mxu0 %v1975
  %v1977 = vand.u32 %v396, 4294901760
  %1978 = vmatmul.mubr.f32.gmra.mrb[0].mxu0 %v1977
  %v1979 = vpop.f32.mrb[0].mxu0
  %v1980 = vadd.f32 %v1783, %v1979
  %v1981 = vpop.f32.mrb[0].mxu0
  %v1982 = vand.u32 %v462, 4294901760
  %1983 = vmatprep.mubr.f32.mxu0 %v1982
  %v1984 = vand.u32 %v398, 4294901760
  %1985 = vmatmul.mubr.f32.gmra.mrb[0].mxu0 %v1984
  %v1986 = vpop.f32.mrb[0].mxu0
  %v1987 = vadd.f32 %v1790, %v1986
  %v1988 = vpop.f32.mrb[0].mxu0
  %v1989 = vand.u32 %v465, 4294901760
  %1990 = vmatprep.mubr.f32.mxu0 %v1989
  %v1991 = vand.u32 %v400, 4294901760
  %1992 = vmatmul.mubr.f32.gmra.mrb[0].mxu0 %v1991
  %v1993 = vpop.f32.mrb[0].mxu0
  %v1994 = vadd.f32 %v1797, %v1993
  %v1995 = vpop.f32.mrb[0].mxu0
  %v1996 = vand.u32 %v468, 4294901760
  %1997 = vmatprep.mubr.f32.mxu0 %v1996
  %v1998 = vand.u32 %v402, 4294901760
  %1999 = vmatmul.mubr.f32.gmra.mrb[0].mxu0 %v1998
  %v2000 = vpop.f32.mrb[0].mxu0
  %v2001 = vadd.f32 %v1804, %v2000
  %v2002 = vpop.f32.mrb[0].mxu0
  %v2003 = vand.u32 %v471, 4294901760
  %2004 = vmatprep.mubr.f32.mxu0 %v2003
  %v2005 = vand.u32 %v404, 4294901760
  %2006 = vmatmul.mubr.f32.gmra.mrb[0].mxu0 %v2005
  %v2007 = vpop.f32.mrb[0].mxu0
  %v2008 = vadd.f32 %v1811, %v2007
  %v2009 = vpop.f32.mrb[0].mxu0
  %v2010 = vand.u32 %v474, 4294901760
  %2011 = vmatprep.mubr.f32.mxu0 %v2010
  %v2012 = vand.u32 %v406, 4294901760
  %2013 = vmatmul.mubr.f32.gmra.mrb[0].mxu0 %v2012
  %v2014 = vpop.f32.mrb[0].mxu0
  %v2015 = vadd.f32 %v1818, %v2014
  %v2016 = vpop.f32.mrb[0].mxu0
  %v2017 = vand.u32 %v477, 4294901760
  %2018 = vmatprep.mubr.f32.mxu0 %v2017
  %v2019 = vand.u32 %v408, 4294901760
  %2020 = vmatmul.mubr.f32.gmra.mrb[0].mxu0 %v2019
  %v2021 = vpop.f32.mrb[0].mxu0
  %v2022 = vadd.f32 %v1825, %v2021
  %v2023 = vpop.f32.mrb[0].mxu0
  %2024 = vdwg.mxu0
  %v2025 = vld [vmem:[%s2] sm:$0xff]
  %v2026 = vld [vmem:[%s2 + $0x8] sm:$0xff]
  %v2027 = vld [vmem:[%s2 + $0x10] sm:$0xff]
  %v2028 = vld [vmem:[%s2 + $0x18] sm:$0xff]
  %v2029 = vld [vmem:[%s2 + $0x20] sm:$0xff]
  %v2030 = vld [vmem:[%s2 + $0x28] sm:$0xff]
  %v2031 = vld [vmem:[%s2 + $0x30] sm:$0xff]
  %v2032 = vld [vmem:[%s2 + $0x38] sm:$0xff]
  %v2033 = vld [vmem:[%s2 + $0x40] sm:$0xff]
  %v2034 = vld [vmem:[%s2 + $0x48] sm:$0xff]
  %v2035 = vld [vmem:[%s2 + $0x50] sm:$0xff]
  %v2036 = vld [vmem:[%s2 + $0x58] sm:$0xff]
  %v2037 = vld [vmem:[%s2 + $0x60] sm:$0xff]
  %v2038 = vld [vmem:[%s2 + $0x68] sm:$0xff]
  %v2039 = vld [vmem:[%s2 + $0x70] sm:$0xff]
  %v2040 = vld [vmem:[%s2 + $0x78] sm:$0xff]
  %2041 = vmatprep.subr.mxu0 0.0
  %v2042 = vand.u32 %v2025, 4294901760
  %2043 = vmatpush1.msra.mxu0 %v2042
  %2044 = vmatprep.subr.mxu0 0.0
  %v2045 = vand.u32 %v2026, 4294901760
  %2046 = vmatpush1.msra.mxu0 %v2045
  %2047 = vmatprep.subr.mxu0 0.0
  %v2048 = vand.u32 %v2027, 4294901760
  %2049 = vmatpush1.msra.mxu0 %v2048
  %2050 = vmatprep.subr.mxu0 0.0
  %v2051 = vand.u32 %v2028, 4294901760
  %2052 = vmatpush1.msra.mxu0 %v2051
  %2053 = vmatprep.subr.mxu0 0.0
  %v2054 = vand.u32 %v2029, 4294901760
  %2055 = vmatpush1.msra.mxu0 %v2054
  %2056 = vmatprep.subr.mxu0 0.0
  %v2057 = vand.u32 %v2030, 4294901760
  %2058 = vmatpush1.msra.mxu0 %v2057
  %2059 = vmatprep.subr.mxu0 0.0
  %v2060 = vand.u32 %v2031, 4294901760
  %2061 = vmatpush1.msra.mxu0 %v2060
  %2062 = vmatprep.subr.mxu0 0.0
  %v2063 = vand.u32 %v2032, 4294901760
  %2064 = vmatpush1.msra.mxu0 %v2063
  %2065 = vmatprep.subr.mxu0 0.0
  %v2066 = vand.u32 %v2033, 4294901760
  %2067 = vmatpush1.msra.mxu0 %v2066
  %2068 = vmatprep.subr.mxu0 0.0
  %v2069 = vand.u32 %v2034, 4294901760
  %2070 = vmatpush1.msra.mxu0 %v2069
  %2071 = vmatprep.subr.mxu0 0.0
  %v2072 = vand.u32 %v2035, 4294901760
  %2073 = vmatpush1.msra.mxu0 %v2072
  %2074 = vmatprep.subr.mxu0 0.0
  %v2075 = vand.u32 %v2036, 4294901760
  %2076 = vmatpush1.msra.mxu0 %v2075
  %2077 = vmatprep.subr.mxu0 0.0
  %v2078 = vand.u32 %v2037, 4294901760
  %2079 = vmatpush1.msra.mxu0 %v2078
  %2080 = vmatprep.subr.mxu0 0.0
  %v2081 = vand.u32 %v2038, 4294901760
  %2082 = vmatpush1.msra.mxu0 %v2081
  %2083 = vmatprep.subr.mxu0 0.0
  %v2084 = vand.u32 %v2039, 4294901760
  %2085 = vmatpush1.msra.mxu0 %v2084
  %2086 = vmatprep.subr.mxu0 0.0
  %v2087 = vand.u32 %v2040, 4294901760
  %2088 = vmatpush1.msra.mxu0 %v2087
  %2089 = vmatprep.subr.mxu0 0.0
  %2090 = vmatpush1.msra.mxu0 0.0
  %2091 = vmatprep.subr.mxu0 0.0
  %2092 = vmatpush1.msra.mxu0 0.0
  %2093 = vmatprep.subr.mxu0 0.0
  %2094 = vmatpush1.msra.mxu0 0.0
  %2095 = vmatprep.subr.mxu0 0.0
  %2096 = vmatpush1.msra.mxu0 0.0
  %2097 = vmatprep.subr.mxu0 0.0
  %2098 = vmatpush1.msra.mxu0 0.0
  %2099 = vmatprep.subr.mxu0 0.0
  %2100 = vmatpush1.msra.mxu0 0.0
  %2101 = vmatprep.subr.mxu0 0.0
  %2102 = vmatpush1.msra.mxu0 0.0
  %2103 = vmatprep.subr.mxu0 0.0
  %2104 = vmatpush1.msra.mxu0 0.0
  %2105 = vmatprep.subr.mxu0 0.0
  %2106 = vmatpush1.msra.mxu0 0.0
  %2107 = vmatprep.subr.mxu0 0.0
  %2108 = vmatpush1.msra.mxu0 0.0
  %2109 = vmatprep.subr.mxu0 0.0
  %2110 = vmatpush1.msra.mxu0 0.0
  %2111 = vmatprep.subr.mxu0 0.0
  %2112 = vmatpush1.msra.mxu0 0.0
  %2113 = vmatprep.subr.mxu0 0.0
  %2114 = vmatpush1.msra.mxu0 0.0
  %2115 = vmatprep.subr.mxu0 0.0
  %2116 = vmatpush1.msra.mxu0 0.0
  %2117 = vmatprep.subr.mxu0 0.0
  %2118 = vmatpush1.msra.mxu0 0.0
  %2119 = vmatprep.subr.mxu0 0.0
  %2120 = vmatpush1.msra.mxu0 0.0
  %2121 = vmatprep.mubr.f32.mxu0 0.0
  %v2122 = vand.u32 %v1917, 4294901760
  %v2123 = vsub.f32 %v1917, %v2122
  %v2124 = vand.u32 %v2123, 4294901760
  %v2125 = vsub.f32 %v2123, %v2124
  %v2126 = vand.u32 %v2125, 4294901760
  %2127 = vmatmul.mubr.f32.gmra.mrb[0].mxu0 %v2126
  %v2128 = vpop.f32.mrb[0].mxu0
  %v2129 = vadd.f32 0.0, %v2128
  %v2130 = vpop.f32.mrb[0].mxu0
  %2131 = vmatprep.mubr.f32.mxu0 0.0
  %v2132 = vand.u32 %v1924, 4294901760
  %v2133 = vsub.f32 %v1924, %v2132
  %v2134 = vand.u32 %v2133, 4294901760
  %v2135 = vsub.f32 %v2133, %v2134
  %v2136 = vand.u32 %v2135, 4294901760
  %2137 = vmatmul.mubr.f32.gmra.mrb[0].mxu0 %v2136
  %v2138 = vpop.f32.mrb[0].mxu0
  %v2139 = vadd.f32 0.0, %v2138
  %v2140 = vpop.f32.mrb[0].mxu0
  %2141 = vmatprep.mubr.f32.mxu0 0.0
  %v2142 = vand.u32 %v1931, 4294901760
  %v2143 = vsub.f32 %v1931, %v2142
  %v2144 = vand.u32 %v2143, 4294901760
  %v2145 = vsub.f32 %v2143, %v2144
  %v2146 = vand.u32 %v2145, 4294901760
  %2147 = vmatmul.mubr.f32.gmra.mrb[0].mxu0 %v2146
  %v2148 = vpop.f32.mrb[0].mxu0
  %v2149 = vadd.f32 0.0, %v2148
  %v2150 = vpop.f32.mrb[0].mxu0
  %2151 = vmatprep.mubr.f32.mxu0 0.0
  %v2152 = vand.u32 %v1938, 4294901760
  %v2153 = vsub.f32 %v1938, %v2152
  %v2154 = vand.u32 %v2153, 4294901760
  %v2155 = vsub.f32 %v2153, %v2154
  %v2156 = vand.u32 %v2155, 4294901760
  %2157 = vmatmul.mubr.f32.gmra.mrb[0].mxu0 %v2156
  %v2158 = vpop.f32.mrb[0].mxu0
  %v2159 = vadd.f32 0.0, %v2158
  %v2160 = vpop.f32.mrb[0].mxu0
  %2161 = vmatprep.mubr.f32.mxu0 0.0
  %v2162 = vand.u32 %v1945, 4294901760
  %v2163 = vsub.f32 %v1945, %v2162
  %v2164 = vand.u32 %v2163, 4294901760
  %v2165 = vsub.f32 %v2163, %v2164
  %v2166 = vand.u32 %v2165, 4294901760
  %2167 = vmatmul.mubr.f32.gmra.mrb[0].mxu0 %v2166
  %v2168 = vpop.f32.mrb[0].mxu0
  %v2169 = vadd.f32 0.0, %v2168
  %v2170 = vpop.f32.mrb[0].mxu0
  %2171 = vmatprep.mubr.f32.mxu0 0.0
  %v2172 = vand.u32 %v1952, 4294901760
  %v2173 = vsub.f32 %v1952, %v2172
  %v2174 = vand.u32 %v2173, 4294901760
  %v2175 = vsub.f32 %v2173, %v2174
  %v2176 = vand.u32 %v2175, 4294901760
  %2177 = vmatmul.mubr.f32.gmra.mrb[0].mxu0 %v2176
  %v2178 = vpop.f32.mrb[0].mxu0
  %v2179 = vadd.f32 0.0, %v2178
  %v2180 = vpop.f32.mrb[0].mxu0
  %2181 = vmatprep.mubr.f32.mxu0 0.0
  %v2182 = vand.u32 %v1959, 4294901760
  %v2183 = vsub.f32 %v1959, %v2182
  %v2184 = vand.u32 %v2183, 4294901760
  %v2185 = vsub.f32 %v2183, %v2184
  %v2186 = vand.u32 %v2185, 4294901760
  %2187 = vmatmul.mubr.f32.gmra.mrb[0].mxu0 %v2186
  %v2188 = vpop.f32.mrb[0].mxu0
  %v2189 = vadd.f32 0.0, %v2188
  %v2190 = vpop.f32.mrb[0].mxu0
  %2191 = vmatprep.mubr.f32.mxu0 0.0
  %v2192 = vand.u32 %v1966, 4294901760
  %v2193 = vsub.f32 %v1966, %v2192
  %v2194 = vand.u32 %v2193, 4294901760
  %v2195 = vsub.f32 %v2193, %v2194
  %v2196 = vand.u32 %v2195, 4294901760
  %2197 = vmatmul.mubr.f32.gmra.mrb[0].mxu0 %v2196
  %v2198 = vpop.f32.mrb[0].mxu0
  %v2199 = vadd.f32 0.0, %v2198
  %v2200 = vpop.f32.mrb[0].mxu0
  %2201 = vmatprep.mubr.f32.mxu0 0.0
  %v2202 = vand.u32 %v1973, 4294901760
  %v2203 = vsub.f32 %v1973, %v2202
  %v2204 = vand.u32 %v2203, 4294901760
  %v2205 = vsub.f32 %v2203, %v2204
  %v2206 = vand.u32 %v2205, 4294901760
  %2207 = vmatmul.mubr.f32.gmra.mrb[0].mxu0 %v2206
  %v2208 = vpop.f32.mrb[0].mxu0
  %v2209 = vadd.f32 0.0, %v2208
  %v2210 = vpop.f32.mrb[0].mxu0
  %2211 = vmatprep.mubr.f32.mxu0 0.0
  %v2212 = vand.u32 %v1980, 4294901760
  %v2213 = vsub.f32 %v1980, %v2212
  %v2214 = vand.u32 %v2213, 4294901760
  %v2215 = vsub.f32 %v2213, %v2214
  %v2216 = vand.u32 %v2215, 4294901760
  %2217 = vmatmul.mubr.f32.gmra.mrb[0].mxu0 %v2216
  %v2218 = vpop.f32.mrb[0].mxu0
  %v2219 = vadd.f32 0.0, %v2218
  %v2220 = vpop.f32.mrb[0].mxu0
  %2221 = vmatprep.mubr.f32.mxu0 0.0
  %v2222 = vand.u32 %v1987, 4294901760
  %v2223 = vsub.f32 %v1987, %v2222
  %v2224 = vand.u32 %v2223, 4294901760
  %v2225 = vsub.f32 %v2223, %v2224
  %v2226 = vand.u32 %v2225, 4294901760
  %2227 = vmatmul.mubr.f32.gmra.mrb[0].mxu0 %v2226
  %v2228 = vpop.f32.mrb[0].mxu0
  %v2229 = vadd.f32 0.0, %v2228
  %v2230 = vpop.f32.mrb[0].mxu0
  %2231 = vmatprep.mubr.f32.mxu0 0.0
  %v2232 = vand.u32 %v1994, 4294901760
  %v2233 = vsub.f32 %v1994, %v2232
  %v2234 = vand.u32 %v2233, 4294901760
  %v2235 = vsub.f32 %v2233, %v2234
  %v2236 = vand.u32 %v2235, 4294901760
  %2237 = vmatmul.mubr.f32.gmra.mrb[0].mxu0 %v2236
  %v2238 = vpop.f32.mrb[0].mxu0
  %v2239 = vadd.f32 0.0, %v2238
  %v2240 = vpop.f32.mrb[0].mxu0
  %2241 = vmatprep.mubr.f32.mxu0 0.0
  %v2242 = vand.u32 %v2001, 4294901760
  %v2243 = vsub.f32 %v2001, %v2242
  %v2244 = vand.u32 %v2243, 4294901760
  %v2245 = vsub.f32 %v2243, %v2244
  %v2246 = vand.u32 %v2245, 4294901760
  %2247 = vmatmul.mubr.f32.gmra.mrb[0].mxu0 %v2246
  %v2248 = vpop.f32.mrb[0].mxu0
  %v2249 = vadd.f32 0.0, %v2248
  %v2250 = vpop.f32.mrb[0].mxu0
  %2251 = vmatprep.mubr.f32.mxu0 0.0
  %v2252 = vand.u32 %v2008, 4294901760
  %v2253 = vsub.f32 %v2008, %v2252
  %v2254 = vand.u32 %v2253, 4294901760
  %v2255 = vsub.f32 %v2253, %v2254
  %v2256 = vand.u32 %v2255, 4294901760
  %2257 = vmatmul.mubr.f32.gmra.mrb[0].mxu0 %v2256
  %v2258 = vpop.f32.mrb[0].mxu0
  %v2259 = vadd.f32 0.0, %v2258
  %v2260 = vpop.f32.mrb[0].mxu0
  %2261 = vmatprep.mubr.f32.mxu0 0.0
  %v2262 = vand.u32 %v2015, 4294901760
  %v2263 = vsub.f32 %v2015, %v2262
  %v2264 = vand.u32 %v2263, 4294901760
  %v2265 = vsub.f32 %v2263, %v2264
  %v2266 = vand.u32 %v2265, 4294901760
  %2267 = vmatmul.mubr.f32.gmra.mrb[0].mxu0 %v2266
  %v2268 = vpop.f32.mrb[0].mxu0
  %v2269 = vadd.f32 0.0, %v2268
  %v2270 = vpop.f32.mrb[0].mxu0
  %2271 = vmatprep.mubr.f32.mxu0 0.0
  %v2272 = vand.u32 %v2022, 4294901760
  %v2273 = vsub.f32 %v2022, %v2272
  %v2274 = vand.u32 %v2273, 4294901760
  %v2275 = vsub.f32 %v2273, %v2274
  %v2276 = vand.u32 %v2275, 4294901760
  %2277 = vmatmul.mubr.f32.gmra.mrb[0].mxu0 %v2276
  %v2278 = vpop.f32.mrb[0].mxu0
  %v2279 = vadd.f32 0.0, %v2278
  %v2280 = vpop.f32.mrb[0].mxu0
  %2281 = vdwg.mxu0
  %2282 = vmatprep.subr.mxu0 0.0
  %v2283 = vand.u32 %v2025, 4294901760
  %v2284 = vsub.f32 %v2025, %v2283
  %v2285 = vand.u32 %v2284, 4294901760
  %v2286 = vsub.f32 %v2284, %v2285
  %v2287 = vand.u32 %v2286, 4294901760
  %2288 = vmatpush1.msra.mxu0 %v2287
  %2289 = vmatprep.subr.mxu0 0.0
  %v2290 = vand.u32 %v2026, 4294901760
  %v2291 = vsub.f32 %v2026, %v2290
  %v2292 = vand.u32 %v2291, 4294901760
  %v2293 = vsub.f32 %v2291, %v2292
  %v2294 = vand.u32 %v2293, 4294901760
  %2295 = vmatpush1.msra.mxu0 %v2294
  %2296 = vmatprep.subr.mxu0 0.0
  %v2297 = vand.u32 %v2027, 4294901760
  %v2298 = vsub.f32 %v2027, %v2297
  %v2299 = vand.u32 %v2298, 4294901760
  %v2300 = vsub.f32 %v2298, %v2299
  %v2301 = vand.u32 %v2300, 4294901760
  %2302 = vmatpush1.msra.mxu0 %v2301
  %2303 = vmatprep.subr.mxu0 0.0
  %v2304 = vand.u32 %v2028, 4294901760
  %v2305 = vsub.f32 %v2028, %v2304
  %v2306 = vand.u32 %v2305, 4294901760
  %v2307 = vsub.f32 %v2305, %v2306
  %v2308 = vand.u32 %v2307, 4294901760
  %2309 = vmatpush1.msra.mxu0 %v2308
  %2310 = vmatprep.subr.mxu0 0.0
  %v2311 = vand.u32 %v2029, 4294901760
  %v2312 = vsub.f32 %v2029, %v2311
  %v2313 = vand.u32 %v2312, 4294901760
  %v2314 = vsub.f32 %v2312, %v2313
  %v2315 = vand.u32 %v2314, 4294901760
  %2316 = vmatpush1.msra.mxu0 %v2315
  %2317 = vmatprep.subr.mxu0 0.0
  %v2318 = vand.u32 %v2030, 4294901760
  %v2319 = vsub.f32 %v2030, %v2318
  %v2320 = vand.u32 %v2319, 4294901760
  %v2321 = vsub.f32 %v2319, %v2320
  %v2322 = vand.u32 %v2321, 4294901760
  %2323 = vmatpush1.msra.mxu0 %v2322
  %2324 = vmatprep.subr.mxu0 0.0
  %v2325 = vand.u32 %v2031, 4294901760
  %v2326 = vsub.f32 %v2031, %v2325
  %v2327 = vand.u32 %v2326, 4294901760
  %v2328 = vsub.f32 %v2326, %v2327
  %v2329 = vand.u32 %v2328, 4294901760
  %2330 = vmatpush1.msra.mxu0 %v2329
  %2331 = vmatprep.subr.mxu0 0.0
  %v2332 = vand.u32 %v2032, 4294901760
  %v2333 = vsub.f32 %v2032, %v2332
  %v2334 = vand.u32 %v2333, 4294901760
  %v2335 = vsub.f32 %v2333, %v2334
  %v2336 = vand.u32 %v2335, 4294901760
  %2337 = vmatpush1.msra.mxu0 %v2336
  %2338 = vmatprep.subr.mxu0 0.0
  %v2339 = vand.u32 %v2033, 4294901760
  %v2340 = vsub.f32 %v2033, %v2339
  %v2341 = vand.u32 %v2340, 4294901760
  %v2342 = vsub.f32 %v2340, %v2341
  %v2343 = vand.u32 %v2342, 4294901760
  %2344 = vmatpush1.msra.mxu0 %v2343
  %2345 = vmatprep.subr.mxu0 0.0
  %v2346 = vand.u32 %v2034, 4294901760
  %v2347 = vsub.f32 %v2034, %v2346
  %v2348 = vand.u32 %v2347, 4294901760
  %v2349 = vsub.f32 %v2347, %v2348
  %v2350 = vand.u32 %v2349, 4294901760
  %2351 = vmatpush1.msra.mxu0 %v2350
  %2352 = vmatprep.subr.mxu0 0.0
  %v2353 = vand.u32 %v2035, 4294901760
  %v2354 = vsub.f32 %v2035, %v2353
  %v2355 = vand.u32 %v2354, 4294901760
  %v2356 = vsub.f32 %v2354, %v2355
  %v2357 = vand.u32 %v2356, 4294901760
  %2358 = vmatpush1.msra.mxu0 %v2357
  %2359 = vmatprep.subr.mxu0 0.0
  %v2360 = vand.u32 %v2036, 4294901760
  %v2361 = vsub.f32 %v2036, %v2360
  %v2362 = vand.u32 %v2361, 4294901760
  %v2363 = vsub.f32 %v2361, %v2362
  %v2364 = vand.u32 %v2363, 4294901760
  %2365 = vmatpush1.msra.mxu0 %v2364
  %2366 = vmatprep.subr.mxu0 0.0
  %v2367 = vand.u32 %v2037, 4294901760
  %v2368 = vsub.f32 %v2037, %v2367
  %v2369 = vand.u32 %v2368, 4294901760
  %v2370 = vsub.f32 %v2368, %v2369
  %v2371 = vand.u32 %v2370, 4294901760
  %2372 = vmatpush1.msra.mxu0 %v2371
  %2373 = vmatprep.subr.mxu0 0.0
  %v2374 = vand.u32 %v2038, 4294901760
  %v2375 = vsub.f32 %v2038, %v2374
  %v2376 = vand.u32 %v2375, 4294901760
  %v2377 = vsub.f32 %v2375, %v2376
  %v2378 = vand.u32 %v2377, 4294901760
  %2379 = vmatpush1.msra.mxu0 %v2378
  %2380 = vmatprep.subr.mxu0 0.0
  %v2381 = vand.u32 %v2039, 4294901760
  %v2382 = vsub.f32 %v2039, %v2381
  %v2383 = vand.u32 %v2382, 4294901760
  %v2384 = vsub.f32 %v2382, %v2383
  %v2385 = vand.u32 %v2384, 4294901760
  %2386 = vmatpush1.msra.mxu0 %v2385
  %2387 = vmatprep.subr.mxu0 0.0
  %v2388 = vand.u32 %v2040, 4294901760
  %v2389 = vsub.f32 %v2040, %v2388
  %v2390 = vand.u32 %v2389, 4294901760
  %v2391 = vsub.f32 %v2389, %v2390
  %v2392 = vand.u32 %v2391, 4294901760
  %2393 = vmatpush1.msra.mxu0 %v2392
  %2394 = vmatprep.subr.mxu0 0.0
  %2395 = vmatpush1.msra.mxu0 0.0
  %2396 = vmatprep.subr.mxu0 0.0
  %2397 = vmatpush1.msra.mxu0 0.0
  %2398 = vmatprep.subr.mxu0 0.0
  %2399 = vmatpush1.msra.mxu0 0.0
  %2400 = vmatprep.subr.mxu0 0.0
  %2401 = vmatpush1.msra.mxu0 0.0
  %2402 = vmatprep.subr.mxu0 0.0
  %2403 = vmatpush1.msra.mxu0 0.0
  %2404 = vmatprep.subr.mxu0 0.0
  %2405 = vmatpush1.msra.mxu0 0.0
  %2406 = vmatprep.subr.mxu0 0.0
  %2407 = vmatpush1.msra.mxu0 0.0
  %2408 = vmatprep.subr.mxu0 0.0
  %2409 = vmatpush1.msra.mxu0 0.0
  %2410 = vmatprep.subr.mxu0 0.0
  %2411 = vmatpush1.msra.mxu0 0.0
  %2412 = vmatprep.subr.mxu0 0.0
  %2413 = vmatpush1.msra.mxu0 0.0
  %2414 = vmatprep.subr.mxu0 0.0
  %2415 = vmatpush1.msra.mxu0 0.0
  %2416 = vmatprep.subr.mxu0 0.0
  %2417 = vmatpush1.msra.mxu0 0.0
  %2418 = vmatprep.subr.mxu0 0.0
  %2419 = vmatpush1.msra.mxu0 0.0
  %2420 = vmatprep.subr.mxu0 0.0
  %2421 = vmatpush1.msra.mxu0 0.0
  %2422 = vmatprep.subr.mxu0 0.0
  %2423 = vmatpush1.msra.mxu0 0.0
  %2424 = vmatprep.subr.mxu0 0.0
  %2425 = vmatpush1.msra.mxu0 0.0
  %2426 = vmatprep.mubr.f32.mxu0 0.0
  %v2427 = vand.u32 %v1917, 4294901760
  %2428 = vmatmul.mubr.f32.gmra.mrb[0].mxu0 %v2427
  %v2429 = vpop.f32.mrb[0].mxu0
  %v2430 = vadd.f32 %v2129, %v2429
  %v2431 = vpop.f32.mrb[0].mxu0
  %2432 = vmatprep.mubr.f32.mxu0 0.0
  %v2433 = vand.u32 %v1924, 4294901760
  %2434 = vmatmul.mubr.f32.gmra.mrb[0].mxu0 %v2433
  %v2435 = vpop.f32.mrb[0].mxu0
  %v2436 = vadd.f32 %v2139, %v2435
  %v2437 = vpop.f32.mrb[0].mxu0
  %2438 = vmatprep.mubr.f32.mxu0 0.0
  %v2439 = vand.u32 %v1931, 4294901760
  %2440 = vmatmul.mubr.f32.gmra.mrb[0].mxu0 %v2439
  %v2441 = vpop.f32.mrb[0].mxu0
  %v2442 = vadd.f32 %v2149, %v2441
  %v2443 = vpop.f32.mrb[0].mxu0
  %2444 = vmatprep.mubr.f32.mxu0 0.0
  %v2445 = vand.u32 %v1938, 4294901760
  %2446 = vmatmul.mubr.f32.gmra.mrb[0].mxu0 %v2445
  %v2447 = vpop.f32.mrb[0].mxu0
  %v2448 = vadd.f32 %v2159, %v2447
  %v2449 = vpop.f32.mrb[0].mxu0
  %2450 = vmatprep.mubr.f32.mxu0 0.0
  %v2451 = vand.u32 %v1945, 4294901760
  %2452 = vmatmul.mubr.f32.gmra.mrb[0].mxu0 %v2451
  %v2453 = vpop.f32.mrb[0].mxu0
  %v2454 = vadd.f32 %v2169, %v2453
  %v2455 = vpop.f32.mrb[0].mxu0
  %2456 = vmatprep.mubr.f32.mxu0 0.0
  %v2457 = vand.u32 %v1952, 4294901760
  %2458 = vmatmul.mubr.f32.gmra.mrb[0].mxu0 %v2457
  %v2459 = vpop.f32.mrb[0].mxu0
  %v2460 = vadd.f32 %v2179, %v2459
  %v2461 = vpop.f32.mrb[0].mxu0
  %2462 = vmatprep.mubr.f32.mxu0 0.0
  %v2463 = vand.u32 %v1959, 4294901760
  %2464 = vmatmul.mubr.f32.gmra.mrb[0].mxu0 %v2463
  %v2465 = vpop.f32.mrb[0].mxu0
  %v2466 = vadd.f32 %v2189, %v2465
  %v2467 = vpop.f32.mrb[0].mxu0
  %2468 = vmatprep.mubr.f32.mxu0 0.0
  %v2469 = vand.u32 %v1966, 4294901760
  %2470 = vmatmul.mubr.f32.gmra.mrb[0].mxu0 %v2469
  %v2471 = vpop.f32.mrb[0].mxu0
  %v2472 = vadd.f32 %v2199, %v2471
  %v2473 = vpop.f32.mrb[0].mxu0
  %2474 = vmatprep.mubr.f32.mxu0 0.0
  %v2475 = vand.u32 %v1973, 4294901760
  %2476 = vmatmul.mubr.f32.gmra.mrb[0].mxu0 %v2475
  %v2477 = vpop.f32.mrb[0].mxu0
  %v2478 = vadd.f32 %v2209, %v2477
  %v2479 = vpop.f32.mrb[0].mxu0
  %2480 = vmatprep.mubr.f32.mxu0 0.0
  %v2481 = vand.u32 %v1980, 4294901760
  %2482 = vmatmul.mubr.f32.gmra.mrb[0].mxu0 %v2481
  %v2483 = vpop.f32.mrb[0].mxu0
  %v2484 = vadd.f32 %v2219, %v2483
  %v2485 = vpop.f32.mrb[0].mxu0
  %2486 = vmatprep.mubr.f32.mxu0 0.0
  %v2487 = vand.u32 %v1987, 4294901760
  %2488 = vmatmul.mubr.f32.gmra.mrb[0].mxu0 %v2487
  %v2489 = vpop.f32.mrb[0].mxu0
  %v2490 = vadd.f32 %v2229, %v2489
  %v2491 = vpop.f32.mrb[0].mxu0
  %2492 = vmatprep.mubr.f32.mxu0 0.0
  %v2493 = vand.u32 %v1994, 4294901760
  %2494 = vmatmul.mubr.f32.gmra.mrb[0].mxu0 %v2493
  %v2495 = vpop.f32.mrb[0].mxu0
  %v2496 = vadd.f32 %v2239, %v2495
  %v2497 = vpop.f32.mrb[0].mxu0
  %2498 = vmatprep.mubr.f32.mxu0 0.0
  %v2499 = vand.u32 %v2001, 4294901760
  %2500 = vmatmul.mubr.f32.gmra.mrb[0].mxu0 %v2499
  %v2501 = vpop.f32.mrb[0].mxu0
  %v2502 = vadd.f32 %v2249, %v2501
  %v2503 = vpop.f32.mrb[0].mxu0
  %2504 = vmatprep.mubr.f32.mxu0 0.0
  %v2505 = vand.u32 %v2008, 4294901760
  %2506 = vmatmul.mubr.f32.gmra.mrb[0].mxu0 %v2505
  %v2507 = vpop.f32.mrb[0].mxu0
  %v2508 = vadd.f32 %v2259, %v2507
  %v2509 = vpop.f32.mrb[0].mxu0
  %2510 = vmatprep.mubr.f32.mxu0 0.0
  %v2511 = vand.u32 %v2015, 4294901760
  %2512 = vmatmul.mubr.f32.gmra.mrb[0].mxu0 %v2511
  %v2513 = vpop.f32.mrb[0].mxu0
  %v2514 = vadd.f32 %v2269, %v2513
  %v2515 = vpop.f32.mrb[0].mxu0
  %2516 = vmatprep.mubr.f32.mxu0 0.0
  %v2517 = vand.u32 %v2022, 4294901760
  %2518 = vmatmul.mubr.f32.gmra.mrb[0].mxu0 %v2517
  %v2519 = vpop.f32.mrb[0].mxu0
  %v2520 = vadd.f32 %v2279, %v2519
  %v2521 = vpop.f32.mrb[0].mxu0
  %2522 = vdwg.mxu0
  %2523 = vmatprep.subr.mxu0 0.0
  %v2524 = vand.u32 %v2025, 4294901760
  %v2525 = vsub.f32 %v2025, %v2524
  %2526 = vmatpush1.msra.mxu0 %v2525
  %2527 = vmatprep.subr.mxu0 0.0
  %v2528 = vand.u32 %v2026, 4294901760
  %v2529 = vsub.f32 %v2026, %v2528
  %2530 = vmatpush1.msra.mxu0 %v2529
  %2531 = vmatprep.subr.mxu0 0.0
  %v2532 = vand.u32 %v2027, 4294901760
  %v2533 = vsub.f32 %v2027, %v2532
  %2534 = vmatpush1.msra.mxu0 %v2533
  %2535 = vmatprep.subr.mxu0 0.0
  %v2536 = vand.u32 %v2028, 4294901760
  %v2537 = vsub.f32 %v2028, %v2536
  %2538 = vmatpush1.msra.mxu0 %v2537
  %2539 = vmatprep.subr.mxu0 0.0
  %v2540 = vand.u32 %v2029, 4294901760
  %v2541 = vsub.f32 %v2029, %v2540
  %2542 = vmatpush1.msra.mxu0 %v2541
  %2543 = vmatprep.subr.mxu0 0.0
  %v2544 = vand.u32 %v2030, 4294901760
  %v2545 = vsub.f32 %v2030, %v2544
  %2546 = vmatpush1.msra.mxu0 %v2545
  %2547 = vmatprep.subr.mxu0 0.0
  %v2548 = vand.u32 %v2031, 4294901760
  %v2549 = vsub.f32 %v2031, %v2548
  %2550 = vmatpush1.msra.mxu0 %v2549
  %2551 = vmatprep.subr.mxu0 0.0
  %v2552 = vand.u32 %v2032, 4294901760
  %v2553 = vsub.f32 %v2032, %v2552
  %2554 = vmatpush1.msra.mxu0 %v2553
  %2555 = vmatprep.subr.mxu0 0.0
  %v2556 = vand.u32 %v2033, 4294901760
  %v2557 = vsub.f32 %v2033, %v2556
  %2558 = vmatpush1.msra.mxu0 %v2557
  %2559 = vmatprep.subr.mxu0 0.0
  %v2560 = vand.u32 %v2034, 4294901760
  %v2561 = vsub.f32 %v2034, %v2560
  %2562 = vmatpush1.msra.mxu0 %v2561
  %2563 = vmatprep.subr.mxu0 0.0
  %v2564 = vand.u32 %v2035, 4294901760
  %v2565 = vsub.f32 %v2035, %v2564
  %2566 = vmatpush1.msra.mxu0 %v2565
  %2567 = vmatprep.subr.mxu0 0.0
  %v2568 = vand.u32 %v2036, 4294901760
  %v2569 = vsub.f32 %v2036, %v2568
  %2570 = vmatpush1.msra.mxu0 %v2569
  %2571 = vmatprep.subr.mxu0 0.0
  %v2572 = vand.u32 %v2037, 4294901760
  %v2573 = vsub.f32 %v2037, %v2572
  %2574 = vmatpush1.msra.mxu0 %v2573
  %2575 = vmatprep.subr.mxu0 0.0
  %v2576 = vand.u32 %v2038, 4294901760
  %v2577 = vsub.f32 %v2038, %v2576
  %2578 = vmatpush1.msra.mxu0 %v2577
  %2579 = vmatprep.subr.mxu0 0.0
  %v2580 = vand.u32 %v2039, 4294901760
  %v2581 = vsub.f32 %v2039, %v2580
  %2582 = vmatpush1.msra.mxu0 %v2581
  %2583 = vmatprep.subr.mxu0 0.0
  %v2584 = vand.u32 %v2040, 4294901760
  %v2585 = vsub.f32 %v2040, %v2584
  %2586 = vmatpush1.msra.mxu0 %v2585
  %2587 = vmatprep.subr.mxu0 0.0
  %2588 = vmatpush1.msra.mxu0 0.0
  %2589 = vmatprep.subr.mxu0 0.0
  %2590 = vmatpush1.msra.mxu0 0.0
  %2591 = vmatprep.subr.mxu0 0.0
  %2592 = vmatpush1.msra.mxu0 0.0
  %2593 = vmatprep.subr.mxu0 0.0
  %2594 = vmatpush1.msra.mxu0 0.0
  %2595 = vmatprep.subr.mxu0 0.0
  %2596 = vmatpush1.msra.mxu0 0.0
  %2597 = vmatprep.subr.mxu0 0.0
  %2598 = vmatpush1.msra.mxu0 0.0
  %2599 = vmatprep.subr.mxu0 0.0
  %2600 = vmatpush1.msra.mxu0 0.0
  %2601 = vmatprep.subr.mxu0 0.0
  %2602 = vmatpush1.msra.mxu0 0.0
  %2603 = vmatprep.subr.mxu0 0.0
  %2604 = vmatpush1.msra.mxu0 0.0
  %2605 = vmatprep.subr.mxu0 0.0
  %2606 = vmatpush1.msra.mxu0 0.0
  %2607 = vmatprep.subr.mxu0 0.0
  %2608 = vmatpush1.msra.mxu0 0.0
  %2609 = vmatprep.subr.mxu0 0.0
  %2610 = vmatpush1.msra.mxu0 0.0
  %2611 = vmatprep.subr.mxu0 0.0
  %2612 = vmatpush1.msra.mxu0 0.0
  %2613 = vmatprep.subr.mxu0 0.0
  %2614 = vmatpush1.msra.mxu0 0.0
  %2615 = vmatprep.subr.mxu0 0.0
  %2616 = vmatpush1.msra.mxu0 0.0
  %2617 = vmatprep.subr.mxu0 0.0
  %2618 = vmatpush1.msra.mxu0 0.0
  %2619 = vmatprep.mubr.f32.mxu0 0.0
  %v2620 = vand.u32 %v1917, 4294901760
  %v2621 = vsub.f32 %v1917, %v2620
  %2622 = vmatmul.mubr.f32.gmra.mrb[0].mxu0 %v2621
  %v2623 = vpop.f32.mrb[0].mxu0
  %v2624 = vadd.f32 %v2430, %v2623
  %v2625 = vpop.f32.mrb[0].mxu0
  %2626 = vmatprep.mubr.f32.mxu0 0.0
  %v2627 = vand.u32 %v1924, 4294901760
  %v2628 = vsub.f32 %v1924, %v2627
  %2629 = vmatmul.mubr.f32.gmra.mrb[0].mxu0 %v2628
  %v2630 = vpop.f32.mrb[0].mxu0
  %v2631 = vadd.f32 %v2436, %v2630
  %v2632 = vpop.f32.mrb[0].mxu0
  %2633 = vmatprep.mubr.f32.mxu0 0.0
  %v2634 = vand.u32 %v1931, 4294901760
  %v2635 = vsub.f32 %v1931, %v2634
  %2636 = vmatmul.mubr.f32.gmra.mrb[0].mxu0 %v2635
  %v2637 = vpop.f32.mrb[0].mxu0
  %v2638 = vadd.f32 %v2442, %v2637
  %v2639 = vpop.f32.mrb[0].mxu0
  %2640 = vmatprep.mubr.f32.mxu0 0.0
  %v2641 = vand.u32 %v1938, 4294901760
  %v2642 = vsub.f32 %v1938, %v2641
  %2643 = vmatmul.mubr.f32.gmra.mrb[0].mxu0 %v2642
  %v2644 = vpop.f32.mrb[0].mxu0
  %v2645 = vadd.f32 %v2448, %v2644
  %v2646 = vpop.f32.mrb[0].mxu0
  %2647 = vmatprep.mubr.f32.mxu0 0.0
  %v2648 = vand.u32 %v1945, 4294901760
  %v2649 = vsub.f32 %v1945, %v2648
  %2650 = vmatmul.mubr.f32.gmra.mrb[0].mxu0 %v2649
  %v2651 = vpop.f32.mrb[0].mxu0
  %v2652 = vadd.f32 %v2454, %v2651
  %v2653 = vpop.f32.mrb[0].mxu0
  %2654 = vmatprep.mubr.f32.mxu0 0.0
  %v2655 = vand.u32 %v1952, 4294901760
  %v2656 = vsub.f32 %v1952, %v2655
  %2657 = vmatmul.mubr.f32.gmra.mrb[0].mxu0 %v2656
  %v2658 = vpop.f32.mrb[0].mxu0
  %v2659 = vadd.f32 %v2460, %v2658
  %v2660 = vpop.f32.mrb[0].mxu0
  %2661 = vmatprep.mubr.f32.mxu0 0.0
  %v2662 = vand.u32 %v1959, 4294901760
  %v2663 = vsub.f32 %v1959, %v2662
  %2664 = vmatmul.mubr.f32.gmra.mrb[0].mxu0 %v2663
  %v2665 = vpop.f32.mrb[0].mxu0
  %v2666 = vadd.f32 %v2466, %v2665
  %v2667 = vpop.f32.mrb[0].mxu0
  %2668 = vmatprep.mubr.f32.mxu0 0.0
  %v2669 = vand.u32 %v1966, 4294901760
  %v2670 = vsub.f32 %v1966, %v2669
  %2671 = vmatmul.mubr.f32.gmra.mrb[0].mxu0 %v2670
  %v2672 = vpop.f32.mrb[0].mxu0
  %v2673 = vadd.f32 %v2472, %v2672
  %v2674 = vpop.f32.mrb[0].mxu0
  %2675 = vmatprep.mubr.f32.mxu0 0.0
  %v2676 = vand.u32 %v1973, 4294901760
  %v2677 = vsub.f32 %v1973, %v2676
  %2678 = vmatmul.mubr.f32.gmra.mrb[0].mxu0 %v2677
  %v2679 = vpop.f32.mrb[0].mxu0
  %v2680 = vadd.f32 %v2478, %v2679
  %v2681 = vpop.f32.mrb[0].mxu0
  %2682 = vmatprep.mubr.f32.mxu0 0.0
  %v2683 = vand.u32 %v1980, 4294901760
  %v2684 = vsub.f32 %v1980, %v2683
  %2685 = vmatmul.mubr.f32.gmra.mrb[0].mxu0 %v2684
  %v2686 = vpop.f32.mrb[0].mxu0
  %v2687 = vadd.f32 %v2484, %v2686
  %v2688 = vpop.f32.mrb[0].mxu0
  %2689 = vmatprep.mubr.f32.mxu0 0.0
  %v2690 = vand.u32 %v1987, 4294901760
  %v2691 = vsub.f32 %v1987, %v2690
  %2692 = vmatmul.mubr.f32.gmra.mrb[0].mxu0 %v2691
  %v2693 = vpop.f32.mrb[0].mxu0
  %v2694 = vadd.f32 %v2490, %v2693
  %v2695 = vpop.f32.mrb[0].mxu0
  %2696 = vmatprep.mubr.f32.mxu0 0.0
  %v2697 = vand.u32 %v1994, 4294901760
  %v2698 = vsub.f32 %v1994, %v2697
  %2699 = vmatmul.mubr.f32.gmra.mrb[0].mxu0 %v2698
  %v2700 = vpop.f32.mrb[0].mxu0
  %v2701 = vadd.f32 %v2496, %v2700
  %v2702 = vpop.f32.mrb[0].mxu0
  %2703 = vmatprep.mubr.f32.mxu0 0.0
  %v2704 = vand.u32 %v2001, 4294901760
  %v2705 = vsub.f32 %v2001, %v2704
  %2706 = vmatmul.mubr.f32.gmra.mrb[0].mxu0 %v2705
  %v2707 = vpop.f32.mrb[0].mxu0
  %v2708 = vadd.f32 %v2502, %v2707
  %v2709 = vpop.f32.mrb[0].mxu0
  %2710 = vmatprep.mubr.f32.mxu0 0.0
  %v2711 = vand.u32 %v2008, 4294901760
  %v2712 = vsub.f32 %v2008, %v2711
  %2713 = vmatmul.mubr.f32.gmra.mrb[0].mxu0 %v2712
  %v2714 = vpop.f32.mrb[0].mxu0
  %v2715 = vadd.f32 %v2508, %v2714
  %v2716 = vpop.f32.mrb[0].mxu0
  %2717 = vmatprep.mubr.f32.mxu0 0.0
  %v2718 = vand.u32 %v2015, 4294901760
  %v2719 = vsub.f32 %v2015, %v2718
  %2720 = vmatmul.mubr.f32.gmra.mrb[0].mxu0 %v2719
  %v2721 = vpop.f32.mrb[0].mxu0
  %v2722 = vadd.f32 %v2514, %v2721
  %v2723 = vpop.f32.mrb[0].mxu0
  %2724 = vmatprep.mubr.f32.mxu0 0.0
  %v2725 = vand.u32 %v2022, 4294901760
  %v2726 = vsub.f32 %v2022, %v2725
  %2727 = vmatmul.mubr.f32.gmra.mrb[0].mxu0 %v2726
  %v2728 = vpop.f32.mrb[0].mxu0
  %v2729 = vadd.f32 %v2520, %v2728
  %v2730 = vpop.f32.mrb[0].mxu0
  %2731 = vdwg.mxu0
  %2732 = vmatprep.subr.mxu0 0.0
  %v2733 = vand.u32 %v2025, 4294901760
  %2734 = vmatpush1.msra.mxu0 %v2733
  %2735 = vmatprep.subr.mxu0 0.0
  %v2736 = vand.u32 %v2026, 4294901760
  %2737 = vmatpush1.msra.mxu0 %v2736
  %2738 = vmatprep.subr.mxu0 0.0
  %v2739 = vand.u32 %v2027, 4294901760
  %2740 = vmatpush1.msra.mxu0 %v2739
  %2741 = vmatprep.subr.mxu0 0.0
  %v2742 = vand.u32 %v2028, 4294901760
  %2743 = vmatpush1.msra.mxu0 %v2742
  %2744 = vmatprep.subr.mxu0 0.0
  %v2745 = vand.u32 %v2029, 4294901760
  %2746 = vmatpush1.msra.mxu0 %v2745
  %2747 = vmatprep.subr.mxu0 0.0
  %v2748 = vand.u32 %v2030, 4294901760
  %2749 = vmatpush1.msra.mxu0 %v2748
  %2750 = vmatprep.subr.mxu0 0.0
  %v2751 = vand.u32 %v2031, 4294901760
  %2752 = vmatpush1.msra.mxu0 %v2751
  %2753 = vmatprep.subr.mxu0 0.0
  %v2754 = vand.u32 %v2032, 4294901760
  %2755 = vmatpush1.msra.mxu0 %v2754
  %2756 = vmatprep.subr.mxu0 0.0
  %v2757 = vand.u32 %v2033, 4294901760
  %2758 = vmatpush1.msra.mxu0 %v2757
  %2759 = vmatprep.subr.mxu0 0.0
  %v2760 = vand.u32 %v2034, 4294901760
  %2761 = vmatpush1.msra.mxu0 %v2760
  %2762 = vmatprep.subr.mxu0 0.0
  %v2763 = vand.u32 %v2035, 4294901760
  %2764 = vmatpush1.msra.mxu0 %v2763
  %2765 = vmatprep.subr.mxu0 0.0
  %v2766 = vand.u32 %v2036, 4294901760
  %2767 = vmatpush1.msra.mxu0 %v2766
  %2768 = vmatprep.subr.mxu0 0.0
  %v2769 = vand.u32 %v2037, 4294901760
  %2770 = vmatpush1.msra.mxu0 %v2769
  %2771 = vmatprep.subr.mxu0 0.0
  %v2772 = vand.u32 %v2038, 4294901760
  %2773 = vmatpush1.msra.mxu0 %v2772
  %2774 = vmatprep.subr.mxu0 0.0
  %v2775 = vand.u32 %v2039, 4294901760
  %2776 = vmatpush1.msra.mxu0 %v2775
  %2777 = vmatprep.subr.mxu0 0.0
  %v2778 = vand.u32 %v2040, 4294901760
  %2779 = vmatpush1.msra.mxu0 %v2778
  %2780 = vmatprep.subr.mxu0 0.0
  %2781 = vmatpush1.msra.mxu0 0.0
  %2782 = vmatprep.subr.mxu0 0.0
  %2783 = vmatpush1.msra.mxu0 0.0
  %2784 = vmatprep.subr.mxu0 0.0
  %2785 = vmatpush1.msra.mxu0 0.0
  %2786 = vmatprep.subr.mxu0 0.0
  %2787 = vmatpush1.msra.mxu0 0.0
  %2788 = vmatprep.subr.mxu0 0.0
  %2789 = vmatpush1.msra.mxu0 0.0
  %2790 = vmatprep.subr.mxu0 0.0
  %2791 = vmatpush1.msra.mxu0 0.0
  %2792 = vmatprep.subr.mxu0 0.0
  %2793 = vmatpush1.msra.mxu0 0.0
  %2794 = vmatprep.subr.mxu0 0.0
  %2795 = vmatpush1.msra.mxu0 0.0
  %2796 = vmatprep.subr.mxu0 0.0
  %2797 = vmatpush1.msra.mxu0 0.0
  %2798 = vmatprep.subr.mxu0 0.0
  %2799 = vmatpush1.msra.mxu0 0.0
  %2800 = vmatprep.subr.mxu0 0.0
  %2801 = vmatpush1.msra.mxu0 0.0
  %2802 = vmatprep.subr.mxu0 0.0
  %2803 = vmatpush1.msra.mxu0 0.0
  %2804 = vmatprep.subr.mxu0 0.0
  %2805 = vmatpush1.msra.mxu0 0.0
  %2806 = vmatprep.subr.mxu0 0.0
  %2807 = vmatpush1.msra.mxu0 0.0
  %2808 = vmatprep.subr.mxu0 0.0
  %2809 = vmatpush1.msra.mxu0 0.0
  %2810 = vmatprep.subr.mxu0 0.0
  %2811 = vmatpush1.msra.mxu0 0.0
  %2812 = vmatprep.mubr.f32.mxu0 0.0
  %v2813 = vand.u32 %v1917, 4294901760
  %v2814 = vsub.f32 %v1917, %v2813
  %v2815 = vand.u32 %v2814, 4294901760
  %2816 = vmatmul.mubr.f32.gmra.mrb[0].mxu0 %v2815
  %v2817 = vpop.f32.mrb[0].mxu0
  %v2818 = vadd.f32 %v2624, %v2817
  %v2819 = vpop.f32.mrb[0].mxu0
  %2820 = vmatprep.mubr.f32.mxu0 0.0
  %v2821 = vand.u32 %v1924, 4294901760
  %v2822 = vsub.f32 %v1924, %v2821
  %v2823 = vand.u32 %v2822, 4294901760
  %2824 = vmatmul.mubr.f32.gmra.mrb[0].mxu0 %v2823
  %v2825 = vpop.f32.mrb[0].mxu0
  %v2826 = vadd.f32 %v2631, %v2825
  %v2827 = vpop.f32.mrb[0].mxu0
  %2828 = vmatprep.mubr.f32.mxu0 0.0
  %v2829 = vand.u32 %v1931, 4294901760
  %v2830 = vsub.f32 %v1931, %v2829
  %v2831 = vand.u32 %v2830, 4294901760
  %2832 = vmatmul.mubr.f32.gmra.mrb[0].mxu0 %v2831
  %v2833 = vpop.f32.mrb[0].mxu0
  %v2834 = vadd.f32 %v2638, %v2833
  %v2835 = vpop.f32.mrb[0].mxu0
  %2836 = vmatprep.mubr.f32.mxu0 0.0
  %v2837 = vand.u32 %v1938, 4294901760
  %v2838 = vsub.f32 %v1938, %v2837
  %v2839 = vand.u32 %v2838, 4294901760
  %2840 = vmatmul.mubr.f32.gmra.mrb[0].mxu0 %v2839
  %v2841 = vpop.f32.mrb[0].mxu0
  %v2842 = vadd.f32 %v2645, %v2841
  %v2843 = vpop.f32.mrb[0].mxu0
  %2844 = vmatprep.mubr.f32.mxu0 0.0
  %v2845 = vand.u32 %v1945, 4294901760
  %v2846 = vsub.f32 %v1945, %v2845
  %v2847 = vand.u32 %v2846, 4294901760
  %2848 = vmatmul.mubr.f32.gmra.mrb[0].mxu0 %v2847
  %v2849 = vpop.f32.mrb[0].mxu0
  %v2850 = vadd.f32 %v2652, %v2849
  %v2851 = vpop.f32.mrb[0].mxu0
  %2852 = vmatprep.mubr.f32.mxu0 0.0
  %v2853 = vand.u32 %v1952, 4294901760
  %v2854 = vsub.f32 %v1952, %v2853
  %v2855 = vand.u32 %v2854, 4294901760
  %2856 = vmatmul.mubr.f32.gmra.mrb[0].mxu0 %v2855
  %v2857 = vpop.f32.mrb[0].mxu0
  %v2858 = vadd.f32 %v2659, %v2857
  %v2859 = vpop.f32.mrb[0].mxu0
  %2860 = vmatprep.mubr.f32.mxu0 0.0
  %v2861 = vand.u32 %v1959, 4294901760
  %v2862 = vsub.f32 %v1959, %v2861
  %v2863 = vand.u32 %v2862, 4294901760
  %2864 = vmatmul.mubr.f32.gmra.mrb[0].mxu0 %v2863
  %v2865 = vpop.f32.mrb[0].mxu0
  %v2866 = vadd.f32 %v2666, %v2865
  %v2867 = vpop.f32.mrb[0].mxu0
  %2868 = vmatprep.mubr.f32.mxu0 0.0
  %v2869 = vand.u32 %v1966, 4294901760
  %v2870 = vsub.f32 %v1966, %v2869
  %v2871 = vand.u32 %v2870, 4294901760
  %2872 = vmatmul.mubr.f32.gmra.mrb[0].mxu0 %v2871
  %v2873 = vpop.f32.mrb[0].mxu0
  %v2874 = vadd.f32 %v2673, %v2873
  %v2875 = vpop.f32.mrb[0].mxu0
  %2876 = vmatprep.mubr.f32.mxu0 0.0
  %v2877 = vand.u32 %v1973, 4294901760
  %v2878 = vsub.f32 %v1973, %v2877
  %v2879 = vand.u32 %v2878, 4294901760
  %2880 = vmatmul.mubr.f32.gmra.mrb[0].mxu0 %v2879
  %v2881 = vpop.f32.mrb[0].mxu0
  %v2882 = vadd.f32 %v2680, %v2881
  %v2883 = vpop.f32.mrb[0].mxu0
  %2884 = vmatprep.mubr.f32.mxu0 0.0
  %v2885 = vand.u32 %v1980, 4294901760
  %v2886 = vsub.f32 %v1980, %v2885
  %v2887 = vand.u32 %v2886, 4294901760
  %2888 = vmatmul.mubr.f32.gmra.mrb[0].mxu0 %v2887
  %v2889 = vpop.f32.mrb[0].mxu0
  %v2890 = vadd.f32 %v2687, %v2889
  %v2891 = vpop.f32.mrb[0].mxu0
  %2892 = vmatprep.mubr.f32.mxu0 0.0
  %v2893 = vand.u32 %v1987, 4294901760
  %v2894 = vsub.f32 %v1987, %v2893
  %v2895 = vand.u32 %v2894, 4294901760
  %2896 = vmatmul.mubr.f32.gmra.mrb[0].mxu0 %v2895
  %v2897 = vpop.f32.mrb[0].mxu0
  %v2898 = vadd.f32 %v2694, %v2897
  %v2899 = vpop.f32.mrb[0].mxu0
  %2900 = vmatprep.mubr.f32.mxu0 0.0
  %v2901 = vand.u32 %v1994, 4294901760
  %v2902 = vsub.f32 %v1994, %v2901
  %v2903 = vand.u32 %v2902, 4294901760
  %2904 = vmatmul.mubr.f32.gmra.mrb[0].mxu0 %v2903
  %v2905 = vpop.f32.mrb[0].mxu0
  %v2906 = vadd.f32 %v2701, %v2905
  %v2907 = vpop.f32.mrb[0].mxu0
  %2908 = vmatprep.mubr.f32.mxu0 0.0
  %v2909 = vand.u32 %v2001, 4294901760
  %v2910 = vsub.f32 %v2001, %v2909
  %v2911 = vand.u32 %v2910, 4294901760
  %2912 = vmatmul.mubr.f32.gmra.mrb[0].mxu0 %v2911
  %v2913 = vpop.f32.mrb[0].mxu0
  %v2914 = vadd.f32 %v2708, %v2913
  %v2915 = vpop.f32.mrb[0].mxu0
  %2916 = vmatprep.mubr.f32.mxu0 0.0
  %v2917 = vand.u32 %v2008, 4294901760
  %v2918 = vsub.f32 %v2008, %v2917
  %v2919 = vand.u32 %v2918, 4294901760
  %2920 = vmatmul.mubr.f32.gmra.mrb[0].mxu0 %v2919
  %v2921 = vpop.f32.mrb[0].mxu0
  %v2922 = vadd.f32 %v2715, %v2921
  %v2923 = vpop.f32.mrb[0].mxu0
  %2924 = vmatprep.mubr.f32.mxu0 0.0
  %v2925 = vand.u32 %v2015, 4294901760
  %v2926 = vsub.f32 %v2015, %v2925
  %v2927 = vand.u32 %v2926, 4294901760
  %2928 = vmatmul.mubr.f32.gmra.mrb[0].mxu0 %v2927
  %v2929 = vpop.f32.mrb[0].mxu0
  %v2930 = vadd.f32 %v2722, %v2929
  %v2931 = vpop.f32.mrb[0].mxu0
  %2932 = vmatprep.mubr.f32.mxu0 0.0
  %v2933 = vand.u32 %v2022, 4294901760
  %v2934 = vsub.f32 %v2022, %v2933
  %v2935 = vand.u32 %v2934, 4294901760
  %2936 = vmatmul.mubr.f32.gmra.mrb[0].mxu0 %v2935
  %v2937 = vpop.f32.mrb[0].mxu0
  %v2938 = vadd.f32 %v2729, %v2937
  %v2939 = vpop.f32.mrb[0].mxu0
  %2940 = vdwg.mxu0
  %2941 = vmatprep.subr.mxu0 0.0
  %v2942 = vand.u32 %v2025, 4294901760
  %v2943 = vsub.f32 %v2025, %v2942
  %v2944 = vand.u32 %v2943, 4294901760
  %2945 = vmatpush1.msra.mxu0 %v2944
  %2946 = vmatprep.subr.mxu0 0.0
  %v2947 = vand.u32 %v2026, 4294901760
  %v2948 = vsub.f32 %v2026, %v2947
  %v2949 = vand.u32 %v2948, 4294901760
  %2950 = vmatpush1.msra.mxu0 %v2949
  %2951 = vmatprep.subr.mxu0 0.0
  %v2952 = vand.u32 %v2027, 4294901760
  %v2953 = vsub.f32 %v2027, %v2952
  %v2954 = vand.u32 %v2953, 4294901760
  %2955 = vmatpush1.msra.mxu0 %v2954
  %2956 = vmatprep.subr.mxu0 0.0
  %v2957 = vand.u32 %v2028, 4294901760
  %v2958 = vsub.f32 %v2028, %v2957
  %v2959 = vand.u32 %v2958, 4294901760
  %2960 = vmatpush1.msra.mxu0 %v2959
  %2961 = vmatprep.subr.mxu0 0.0
  %v2962 = vand.u32 %v2029, 4294901760
  %v2963 = vsub.f32 %v2029, %v2962
  %v2964 = vand.u32 %v2963, 4294901760
  %2965 = vmatpush1.msra.mxu0 %v2964
  %2966 = vmatprep.subr.mxu0 0.0
  %v2967 = vand.u32 %v2030, 4294901760
  %v2968 = vsub.f32 %v2030, %v2967
  %v2969 = vand.u32 %v2968, 4294901760
  %2970 = vmatpush1.msra.mxu0 %v2969
  %2971 = vmatprep.subr.mxu0 0.0
  %v2972 = vand.u32 %v2031, 4294901760
  %v2973 = vsub.f32 %v2031, %v2972
  %v2974 = vand.u32 %v2973, 4294901760
  %2975 = vmatpush1.msra.mxu0 %v2974
  %2976 = vmatprep.subr.mxu0 0.0
  %v2977 = vand.u32 %v2032, 4294901760
  %v2978 = vsub.f32 %v2032, %v2977
  %v2979 = vand.u32 %v2978, 4294901760
  %2980 = vmatpush1.msra.mxu0 %v2979
  %2981 = vmatprep.subr.mxu0 0.0
  %v2982 = vand.u32 %v2033, 4294901760
  %v2983 = vsub.f32 %v2033, %v2982
  %v2984 = vand.u32 %v2983, 4294901760
  %2985 = vmatpush1.msra.mxu0 %v2984
  %2986 = vmatprep.subr.mxu0 0.0
  %v2987 = vand.u32 %v2034, 4294901760
  %v2988 = vsub.f32 %v2034, %v2987
  %v2989 = vand.u32 %v2988, 4294901760
  %2990 = vmatpush1.msra.mxu0 %v2989
  %2991 = vmatprep.subr.mxu0 0.0
  %v2992 = vand.u32 %v2035, 4294901760
  %v2993 = vsub.f32 %v2035, %v2992
  %v2994 = vand.u32 %v2993, 4294901760
  %2995 = vmatpush1.msra.mxu0 %v2994
  %2996 = vmatprep.subr.mxu0 0.0
  %v2997 = vand.u32 %v2036, 4294901760
  %v2998 = vsub.f32 %v2036, %v2997
  %v2999 = vand.u32 %v2998, 4294901760
  %3000 = vmatpush1.msra.mxu0 %v2999
  %3001 = vmatprep.subr.mxu0 0.0
  %v3002 = vand.u32 %v2037, 4294901760
  %v3003 = vsub.f32 %v2037, %v3002
  %v3004 = vand.u32 %v3003, 4294901760
  %3005 = vmatpush1.msra.mxu0 %v3004
  %3006 = vmatprep.subr.mxu0 0.0
  %v3007 = vand.u32 %v2038, 4294901760
  %v3008 = vsub.f32 %v2038, %v3007
  %v3009 = vand.u32 %v3008, 4294901760
  %3010 = vmatpush1.msra.mxu0 %v3009
  %3011 = vmatprep.subr.mxu0 0.0
  %v3012 = vand.u32 %v2039, 4294901760
  %v3013 = vsub.f32 %v2039, %v3012
  %v3014 = vand.u32 %v3013, 4294901760
  %3015 = vmatpush1.msra.mxu0 %v3014
  %3016 = vmatprep.subr.mxu0 0.0
  %v3017 = vand.u32 %v2040, 4294901760
  %v3018 = vsub.f32 %v2040, %v3017
  %v3019 = vand.u32 %v3018, 4294901760
  %3020 = vmatpush1.msra.mxu0 %v3019
  %3021 = vmatprep.subr.mxu0 0.0
  %3022 = vmatpush1.msra.mxu0 0.0
  %3023 = vmatprep.subr.mxu0 0.0
  %3024 = vmatpush1.msra.mxu0 0.0
  %3025 = vmatprep.subr.mxu0 0.0
  %3026 = vmatpush1.msra.mxu0 0.0
  %3027 = vmatprep.subr.mxu0 0.0
  %3028 = vmatpush1.msra.mxu0 0.0
  %3029 = vmatprep.subr.mxu0 0.0
  %3030 = vmatpush1.msra.mxu0 0.0
  %3031 = vmatprep.subr.mxu0 0.0
  %3032 = vmatpush1.msra.mxu0 0.0
  %3033 = vmatprep.subr.mxu0 0.0
  %3034 = vmatpush1.msra.mxu0 0.0
  %3035 = vmatprep.subr.mxu0 0.0
  %3036 = vmatpush1.msra.mxu0 0.0
  %3037 = vmatprep.subr.mxu0 0.0
  %3038 = vmatpush1.msra.mxu0 0.0
  %3039 = vmatprep.subr.mxu0 0.0
  %3040 = vmatpush1.msra.mxu0 0.0
  %3041 = vmatprep.subr.mxu0 0.0
  %3042 = vmatpush1.msra.mxu0 0.0
  %3043 = vmatprep.subr.mxu0 0.0
  %3044 = vmatpush1.msra.mxu0 0.0
  %3045 = vmatprep.subr.mxu0 0.0
  %3046 = vmatpush1.msra.mxu0 0.0
  %3047 = vmatprep.subr.mxu0 0.0
  %3048 = vmatpush1.msra.mxu0 0.0
  %3049 = vmatprep.subr.mxu0 0.0
  %3050 = vmatpush1.msra.mxu0 0.0
  %3051 = vmatprep.subr.mxu0 0.0
  %3052 = vmatpush1.msra.mxu0 0.0
  %3053 = vmatprep.mubr.f32.mxu0 0.0
  %v3054 = vand.u32 %v1917, 4294901760
  %3055 = vmatmul.mubr.f32.gmra.mrb[0].mxu0 %v3054
  %v3056 = vpop.f32.mrb[0].mxu0
  %v3057 = vadd.f32 %v2818, %v3056
  %v3058 = vpop.f32.mrb[0].mxu0
  %3059 = vmatprep.mubr.f32.mxu0 0.0
  %v3060 = vand.u32 %v1924, 4294901760
  %3061 = vmatmul.mubr.f32.gmra.mrb[0].mxu0 %v3060
  %v3062 = vpop.f32.mrb[0].mxu0
  %v3063 = vadd.f32 %v2826, %v3062
  %v3064 = vpop.f32.mrb[0].mxu0
  %3065 = vmatprep.mubr.f32.mxu0 0.0
  %v3066 = vand.u32 %v1931, 4294901760
  %3067 = vmatmul.mubr.f32.gmra.mrb[0].mxu0 %v3066
  %v3068 = vpop.f32.mrb[0].mxu0
  %v3069 = vadd.f32 %v2834, %v3068
  %v3070 = vpop.f32.mrb[0].mxu0
  %3071 = vmatprep.mubr.f32.mxu0 0.0
  %v3072 = vand.u32 %v1938, 4294901760
  %3073 = vmatmul.mubr.f32.gmra.mrb[0].mxu0 %v3072
  %v3074 = vpop.f32.mrb[0].mxu0
  %v3075 = vadd.f32 %v2842, %v3074
  %v3076 = vpop.f32.mrb[0].mxu0
  %3077 = vmatprep.mubr.f32.mxu0 0.0
  %v3078 = vand.u32 %v1945, 4294901760
  %3079 = vmatmul.mubr.f32.gmra.mrb[0].mxu0 %v3078
  %v3080 = vpop.f32.mrb[0].mxu0
  %v3081 = vadd.f32 %v2850, %v3080
  %v3082 = vpop.f32.mrb[0].mxu0
  %3083 = vmatprep.mubr.f32.mxu0 0.0
  %v3084 = vand.u32 %v1952, 4294901760
  %3085 = vmatmul.mubr.f32.gmra.mrb[0].mxu0 %v3084
  %v3086 = vpop.f32.mrb[0].mxu0
  %v3087 = vadd.f32 %v2858, %v3086
  %v3088 = vpop.f32.mrb[0].mxu0
  %3089 = vmatprep.mubr.f32.mxu0 0.0
  %v3090 = vand.u32 %v1959, 4294901760
  %3091 = vmatmul.mubr.f32.gmra.mrb[0].mxu0 %v3090
  %v3092 = vpop.f32.mrb[0].mxu0
  %v3093 = vadd.f32 %v2866, %v3092
  %v3094 = vpop.f32.mrb[0].mxu0
  %3095 = vmatprep.mubr.f32.mxu0 0.0
  %v3096 = vand.u32 %v1966, 4294901760
  %3097 = vmatmul.mubr.f32.gmra.mrb[0].mxu0 %v3096
  %v3098 = vpop.f32.mrb[0].mxu0
  %v3099 = vadd.f32 %v2874, %v3098
  %v3100 = vpop.f32.mrb[0].mxu0
  %3101 = vmatprep.mubr.f32.mxu0 0.0
  %v3102 = vand.u32 %v1973, 4294901760
  %3103 = vmatmul.mubr.f32.gmra.mrb[0].mxu0 %v3102
  %v3104 = vpop.f32.mrb[0].mxu0
  %v3105 = vadd.f32 %v2882, %v3104
  %v3106 = vpop.f32.mrb[0].mxu0
  %3107 = vmatprep.mubr.f32.mxu0 0.0
  %v3108 = vand.u32 %v1980, 4294901760
  %3109 = vmatmul.mubr.f32.gmra.mrb[0].mxu0 %v3108
  %v3110 = vpop.f32.mrb[0].mxu0
  %v3111 = vadd.f32 %v2890, %v3110
  %v3112 = vpop.f32.mrb[0].mxu0
  %3113 = vmatprep.mubr.f32.mxu0 0.0
  %v3114 = vand.u32 %v1987, 4294901760
  %3115 = vmatmul.mubr.f32.gmra.mrb[0].mxu0 %v3114
  %v3116 = vpop.f32.mrb[0].mxu0
  %v3117 = vadd.f32 %v2898, %v3116
  %v3118 = vpop.f32.mrb[0].mxu0
  %3119 = vmatprep.mubr.f32.mxu0 0.0
  %v3120 = vand.u32 %v1994, 4294901760
  %3121 = vmatmul.mubr.f32.gmra.mrb[0].mxu0 %v3120
  %v3122 = vpop.f32.mrb[0].mxu0
  %v3123 = vadd.f32 %v2906, %v3122
  %v3124 = vpop.f32.mrb[0].mxu0
  %3125 = vmatprep.mubr.f32.mxu0 0.0
  %v3126 = vand.u32 %v2001, 4294901760
  %3127 = vmatmul.mubr.f32.gmra.mrb[0].mxu0 %v3126
  %v3128 = vpop.f32.mrb[0].mxu0
  %v3129 = vadd.f32 %v2914, %v3128
  %v3130 = vpop.f32.mrb[0].mxu0
  %3131 = vmatprep.mubr.f32.mxu0 0.0
  %v3132 = vand.u32 %v2008, 4294901760
  %3133 = vmatmul.mubr.f32.gmra.mrb[0].mxu0 %v3132
  %v3134 = vpop.f32.mrb[0].mxu0
  %v3135 = vadd.f32 %v2922, %v3134
  %v3136 = vpop.f32.mrb[0].mxu0
  %3137 = vmatprep.mubr.f32.mxu0 0.0
  %v3138 = vand.u32 %v2015, 4294901760
  %3139 = vmatmul.mubr.f32.gmra.mrb[0].mxu0 %v3138
  %v3140 = vpop.f32.mrb[0].mxu0
  %v3141 = vadd.f32 %v2930, %v3140
  %v3142 = vpop.f32.mrb[0].mxu0
  %3143 = vmatprep.mubr.f32.mxu0 0.0
  %v3144 = vand.u32 %v2022, 4294901760
  %3145 = vmatmul.mubr.f32.gmra.mrb[0].mxu0 %v3144
  %v3146 = vpop.f32.mrb[0].mxu0
  %v3147 = vadd.f32 %v2938, %v3146
  %v3148 = vpop.f32.mrb[0].mxu0
  %3149 = vdwg.mxu0
  %3150 = vmatprep.subr.mxu0 0.0
  %v3151 = vand.u32 %v2025, 4294901760
  %3152 = vmatpush1.msra.mxu0 %v3151
  %3153 = vmatprep.subr.mxu0 0.0
  %v3154 = vand.u32 %v2026, 4294901760
  %3155 = vmatpush1.msra.mxu0 %v3154
  %3156 = vmatprep.subr.mxu0 0.0
  %v3157 = vand.u32 %v2027, 4294901760
  %3158 = vmatpush1.msra.mxu0 %v3157
  %3159 = vmatprep.subr.mxu0 0.0
  %v3160 = vand.u32 %v2028, 4294901760
  %3161 = vmatpush1.msra.mxu0 %v3160
  %3162 = vmatprep.subr.mxu0 0.0
  %v3163 = vand.u32 %v2029, 4294901760
  %3164 = vmatpush1.msra.mxu0 %v3163
  %3165 = vmatprep.subr.mxu0 0.0
  %v3166 = vand.u32 %v2030, 4294901760
  %3167 = vmatpush1.msra.mxu0 %v3166
  %3168 = vmatprep.subr.mxu0 0.0
  %v3169 = vand.u32 %v2031, 4294901760
  %3170 = vmatpush1.msra.mxu0 %v3169
  %3171 = vmatprep.subr.mxu0 0.0
  %v3172 = vand.u32 %v2032, 4294901760
  %3173 = vmatpush1.msra.mxu0 %v3172
  %3174 = vmatprep.subr.mxu0 0.0
  %v3175 = vand.u32 %v2033, 4294901760
  %3176 = vmatpush1.msra.mxu0 %v3175
  %3177 = vmatprep.subr.mxu0 0.0
  %v3178 = vand.u32 %v2034, 4294901760
  %3179 = vmatpush1.msra.mxu0 %v3178
  %3180 = vmatprep.subr.mxu0 0.0
  %v3181 = vand.u32 %v2035, 4294901760
  %3182 = vmatpush1.msra.mxu0 %v3181
  %3183 = vmatprep.subr.mxu0 0.0
  %v3184 = vand.u32 %v2036, 4294901760
  %3185 = vmatpush1.msra.mxu0 %v3184
  %3186 = vmatprep.subr.mxu0 0.0
  %v3187 = vand.u32 %v2037, 4294901760
  %3188 = vmatpush1.msra.mxu0 %v3187
  %3189 = vmatprep.subr.mxu0 0.0
  %v3190 = vand.u32 %v2038, 4294901760
  %3191 = vmatpush1.msra.mxu0 %v3190
  %3192 = vmatprep.subr.mxu0 0.0
  %v3193 = vand.u32 %v2039, 4294901760
  %3194 = vmatpush1.msra.mxu0 %v3193
  %3195 = vmatprep.subr.mxu0 0.0
  %v3196 = vand.u32 %v2040, 4294901760
  %3197 = vmatpush1.msra.mxu0 %v3196
  %3198 = vmatprep.subr.mxu0 0.0
  %3199 = vmatpush1.msra.mxu0 0.0
  %3200 = vmatprep.subr.mxu0 0.0
  %3201 = vmatpush1.msra.mxu0 0.0
  %3202 = vmatprep.subr.mxu0 0.0
  %3203 = vmatpush1.msra.mxu0 0.0
  %3204 = vmatprep.subr.mxu0 0.0
  %3205 = vmatpush1.msra.mxu0 0.0
  %3206 = vmatprep.subr.mxu0 0.0
  %3207 = vmatpush1.msra.mxu0 0.0
  %3208 = vmatprep.subr.mxu0 0.0
  %3209 = vmatpush1.msra.mxu0 0.0
  %3210 = vmatprep.subr.mxu0 0.0
  %3211 = vmatpush1.msra.mxu0 0.0
  %3212 = vmatprep.subr.mxu0 0.0
  %3213 = vmatpush1.msra.mxu0 0.0
  %3214 = vmatprep.subr.mxu0 0.0
  %3215 = vmatpush1.msra.mxu0 0.0
  %3216 = vmatprep.subr.mxu0 0.0
  %3217 = vmatpush1.msra.mxu0 0.0
  %3218 = vmatprep.subr.mxu0 0.0
  %3219 = vmatpush1.msra.mxu0 0.0
  %3220 = vmatprep.subr.mxu0 0.0
  %3221 = vmatpush1.msra.mxu0 0.0
  %3222 = vmatprep.subr.mxu0 0.0
  %3223 = vmatpush1.msra.mxu0 0.0
  %3224 = vmatprep.subr.mxu0 0.0
  %3225 = vmatpush1.msra.mxu0 0.0
  %3226 = vmatprep.subr.mxu0 0.0
  %3227 = vmatpush1.msra.mxu0 0.0
  %3228 = vmatprep.subr.mxu0 0.0
  %3229 = vmatpush1.msra.mxu0 0.0
  %3230 = vmatprep.mubr.f32.mxu0 0.0
  %v3231 = vand.u32 %v1917, 4294901760
  %3232 = vmatmul.mubr.f32.gmra.mrb[0].mxu0 %v3231
  %v3233 = vpop.f32.mrb[0].mxu0
  %v3234 = vadd.f32 %v3057, %v3233
  %v3235 = vpop.f32.mrb[0].mxu0
  %3236 = vmatprep.mubr.f32.mxu0 0.0
  %v3237 = vand.u32 %v1924, 4294901760
  %3238 = vmatmul.mubr.f32.gmra.mrb[0].mxu0 %v3237
  %v3239 = vpop.f32.mrb[0].mxu0
  %v3240 = vadd.f32 %v3063, %v3239
  %v3241 = vpop.f32.mrb[0].mxu0
  %3242 = vmatprep.mubr.f32.mxu0 0.0
  %v3243 = vand.u32 %v1931, 4294901760
  %3244 = vmatmul.mubr.f32.gmra.mrb[0].mxu0 %v3243
  %v3245 = vpop.f32.mrb[0].mxu0
  %v3246 = vadd.f32 %v3069, %v3245
  %v3247 = vpop.f32.mrb[0].mxu0
  %3248 = vmatprep.mubr.f32.mxu0 0.0
  %v3249 = vand.u32 %v1938, 4294901760
  %3250 = vmatmul.mubr.f32.gmra.mrb[0].mxu0 %v3249
  %v3251 = vpop.f32.mrb[0].mxu0
  %v3252 = vadd.f32 %v3075, %v3251
  %v3253 = vpop.f32.mrb[0].mxu0
  %3254 = vmatprep.mubr.f32.mxu0 0.0
  %v3255 = vand.u32 %v1945, 4294901760
  %3256 = vmatmul.mubr.f32.gmra.mrb[0].mxu0 %v3255
  %v3257 = vpop.f32.mrb[0].mxu0
  %v3258 = vadd.f32 %v3081, %v3257
  %v3259 = vpop.f32.mrb[0].mxu0
  %3260 = vmatprep.mubr.f32.mxu0 0.0
  %v3261 = vand.u32 %v1952, 4294901760
  %3262 = vmatmul.mubr.f32.gmra.mrb[0].mxu0 %v3261
  %v3263 = vpop.f32.mrb[0].mxu0
  %v3264 = vadd.f32 %v3087, %v3263
  %v3265 = vpop.f32.mrb[0].mxu0
  %3266 = vmatprep.mubr.f32.mxu0 0.0
  %v3267 = vand.u32 %v1959, 4294901760
  %3268 = vmatmul.mubr.f32.gmra.mrb[0].mxu0 %v3267
  %v3269 = vpop.f32.mrb[0].mxu0
  %v3270 = vadd.f32 %v3093, %v3269
  %v3271 = vpop.f32.mrb[0].mxu0
  %3272 = vmatprep.mubr.f32.mxu0 0.0
  %v3273 = vand.u32 %v1966, 4294901760
  %3274 = vmatmul.mubr.f32.gmra.mrb[0].mxu0 %v3273
  %v3275 = vpop.f32.mrb[0].mxu0
  %v3276 = vadd.f32 %v3099, %v3275
  %v3277 = vpop.f32.mrb[0].mxu0
  %3278 = vmatprep.mubr.f32.mxu0 0.0
  %v3279 = vand.u32 %v1973, 4294901760
  %3280 = vmatmul.mubr.f32.gmra.mrb[0].mxu0 %v3279
  %v3281 = vpop.f32.mrb[0].mxu0
  %v3282 = vadd.f32 %v3105, %v3281
  %v3283 = vpop.f32.mrb[0].mxu0
  %3284 = vmatprep.mubr.f32.mxu0 0.0
  %v3285 = vand.u32 %v1980, 4294901760
  %3286 = vmatmul.mubr.f32.gmra.mrb[0].mxu0 %v3285
  %v3287 = vpop.f32.mrb[0].mxu0
  %v3288 = vadd.f32 %v3111, %v3287
  %v3289 = vpop.f32.mrb[0].mxu0
  %3290 = vmatprep.mubr.f32.mxu0 0.0
  %v3291 = vand.u32 %v1987, 4294901760
  %3292 = vmatmul.mubr.f32.gmra.mrb[0].mxu0 %v3291
  %v3293 = vpop.f32.mrb[0].mxu0
  %v3294 = vadd.f32 %v3117, %v3293
  %v3295 = vpop.f32.mrb[0].mxu0
  %3296 = vmatprep.mubr.f32.mxu0 0.0
  %v3297 = vand.u32 %v1994, 4294901760
  %3298 = vmatmul.mubr.f32.gmra.mrb[0].mxu0 %v3297
  %v3299 = vpop.f32.mrb[0].mxu0
  %v3300 = vadd.f32 %v3123, %v3299
  %v3301 = vpop.f32.mrb[0].mxu0
  %3302 = vmatprep.mubr.f32.mxu0 0.0
  %v3303 = vand.u32 %v2001, 4294901760
  %3304 = vmatmul.mubr.f32.gmra.mrb[0].mxu0 %v3303
  %v3305 = vpop.f32.mrb[0].mxu0
  %v3306 = vadd.f32 %v3129, %v3305
  %v3307 = vpop.f32.mrb[0].mxu0
  %3308 = vmatprep.mubr.f32.mxu0 0.0
  %v3309 = vand.u32 %v2008, 4294901760
  %3310 = vmatmul.mubr.f32.gmra.mrb[0].mxu0 %v3309
  %v3311 = vpop.f32.mrb[0].mxu0
  %v3312 = vadd.f32 %v3135, %v3311
  %v3313 = vpop.f32.mrb[0].mxu0
  %3314 = vmatprep.mubr.f32.mxu0 0.0
  %v3315 = vand.u32 %v2015, 4294901760
  %3316 = vmatmul.mubr.f32.gmra.mrb[0].mxu0 %v3315
  %v3317 = vpop.f32.mrb[0].mxu0
  %v3318 = vadd.f32 %v3141, %v3317
  %v3319 = vpop.f32.mrb[0].mxu0
  %3320 = vmatprep.mubr.f32.mxu0 0.0
  %v3321 = vand.u32 %v2022, 4294901760
  %3322 = vmatmul.mubr.f32.gmra.mrb[0].mxu0 %v3321
  %v3323 = vpop.f32.mrb[0].mxu0
  %v3324 = vadd.f32 %v3147, %v3323
  %v3325 = vpop.f32.mrb[0].mxu0
  %3326 = vdwg.mxu0
  %v3327 = vtanh.pop %v3234
  %v3328 = vtanh.pop %v3240
  %v3329 = vtanh.pop %v3246
  %v3330 = vtanh.pop %v3252
  %v3331 = vtanh.pop %v3258
  %v3332 = vtanh.pop %v3264
  %v3333 = vtanh.pop %v3270
  %v3334 = vtanh.pop %v3276
  %v3335 = vtanh.pop %v3282
  %v3336 = vtanh.pop %v3288
  %v3337 = vtanh.pop %v3294
  %v3338 = vtanh.pop %v3300
  %v3339 = vtanh.pop %v3306
  %v3340 = vtanh.pop %v3312
  %v3341 = vtanh.pop %v3318
  %v3342 = vtanh.pop %v3324
  %v3343 = vld [vmem:[%s3] sm:$0x1]
  %v3345 = vlaneseq
  %v3346 = vshrl.u32 %v3345, 7
  %v3347 = vsub.s32 0, %v3346
  %v3348 = vrot.slane %v3343, %v3347
  %v3350 = vmul.f32 %v3327, %v3348
  %v3351 = vmul.f32 %v3328, %v3348
  %v3352 = vmul.f32 %v3329, %v3348
  %v3353 = vmul.f32 %v3330, %v3348
  %v3354 = vmul.f32 %v3331, %v3348
  %v3355 = vmul.f32 %v3332, %v3348
  %v3356 = vmul.f32 %v3333, %v3348
  %v3357 = vmul.f32 %v3334, %v3348
  %v3358 = vmul.f32 %v3335, %v3348
  %v3359 = vmul.f32 %v3336, %v3348
  %v3360 = vmul.f32 %v3337, %v3348
  %v3361 = vmul.f32 %v3338, %v3348
  %v3362 = vmul.f32 %v3339, %v3348
  %v3363 = vmul.f32 %v3340, %v3348
  %v3364 = vmul.f32 %v3341, %v3348
  %v3365 = vmul.f32 %v3342, %v3348
  %v3366 = vsel %vm430, %v3350, 0.0
  %3367 = vadd.xlane.f32.xlu0 %v3366
  %v3368 = vpop.xlane.xlu0 %3367
  %v3369 = vsel %vm430, %v3351, 0.0
  %3370 = vadd.xlane.f32.xlu0 %v3369
  %v3371 = vpop.xlane.xlu0 %3370
  %v3372 = vsel %vm430, %v3352, 0.0
  %3373 = vadd.xlane.f32.xlu0 %v3372
  %v3374 = vpop.xlane.xlu0 %3373
  %v3375 = vsel %vm430, %v3353, 0.0
  %3376 = vadd.xlane.f32.xlu0 %v3375
  %v3377 = vpop.xlane.xlu0 %3376
  %v3378 = vsel %vm430, %v3354, 0.0
  %3379 = vadd.xlane.f32.xlu0 %v3378
  %v3380 = vpop.xlane.xlu0 %3379
  %v3381 = vsel %vm430, %v3355, 0.0
  %3382 = vadd.xlane.f32.xlu0 %v3381
  %v3383 = vpop.xlane.xlu0 %3382
  %v3384 = vsel %vm430, %v3356, 0.0
  %3385 = vadd.xlane.f32.xlu0 %v3384
  %v3386 = vpop.xlane.xlu0 %3385
  %v3387 = vsel %vm430, %v3357, 0.0
  %3388 = vadd.xlane.f32.xlu0 %v3387
  %v3389 = vpop.xlane.xlu0 %3388
  %v3390 = vsel %vm430, %v3358, 0.0
  %3391 = vadd.xlane.f32.xlu0 %v3390
  %v3392 = vpop.xlane.xlu0 %3391
  %v3393 = vsel %vm430, %v3359, 0.0
  %3394 = vadd.xlane.f32.xlu0 %v3393
  %v3395 = vpop.xlane.xlu0 %3394
  %v3396 = vsel %vm430, %v3360, 0.0
  %3397 = vadd.xlane.f32.xlu0 %v3396
  %v3398 = vpop.xlane.xlu0 %3397
  %v3399 = vsel %vm430, %v3361, 0.0
  %3400 = vadd.xlane.f32.xlu0 %v3399
  %v3401 = vpop.xlane.xlu0 %3400
  %v3402 = vsel %vm430, %v3362, 0.0
  %3403 = vadd.xlane.f32.xlu0 %v3402
  %v3404 = vpop.xlane.xlu0 %3403
  %v3405 = vsel %vm430, %v3363, 0.0
  %3406 = vadd.xlane.f32.xlu0 %v3405
  %v3407 = vpop.xlane.xlu0 %3406
  %v3408 = vsel %vm430, %v3364, 0.0
  %3409 = vadd.xlane.f32.xlu0 %v3408
  %v3410 = vpop.xlane.xlu0 %3409
  %v3411 = vsel %vm430, %v3365, 0.0
  %3412 = vadd.xlane.f32.xlu0 %v3411
  %v3413 = vpop.xlane.xlu0 %3412
  %v3430 = vlaneseq
  %v3431 = vshrl.u32 %v3430, 7
  %v3432 = vsub.s32 %v40, %v3431
  %v3433 = vrot.slane %v3368, %v3432
  %v3434 = vlaneseq
  %v3435 = vshrl.u32 %v3434, 7
  %v3436 = vsub.s32 %v40, %v3435
  %v3437 = vrot.slane %v3371, %v3436
  %v3438 = vlaneseq
  %v3439 = vshrl.u32 %v3438, 7
  %v3440 = vsub.s32 %v40, %v3439
  %v3441 = vrot.slane %v3374, %v3440
  %v3442 = vlaneseq
  %v3443 = vshrl.u32 %v3442, 7
  %v3444 = vsub.s32 %v40, %v3443
  %v3445 = vrot.slane %v3377, %v3444
  %v3446 = vlaneseq
  %v3447 = vshrl.u32 %v3446, 7
  %v3448 = vsub.s32 %v40, %v3447
  %v3449 = vrot.slane %v3380, %v3448
  %v3450 = vlaneseq
  %v3451 = vshrl.u32 %v3450, 7
  %v3452 = vsub.s32 %v40, %v3451
  %v3453 = vrot.slane %v3383, %v3452
  %v3454 = vlaneseq
  %v3455 = vshrl.u32 %v3454, 7
  %v3456 = vsub.s32 %v40, %v3455
  %v3457 = vrot.slane %v3386, %v3456
  %v3458 = vlaneseq
  %v3459 = vshrl.u32 %v3458, 7
  %v3460 = vsub.s32 %v40, %v3459
  %v3461 = vrot.slane %v3389, %v3460
  %v3462 = vlaneseq
  %v3463 = vshrl.u32 %v3462, 7
  %v3464 = vsub.s32 %v40, %v3463
  %v3465 = vrot.slane %v3392, %v3464
  %v3466 = vlaneseq
  %v3467 = vshrl.u32 %v3466, 7
  %v3468 = vsub.s32 %v40, %v3467
  %v3469 = vrot.slane %v3395, %v3468
  %v3470 = vlaneseq
  %v3471 = vshrl.u32 %v3470, 7
  %v3472 = vsub.s32 %v40, %v3471
  %v3473 = vrot.slane %v3398, %v3472
  %v3474 = vlaneseq
  %v3475 = vshrl.u32 %v3474, 7
  %v3476 = vsub.s32 %v40, %v3475
  %v3477 = vrot.slane %v3401, %v3476
  %v3478 = vlaneseq
  %v3479 = vshrl.u32 %v3478, 7
  %v3480 = vsub.s32 %v40, %v3479
  %v3481 = vrot.slane %v3404, %v3480
  %v3482 = vlaneseq
  %v3483 = vshrl.u32 %v3482, 7
  %v3484 = vsub.s32 %v40, %v3483
  %v3485 = vrot.slane %v3407, %v3484
  %v3486 = vlaneseq
  %v3487 = vshrl.u32 %v3486, 7
  %v3488 = vsub.s32 %v40, %v3487
  %v3489 = vrot.slane %v3410, %v3488
  %v3490 = vlaneseq
  %v3491 = vshrl.u32 %v3490, 7
  %v3492 = vsub.s32 %v40, %v3491
  %v3493 = vrot.slane %v3413, %v3492
  %vm3494 = vcmask 1041409
  %v3495 = vsel %vm3494, %v3437, %v3433
  %vm3496 = vcmask 1042434
  %v3497 = vsel %vm3496, %v3441, %v3495
  %vm3498 = vcmask 1043459
  %v3499 = vsel %vm3498, %v3445, %v3497
  %vm3500 = vcmask 1044484
  %v3501 = vsel %vm3500, %v3449, %v3499
  %vm3502 = vcmask 1045509
  %v3503 = vsel %vm3502, %v3453, %v3501
  %vm3504 = vcmask 1046534
  %v3505 = vsel %vm3504, %v3457, %v3503
  %vm3506 = vcmask 1047559
  %v3507 = vsel %vm3506, %v3461, %v3505
  %v3508 = vsel %vm3494, %v3469, %v3465
  %v3509 = vsel %vm3496, %v3473, %v3508
  %v3510 = vsel %vm3498, %v3477, %v3509
  %v3511 = vsel %vm3500, %v3481, %v3510
  %v3512 = vsel %vm3502, %v3485, %v3511
  %v3513 = vsel %vm3504, %v3489, %v3512
  %v3514 = vsel %vm3506, %v3493, %v3513
  %vm3517 = vcmask 64512
  %v3518 = vsel %vm3517, %v3507, -inf
  %3519 = vmax.xlane.f32.xlu0 %v3518
  %v3520 = vpop.xlane.xlu0 %3519
  %v3521 = vsel %vm3517, %v3514, -inf
  %3522 = vmax.xlane.f32.xlu0 %v3521
  %v3523 = vpop.xlane.xlu0 %3522
  %v3526 = vlaneseq
  %v3527 = vshrl.u32 %v3526, 7
  %v3528 = vsub.s32 0, %v3527
  %v3529 = vrot.slane %v3520, %v3528
  %v3530 = vlaneseq
  %v3531 = vshrl.u32 %v3530, 7
  %v3532 = vsub.s32 1, %v3531
  %v3533 = vrot.slane %v3520, %v3532
  %v3534 = vlaneseq
  %v3535 = vshrl.u32 %v3534, 7
  %v3536 = vsub.s32 2, %v3535
  %v3537 = vrot.slane %v3520, %v3536
  %v3538 = vlaneseq
  %v3539 = vshrl.u32 %v3538, 7
  %v3540 = vsub.s32 3, %v3539
  %v3541 = vrot.slane %v3520, %v3540
  %v3542 = vlaneseq
  %v3543 = vshrl.u32 %v3542, 7
  %v3544 = vsub.s32 4, %v3543
  %v3545 = vrot.slane %v3520, %v3544
  %v3546 = vlaneseq
  %v3547 = vshrl.u32 %v3546, 7
  %v3548 = vsub.s32 5, %v3547
  %v3549 = vrot.slane %v3520, %v3548
  %v3550 = vlaneseq
  %v3551 = vshrl.u32 %v3550, 7
  %v3552 = vsub.s32 6, %v3551
  %v3553 = vrot.slane %v3520, %v3552
  %v3554 = vlaneseq
  %v3555 = vshrl.u32 %v3554, 7
  %v3556 = vsub.s32 7, %v3555
  %v3557 = vrot.slane %v3520, %v3556
  %v3558 = vlaneseq
  %v3559 = vshrl.u32 %v3558, 7
  %v3560 = vsub.s32 0, %v3559
  %v3561 = vrot.slane %v3523, %v3560
  %v3562 = vlaneseq
  %v3563 = vshrl.u32 %v3562, 7
  %v3564 = vsub.s32 1, %v3563
  %v3565 = vrot.slane %v3523, %v3564
  %v3566 = vlaneseq
  %v3567 = vshrl.u32 %v3566, 7
  %v3568 = vsub.s32 2, %v3567
  %v3569 = vrot.slane %v3523, %v3568
  %v3570 = vlaneseq
  %v3571 = vshrl.u32 %v3570, 7
  %v3572 = vsub.s32 3, %v3571
  %v3573 = vrot.slane %v3523, %v3572
  %v3574 = vlaneseq
  %v3575 = vshrl.u32 %v3574, 7
  %v3576 = vsub.s32 4, %v3575
  %v3577 = vrot.slane %v3523, %v3576
  %v3578 = vlaneseq
  %v3579 = vshrl.u32 %v3578, 7
  %v3580 = vsub.s32 5, %v3579
  %v3581 = vrot.slane %v3523, %v3580
  %v3582 = vlaneseq
  %v3583 = vshrl.u32 %v3582, 7
  %v3584 = vsub.s32 6, %v3583
  %v3585 = vrot.slane %v3523, %v3584
  %v3586 = vlaneseq
  %v3587 = vshrl.u32 %v3586, 7
  %v3588 = vsub.s32 7, %v3587
  %v3589 = vrot.slane %v3523, %v3588
  %v3606 = vsub.f32 %v3368, %v3529
  %v3607 = vsub.f32 %v3371, %v3533
  %v3608 = vsub.f32 %v3374, %v3537
  %v3609 = vsub.f32 %v3377, %v3541
  %v3610 = vsub.f32 %v3380, %v3545
  %v3611 = vsub.f32 %v3383, %v3549
  %v3612 = vsub.f32 %v3386, %v3553
  %v3613 = vsub.f32 %v3389, %v3557
  %v3614 = vsub.f32 %v3392, %v3561
  %v3615 = vsub.f32 %v3395, %v3565
  %v3616 = vsub.f32 %v3398, %v3569
  %v3617 = vsub.f32 %v3401, %v3573
  %v3618 = vsub.f32 %v3404, %v3577
  %v3619 = vsub.f32 %v3407, %v3581
  %v3620 = vsub.f32 %v3410, %v3585
  %v3621 = vsub.f32 %v3413, %v3589
  %v3622 = vmul.f32 %v3606, 1.442695
  %v3623 = vpow.pop %v3622
  %v3624 = vmul.f32 %v3607, 1.442695
  %v3625 = vpow.pop %v3624
  %v3626 = vmul.f32 %v3608, 1.442695
  %v3627 = vpow.pop %v3626
  %v3628 = vmul.f32 %v3609, 1.442695
  %v3629 = vpow.pop %v3628
  %v3630 = vmul.f32 %v3610, 1.442695
  %v3631 = vpow.pop %v3630
  %v3632 = vmul.f32 %v3611, 1.442695
  %v3633 = vpow.pop %v3632
  %v3634 = vmul.f32 %v3612, 1.442695
  %v3635 = vpow.pop %v3634
  %v3636 = vmul.f32 %v3613, 1.442695
  %v3637 = vpow.pop %v3636
  %v3638 = vmul.f32 %v3614, 1.442695
  %v3639 = vpow.pop %v3638
  %v3640 = vmul.f32 %v3615, 1.442695
  %v3641 = vpow.pop %v3640
  %v3642 = vmul.f32 %v3616, 1.442695
  %v3643 = vpow.pop %v3642
  %v3644 = vmul.f32 %v3617, 1.442695
  %v3645 = vpow.pop %v3644
  %v3646 = vmul.f32 %v3618, 1.442695
  %v3647 = vpow.pop %v3646
  %v3648 = vmul.f32 %v3619, 1.442695
  %v3649 = vpow.pop %v3648
  %v3650 = vmul.f32 %v3620, 1.442695
  %v3651 = vpow.pop %v3650
  %v3652 = vmul.f32 %v3621, 1.442695
  %v3653 = vpow.pop %v3652
  %3670 = vset.pattern.permute.xlu0 0
  %3671 = vperm.xlu0 %3670, %v3623
  %v3672 = vpop.permute.xlu0 %3671
  %3673 = vset.pattern.permute.xlu0 0
  %3674 = vperm.xlu0 %3673, %v3625
  %v3675 = vpop.permute.xlu0 %3674
  %3676 = vset.pattern.permute.xlu0 0
  %3677 = vperm.xlu0 %3676, %v3627
  %v3678 = vpop.permute.xlu0 %3677
  %3679 = vset.pattern.permute.xlu0 0
  %3680 = vperm.xlu0 %3679, %v3629
  %v3681 = vpop.permute.xlu0 %3680
  %3682 = vset.pattern.permute.xlu0 0
  %3683 = vperm.xlu0 %3682, %v3631
  %v3684 = vpop.permute.xlu0 %3683
  %3685 = vset.pattern.permute.xlu0 0
  %3686 = vperm.xlu0 %3685, %v3633
  %v3687 = vpop.permute.xlu0 %3686
  %3688 = vset.pattern.permute.xlu0 0
  %3689 = vperm.xlu0 %3688, %v3635
  %v3690 = vpop.permute.xlu0 %3689
  %3691 = vset.pattern.permute.xlu0 0
  %3692 = vperm.xlu0 %3691, %v3637
  %v3693 = vpop.permute.xlu0 %3692
  %3694 = vset.pattern.permute.xlu0 0
  %3695 = vperm.xlu0 %3694, %v3639
  %v3696 = vpop.permute.xlu0 %3695
  %3697 = vset.pattern.permute.xlu0 0
  %3698 = vperm.xlu0 %3697, %v3641
  %v3699 = vpop.permute.xlu0 %3698
  %3700 = vset.pattern.permute.xlu0 0
  %3701 = vperm.xlu0 %3700, %v3643
  %v3702 = vpop.permute.xlu0 %3701
  %3703 = vset.pattern.permute.xlu0 0
  %3704 = vperm.xlu0 %3703, %v3645
  %v3705 = vpop.permute.xlu0 %3704
  %3706 = vset.pattern.permute.xlu0 0
  %3707 = vperm.xlu0 %3706, %v3647
  %v3708 = vpop.permute.xlu0 %3707
  %3709 = vset.pattern.permute.xlu0 0
  %3710 = vperm.xlu0 %3709, %v3649
  %v3711 = vpop.permute.xlu0 %3710
  %3712 = vset.pattern.permute.xlu0 0
  %3713 = vperm.xlu0 %3712, %v3651
  %v3714 = vpop.permute.xlu0 %3713
  %3715 = vset.pattern.permute.xlu0 0
  %3716 = vperm.xlu0 %3715, %v3653
  %v3717 = vpop.permute.xlu0 %3716
  %v3718 = vlaneseq
  %v3719 = vshrl.u32 %v3718, 7
  %v3720 = vsub.s32 %v40, %v3719
  %v3721 = vrot.slane %v3672, %v3720
  %v3722 = vlaneseq
  %v3723 = vshrl.u32 %v3722, 7
  %v3724 = vsub.s32 %v40, %v3723
  %v3725 = vrot.slane %v3675, %v3724
  %v3726 = vlaneseq
  %v3727 = vshrl.u32 %v3726, 7
  %v3728 = vsub.s32 %v40, %v3727
  %v3729 = vrot.slane %v3678, %v3728
  %v3730 = vlaneseq
  %v3731 = vshrl.u32 %v3730, 7
  %v3732 = vsub.s32 %v40, %v3731
  %v3733 = vrot.slane %v3681, %v3732
  %v3734 = vlaneseq
  %v3735 = vshrl.u32 %v3734, 7
  %v3736 = vsub.s32 %v40, %v3735
  %v3737 = vrot.slane %v3684, %v3736
  %v3738 = vlaneseq
  %v3739 = vshrl.u32 %v3738, 7
  %v3740 = vsub.s32 %v40, %v3739
  %v3741 = vrot.slane %v3687, %v3740
  %v3742 = vlaneseq
  %v3743 = vshrl.u32 %v3742, 7
  %v3744 = vsub.s32 %v40, %v3743
  %v3745 = vrot.slane %v3690, %v3744
  %v3746 = vlaneseq
  %v3747 = vshrl.u32 %v3746, 7
  %v3748 = vsub.s32 %v40, %v3747
  %v3749 = vrot.slane %v3693, %v3748
  %v3750 = vlaneseq
  %v3751 = vshrl.u32 %v3750, 7
  %v3752 = vsub.s32 %v40, %v3751
  %v3753 = vrot.slane %v3696, %v3752
  %v3754 = vlaneseq
  %v3755 = vshrl.u32 %v3754, 7
  %v3756 = vsub.s32 %v40, %v3755
  %v3757 = vrot.slane %v3699, %v3756
  %v3758 = vlaneseq
  %v3759 = vshrl.u32 %v3758, 7
  %v3760 = vsub.s32 %v40, %v3759
  %v3761 = vrot.slane %v3702, %v3760
  %v3762 = vlaneseq
  %v3763 = vshrl.u32 %v3762, 7
  %v3764 = vsub.s32 %v40, %v3763
  %v3765 = vrot.slane %v3705, %v3764
  %v3766 = vlaneseq
  %v3767 = vshrl.u32 %v3766, 7
  %v3768 = vsub.s32 %v40, %v3767
  %v3769 = vrot.slane %v3708, %v3768
  %v3770 = vlaneseq
  %v3771 = vshrl.u32 %v3770, 7
  %v3772 = vsub.s32 %v40, %v3771
  %v3773 = vrot.slane %v3711, %v3772
  %v3774 = vlaneseq
  %v3775 = vshrl.u32 %v3774, 7
  %v3776 = vsub.s32 %v40, %v3775
  %v3777 = vrot.slane %v3714, %v3776
  %v3778 = vlaneseq
  %v3779 = vshrl.u32 %v3778, 7
  %v3780 = vsub.s32 %v40, %v3779
  %v3781 = vrot.slane %v3717, %v3780
  %v3782 = vsel %vm3494, %v3725, %v3721
  %v3783 = vsel %vm3496, %v3729, %v3782
  %v3784 = vsel %vm3498, %v3733, %v3783
  %v3785 = vsel %vm3500, %v3737, %v3784
  %v3786 = vsel %vm3502, %v3741, %v3785
  %v3787 = vsel %vm3504, %v3745, %v3786
  %v3788 = vsel %vm3506, %v3749, %v3787
  %v3789 = vsel %vm3494, %v3757, %v3753
  %v3790 = vsel %vm3496, %v3761, %v3789
  %v3791 = vsel %vm3498, %v3765, %v3790
  %v3792 = vsel %vm3500, %v3769, %v3791
  %v3793 = vsel %vm3502, %v3773, %v3792
  %v3794 = vsel %vm3504, %v3777, %v3793
  %v3795 = vsel %vm3506, %v3781, %v3794
  %v3798 = vsel %vm3517, %v3788, 0.0
  %3799 = vadd.xlane.f32.xlu0 %v3798
  %v3800 = vpop.xlane.xlu0 %3799
  %v3801 = vsel %vm3517, %v3795, 0.0
  %3802 = vadd.xlane.f32.xlu0 %v3801
  %v3803 = vpop.xlane.xlu0 %3802
  %v3806 = vlaneseq
  %v3807 = vshrl.u32 %v3806, 7
  %v3808 = vsub.s32 0, %v3807
  %v3809 = vrot.slane %v3800, %v3808
  %v3810 = vlaneseq
  %v3811 = vshrl.u32 %v3810, 7
  %v3812 = vsub.s32 1, %v3811
  %v3813 = vrot.slane %v3800, %v3812
  %v3814 = vlaneseq
  %v3815 = vshrl.u32 %v3814, 7
  %v3816 = vsub.s32 2, %v3815
  %v3817 = vrot.slane %v3800, %v3816
  %v3818 = vlaneseq
  %v3819 = vshrl.u32 %v3818, 7
  %v3820 = vsub.s32 3, %v3819
  %v3821 = vrot.slane %v3800, %v3820
  %v3822 = vlaneseq
  %v3823 = vshrl.u32 %v3822, 7
  %v3824 = vsub.s32 4, %v3823
  %v3825 = vrot.slane %v3800, %v3824
  %v3826 = vlaneseq
  %v3827 = vshrl.u32 %v3826, 7
  %v3828 = vsub.s32 5, %v3827
  %v3829 = vrot.slane %v3800, %v3828
  %v3830 = vlaneseq
  %v3831 = vshrl.u32 %v3830, 7
  %v3832 = vsub.s32 6, %v3831
  %v3833 = vrot.slane %v3800, %v3832
  %v3834 = vlaneseq
  %v3835 = vshrl.u32 %v3834, 7
  %v3836 = vsub.s32 7, %v3835
  %v3837 = vrot.slane %v3800, %v3836
  %v3838 = vlaneseq
  %v3839 = vshrl.u32 %v3838, 7
  %v3840 = vsub.s32 0, %v3839
  %v3841 = vrot.slane %v3803, %v3840
  %v3842 = vlaneseq
  %v3843 = vshrl.u32 %v3842, 7
  %v3844 = vsub.s32 1, %v3843
  %v3845 = vrot.slane %v3803, %v3844
  %v3846 = vlaneseq
  %v3847 = vshrl.u32 %v3846, 7
  %v3848 = vsub.s32 2, %v3847
  %v3849 = vrot.slane %v3803, %v3848
  %v3850 = vlaneseq
  %v3851 = vshrl.u32 %v3850, 7
  %v3852 = vsub.s32 3, %v3851
  %v3853 = vrot.slane %v3803, %v3852
  %v3854 = vlaneseq
  %v3855 = vshrl.u32 %v3854, 7
  %v3856 = vsub.s32 4, %v3855
  %v3857 = vrot.slane %v3803, %v3856
  %v3858 = vlaneseq
  %v3859 = vshrl.u32 %v3858, 7
  %v3860 = vsub.s32 5, %v3859
  %v3861 = vrot.slane %v3803, %v3860
  %v3862 = vlaneseq
  %v3863 = vshrl.u32 %v3862, 7
  %v3864 = vsub.s32 6, %v3863
  %v3865 = vrot.slane %v3803, %v3864
  %v3866 = vlaneseq
  %v3867 = vshrl.u32 %v3866, 7
  %v3868 = vsub.s32 7, %v3867
  %v3869 = vrot.slane %v3803, %v3868
  %v3886 = vrcp.pop %v3809
  %v3887 = vmul.f32 %v3623, %v3886
  %v3888 = vrcp.pop %v3813
  %v3889 = vmul.f32 %v3625, %v3888
  %v3890 = vrcp.pop %v3817
  %v3891 = vmul.f32 %v3627, %v3890
  %v3892 = vrcp.pop %v3821
  %v3893 = vmul.f32 %v3629, %v3892
  %v3894 = vrcp.pop %v3825
  %v3895 = vmul.f32 %v3631, %v3894
  %v3896 = vrcp.pop %v3829
  %v3897 = vmul.f32 %v3633, %v3896
  %v3898 = vrcp.pop %v3833
  %v3899 = vmul.f32 %v3635, %v3898
  %v3900 = vrcp.pop %v3837
  %v3901 = vmul.f32 %v3637, %v3900
  %v3902 = vrcp.pop %v3841
  %v3903 = vmul.f32 %v3639, %v3902
  %v3904 = vrcp.pop %v3845
  %v3905 = vmul.f32 %v3641, %v3904
  %v3906 = vrcp.pop %v3849
  %v3907 = vmul.f32 %v3643, %v3906
  %v3908 = vrcp.pop %v3853
  %v3909 = vmul.f32 %v3645, %v3908
  %v3910 = vrcp.pop %v3857
  %v3911 = vmul.f32 %v3647, %v3910
  %v3912 = vrcp.pop %v3861
  %v3913 = vmul.f32 %v3649, %v3912
  %v3914 = vrcp.pop %v3865
  %v3915 = vmul.f32 %v3651, %v3914
  %v3916 = vrcp.pop %v3869
  %v3917 = vmul.f32 %v3653, %v3916
  %3919 = vset.pattern.permute.xlu0 0
  %3920 = vperm.xlu0 %3919, %v3887
  %v3921 = vpop.permute.xlu0 %3920
  %3924 = vset.pattern.permute.xlu0 0
  %3925 = vperm.xlu0 %3924, %v3889
  %v3926 = vpop.permute.xlu0 %3925
  %3929 = vset.pattern.permute.xlu0 0
  %3930 = vperm.xlu0 %3929, %v3891
  %v3931 = vpop.permute.xlu0 %3930
  %3934 = vset.pattern.permute.xlu0 0
  %3935 = vperm.xlu0 %3934, %v3893
  %v3936 = vpop.permute.xlu0 %3935
  %3939 = vset.pattern.permute.xlu0 0
  %3940 = vperm.xlu0 %3939, %v3895
  %v3941 = vpop.permute.xlu0 %3940
  %3944 = vset.pattern.permute.xlu0 0
  %3945 = vperm.xlu0 %3944, %v3897
  %v3946 = vpop.permute.xlu0 %3945
  %3949 = vset.pattern.permute.xlu0 0
  %3950 = vperm.xlu0 %3949, %v3899
  %v3951 = vpop.permute.xlu0 %3950
  %3954 = vset.pattern.permute.xlu0 0
  %3955 = vperm.xlu0 %3954, %v3901
  %v3956 = vpop.permute.xlu0 %3955
  %3959 = vset.pattern.permute.xlu0 0
  %3960 = vperm.xlu0 %3959, %v3903
  %v3961 = vpop.permute.xlu0 %3960
  %3964 = vset.pattern.permute.xlu0 0
  %3965 = vperm.xlu0 %3964, %v3905
  %v3966 = vpop.permute.xlu0 %3965
  %3969 = vset.pattern.permute.xlu0 0
  %3970 = vperm.xlu0 %3969, %v3907
  %v3971 = vpop.permute.xlu0 %3970
  %3974 = vset.pattern.permute.xlu0 0
  %3975 = vperm.xlu0 %3974, %v3909
  %v3976 = vpop.permute.xlu0 %3975
  %3979 = vset.pattern.permute.xlu0 0
  %3980 = vperm.xlu0 %3979, %v3911
  %v3981 = vpop.permute.xlu0 %3980
  %3984 = vset.pattern.permute.xlu0 0
  %3985 = vperm.xlu0 %3984, %v3913
  %v3986 = vpop.permute.xlu0 %3985
  %3989 = vset.pattern.permute.xlu0 0
  %3990 = vperm.xlu0 %3989, %v3915
  %v3991 = vpop.permute.xlu0 %3990
  %3994 = vset.pattern.permute.xlu0 0
  %3995 = vperm.xlu0 %3994, %v3917
  %v3996 = vpop.permute.xlu0 %3995
  %v3998 = vmul.f32 %v3327, %v3921
  %v3999 = vmul.f32 %v3328, %v3926
  %v4000 = vmul.f32 %v3329, %v3931
  %v4001 = vmul.f32 %v3330, %v3936
  %v4002 = vmul.f32 %v3331, %v3941
  %v4003 = vmul.f32 %v3332, %v3946
  %v4004 = vmul.f32 %v3333, %v3951
  %v4005 = vmul.f32 %v3334, %v3956
  %v4006 = vmul.f32 %v3335, %v3961
  %v4007 = vmul.f32 %v3336, %v3966
  %v4008 = vmul.f32 %v3337, %v3971
  %v4009 = vmul.f32 %v3338, %v3976
  %v4010 = vmul.f32 %v3339, %v3981
  %v4011 = vmul.f32 %v3340, %v3986
  %v4012 = vmul.f32 %v3341, %v3991
  %v4013 = vmul.f32 %v3342, %v3996
  %v4014 = vsel %vm430, %v3998, 0.0
  %v4015 = vrot.slane %v4014, 4
  %v4016 = vadd.f32 %v4014, %v4015
  %v4017 = vrot.slane %v4016, 2
  %v4018 = vadd.f32 %v4016, %v4017
  %v4019 = vrot.slane %v4018, 1
  %v4020 = vadd.f32 %v4018, %v4019
  %v4021 = vsel %vm430, %v3999, 0.0
  %v4022 = vrot.slane %v4021, 4
  %v4023 = vadd.f32 %v4021, %v4022
  %v4024 = vrot.slane %v4023, 2
  %v4025 = vadd.f32 %v4023, %v4024
  %v4026 = vrot.slane %v4025, 1
  %v4027 = vadd.f32 %v4025, %v4026
  %v4028 = vsel %vm430, %v4000, 0.0
  %v4029 = vrot.slane %v4028, 4
  %v4030 = vadd.f32 %v4028, %v4029
  %v4031 = vrot.slane %v4030, 2
  %v4032 = vadd.f32 %v4030, %v4031
  %v4033 = vrot.slane %v4032, 1
  %v4034 = vadd.f32 %v4032, %v4033
  %v4035 = vsel %vm430, %v4001, 0.0
  %v4036 = vrot.slane %v4035, 4
  %v4037 = vadd.f32 %v4035, %v4036
  %v4038 = vrot.slane %v4037, 2
  %v4039 = vadd.f32 %v4037, %v4038
  %v4040 = vrot.slane %v4039, 1
  %v4041 = vadd.f32 %v4039, %v4040
  %v4042 = vsel %vm430, %v4002, 0.0
  %v4043 = vrot.slane %v4042, 4
  %v4044 = vadd.f32 %v4042, %v4043
  %v4045 = vrot.slane %v4044, 2
  %v4046 = vadd.f32 %v4044, %v4045
  %v4047 = vrot.slane %v4046, 1
  %v4048 = vadd.f32 %v4046, %v4047
  %v4049 = vsel %vm430, %v4003, 0.0
  %v4050 = vrot.slane %v4049, 4
  %v4051 = vadd.f32 %v4049, %v4050
  %v4052 = vrot.slane %v4051, 2
  %v4053 = vadd.f32 %v4051, %v4052
  %v4054 = vrot.slane %v4053, 1
  %v4055 = vadd.f32 %v4053, %v4054
  %v4056 = vsel %vm430, %v4004, 0.0
  %v4057 = vrot.slane %v4056, 4
  %v4058 = vadd.f32 %v4056, %v4057
  %v4059 = vrot.slane %v4058, 2
  %v4060 = vadd.f32 %v4058, %v4059
  %v4061 = vrot.slane %v4060, 1
  %v4062 = vadd.f32 %v4060, %v4061
  %v4063 = vsel %vm430, %v4005, 0.0
  %v4064 = vrot.slane %v4063, 4
  %v4065 = vadd.f32 %v4063, %v4064
  %v4066 = vrot.slane %v4065, 2
  %v4067 = vadd.f32 %v4065, %v4066
  %v4068 = vrot.slane %v4067, 1
  %v4069 = vadd.f32 %v4067, %v4068
  %v4070 = vsel %vm430, %v4006, 0.0
  %v4071 = vrot.slane %v4070, 4
  %v4072 = vadd.f32 %v4070, %v4071
  %v4073 = vrot.slane %v4072, 2
  %v4074 = vadd.f32 %v4072, %v4073
  %v4075 = vrot.slane %v4074, 1
  %v4076 = vadd.f32 %v4074, %v4075
  %v4077 = vsel %vm430, %v4007, 0.0
  %v4078 = vrot.slane %v4077, 4
  %v4079 = vadd.f32 %v4077, %v4078
  %v4080 = vrot.slane %v4079, 2
  %v4081 = vadd.f32 %v4079, %v4080
  %v4082 = vrot.slane %v4081, 1
  %v4083 = vadd.f32 %v4081, %v4082
  %v4084 = vsel %vm430, %v4008, 0.0
  %v4085 = vrot.slane %v4084, 4
  %v4086 = vadd.f32 %v4084, %v4085
  %v4087 = vrot.slane %v4086, 2
  %v4088 = vadd.f32 %v4086, %v4087
  %v4089 = vrot.slane %v4088, 1
  %v4090 = vadd.f32 %v4088, %v4089
  %v4091 = vsel %vm430, %v4009, 0.0
  %v4092 = vrot.slane %v4091, 4
  %v4093 = vadd.f32 %v4091, %v4092
  %v4094 = vrot.slane %v4093, 2
  %v4095 = vadd.f32 %v4093, %v4094
  %v4096 = vrot.slane %v4095, 1
  %v4097 = vadd.f32 %v4095, %v4096
  %v4098 = vsel %vm430, %v4010, 0.0
  %v4099 = vrot.slane %v4098, 4
  %v4100 = vadd.f32 %v4098, %v4099
  %v4101 = vrot.slane %v4100, 2
  %v4102 = vadd.f32 %v4100, %v4101
  %v4103 = vrot.slane %v4102, 1
  %v4104 = vadd.f32 %v4102, %v4103
  %v4105 = vsel %vm430, %v4011, 0.0
  %v4106 = vrot.slane %v4105, 4
  %v4107 = vadd.f32 %v4105, %v4106
  %v4108 = vrot.slane %v4107, 2
  %v4109 = vadd.f32 %v4107, %v4108
  %v4110 = vrot.slane %v4109, 1
  %v4111 = vadd.f32 %v4109, %v4110
  %v4112 = vsel %vm430, %v4012, 0.0
  %v4113 = vrot.slane %v4112, 4
  %v4114 = vadd.f32 %v4112, %v4113
  %v4115 = vrot.slane %v4114, 2
  %v4116 = vadd.f32 %v4114, %v4115
  %v4117 = vrot.slane %v4116, 1
  %v4118 = vadd.f32 %v4116, %v4117
  %v4119 = vsel %vm430, %v4013, 0.0
  %v4120 = vrot.slane %v4119, 4
  %v4121 = vadd.f32 %v4119, %v4120
  %v4122 = vrot.slane %v4121, 2
  %v4123 = vadd.f32 %v4121, %v4122
  %v4124 = vrot.slane %v4123, 1
  %v4125 = vadd.f32 %v4123, %v4124
  %v4126 = vld [vmem:[%s4] sm:$0xff]
  %v4127 = vld [vmem:[%s4 + $0x8] sm:$0xff]
  %v4128 = vld [vmem:[%s4 + $0x10] sm:$0xff]
  %v4129 = vld [vmem:[%s4 + $0x18] sm:$0xff]
  %v4130 = vld [vmem:[%s5] sm:$0x1]
  %v4132 = vlaneseq
  %v4133 = vshrl.u32 %v4132, 7
  %v4134 = vsub.s32 0, %v4133
  %v4135 = vrot.slane %v4130, %v4134
  %v4153 = vsel %vm3494, %v4027, %v4020
  %v4154 = vsel %vm3496, %v4034, %v4153
  %v4155 = vsel %vm3498, %v4041, %v4154
  %v4156 = vsel %vm3500, %v4048, %v4155
  %v4157 = vsel %vm3502, %v4055, %v4156
  %v4158 = vsel %vm3504, %v4062, %v4157
  %v4159 = vsel %vm3506, %v4069, %v4158
  %v4160 = vsel %vm3494, %v4083, %v4076
  %v4161 = vsel %vm3496, %v4090, %v4160
  %v4162 = vsel %vm3498, %v4097, %v4161
  %v4163 = vsel %vm3500, %v4104, %v4162
  %v4164 = vsel %vm3502, %v4111, %v4163
  %v4165 = vsel %vm3504, %v4118, %v4164
  %v4166 = vsel %vm3506, %v4125, %v4165
  %v4167 = vsel %vm430, %v4159, 0
  %v4169 = vsel %vm430, %v4166, 0
  %4171 = vmatprep.subr.mxu0 0.0
  %v4172 = vand.u32 %v4126, 4294901760
  %4173 = vmatpush1.msra.mxu0 %v4172
  %4174 = vmatprep.subr.mxu0 0.0
  %v4175 = vand.u32 %v4127, 4294901760
  %4176 = vmatpush1.msra.mxu0 %v4175
  %4177 = vmatprep.subr.mxu0 0.0
  %v4178 = vand.u32 %v4128, 4294901760
  %4179 = vmatpush1.msra.mxu0 %v4178
  %4180 = vmatprep.subr.mxu0 0.0
  %v4181 = vand.u32 %v4129, 4294901760
  %4182 = vmatpush1.msra.mxu0 %v4181
  %4183 = vmatprep.subr.mxu0 0.0
  %4184 = vmatpush1.msra.mxu0 0.0
  %4185 = vmatprep.subr.mxu0 0.0
  %4186 = vmatpush1.msra.mxu0 0.0
  %4187 = vmatprep.subr.mxu0 0.0
  %4188 = vmatpush1.msra.mxu0 0.0
  %4189 = vmatprep.subr.mxu0 0.0
  %4190 = vmatpush1.msra.mxu0 0.0
  %4191 = vmatprep.subr.mxu0 0.0
  %4192 = vmatpush1.msra.mxu0 0.0
  %4193 = vmatprep.subr.mxu0 0.0
  %4194 = vmatpush1.msra.mxu0 0.0
  %4195 = vmatprep.subr.mxu0 0.0
  %4196 = vmatpush1.msra.mxu0 0.0
  %4197 = vmatprep.subr.mxu0 0.0
  %4198 = vmatpush1.msra.mxu0 0.0
  %4199 = vmatprep.subr.mxu0 0.0
  %4200 = vmatpush1.msra.mxu0 0.0
  %4201 = vmatprep.subr.mxu0 0.0
  %4202 = vmatpush1.msra.mxu0 0.0
  %4203 = vmatprep.subr.mxu0 0.0
  %4204 = vmatpush1.msra.mxu0 0.0
  %4205 = vmatprep.subr.mxu0 0.0
  %4206 = vmatpush1.msra.mxu0 0.0
  %4207 = vmatprep.subr.mxu0 0.0
  %4208 = vmatpush1.msra.mxu0 0.0
  %4209 = vmatprep.subr.mxu0 0.0
  %4210 = vmatpush1.msra.mxu0 0.0
  %4211 = vmatprep.subr.mxu0 0.0
  %4212 = vmatpush1.msra.mxu0 0.0
  %4213 = vmatprep.subr.mxu0 0.0
  %4214 = vmatpush1.msra.mxu0 0.0
  %4215 = vmatprep.subr.mxu0 0.0
  %4216 = vmatpush1.msra.mxu0 0.0
  %4217 = vmatprep.subr.mxu0 0.0
  %4218 = vmatpush1.msra.mxu0 0.0
  %4219 = vmatprep.subr.mxu0 0.0
  %4220 = vmatpush1.msra.mxu0 0.0
  %4221 = vmatprep.subr.mxu0 0.0
  %4222 = vmatpush1.msra.mxu0 0.0
  %4223 = vmatprep.subr.mxu0 0.0
  %4224 = vmatpush1.msra.mxu0 0.0
  %4225 = vmatprep.subr.mxu0 0.0
  %4226 = vmatpush1.msra.mxu0 0.0
  %4227 = vmatprep.subr.mxu0 0.0
  %4228 = vmatpush1.msra.mxu0 0.0
  %4229 = vmatprep.subr.mxu0 0.0
  %4230 = vmatpush1.msra.mxu0 0.0
  %4231 = vmatprep.subr.mxu0 0.0
  %4232 = vmatpush1.msra.mxu0 0.0
  %4233 = vmatprep.subr.mxu0 0.0
  %4234 = vmatpush1.msra.mxu0 0.0
  %4235 = vmatprep.subr.mxu0 0.0
  %4236 = vmatpush1.msra.mxu0 0.0
  %4237 = vmatprep.subr.mxu0 0.0
  %4238 = vmatpush1.msra.mxu0 0.0
  %4239 = vmatprep.mubr.f32.mxu0 0.0
  %v4240 = vand.u32 %v4167, 4294901760
  %v4241 = vsub.f32 %v4167, %v4240
  %v4242 = vand.u32 %v4241, 4294901760
  %v4243 = vsub.f32 %v4241, %v4242
  %v4244 = vand.u32 %v4243, 4294901760
  %4245 = vmatmul.mubr.f32.gmra.mrb[0].mxu0 %v4244
  %v4246 = vpop.f32.mrb[0].mxu0
  %v4247 = vadd.f32 %v4135, %v4246
  %v4248 = vpop.f32.mrb[0].mxu0
  %4249 = vmatprep.mubr.f32.mxu0 0.0
  %v4250 = vand.u32 %v4169, 4294901760
  %v4251 = vsub.f32 %v4169, %v4250
  %v4252 = vand.u32 %v4251, 4294901760
  %v4253 = vsub.f32 %v4251, %v4252
  %v4254 = vand.u32 %v4253, 4294901760
  %4255 = vmatmul.mubr.f32.gmra.mrb[0].mxu0 %v4254
  %v4256 = vpop.f32.mrb[0].mxu0
  %v4257 = vadd.f32 %v4135, %v4256
  %v4258 = vpop.f32.mrb[0].mxu0
  %4259 = vdwg.mxu0
  %4260 = vmatprep.subr.mxu0 0.0
  %v4261 = vand.u32 %v4126, 4294901760
  %v4262 = vsub.f32 %v4126, %v4261
  %v4263 = vand.u32 %v4262, 4294901760
  %v4264 = vsub.f32 %v4262, %v4263
  %v4265 = vand.u32 %v4264, 4294901760
  %4266 = vmatpush1.msra.mxu0 %v4265
  %4267 = vmatprep.subr.mxu0 0.0
  %v4268 = vand.u32 %v4127, 4294901760
  %v4269 = vsub.f32 %v4127, %v4268
  %v4270 = vand.u32 %v4269, 4294901760
  %v4271 = vsub.f32 %v4269, %v4270
  %v4272 = vand.u32 %v4271, 4294901760
  %4273 = vmatpush1.msra.mxu0 %v4272
  %4274 = vmatprep.subr.mxu0 0.0
  %v4275 = vand.u32 %v4128, 4294901760
  %v4276 = vsub.f32 %v4128, %v4275
  %v4277 = vand.u32 %v4276, 4294901760
  %v4278 = vsub.f32 %v4276, %v4277
  %v4279 = vand.u32 %v4278, 4294901760
  %4280 = vmatpush1.msra.mxu0 %v4279
  %4281 = vmatprep.subr.mxu0 0.0
  %v4282 = vand.u32 %v4129, 4294901760
  %v4283 = vsub.f32 %v4129, %v4282
  %v4284 = vand.u32 %v4283, 4294901760
  %v4285 = vsub.f32 %v4283, %v4284
  %v4286 = vand.u32 %v4285, 4294901760
  %4287 = vmatpush1.msra.mxu0 %v4286
  %4288 = vmatprep.subr.mxu0 0.0
  %4289 = vmatpush1.msra.mxu0 0.0
  %4290 = vmatprep.subr.mxu0 0.0
  %4291 = vmatpush1.msra.mxu0 0.0
  %4292 = vmatprep.subr.mxu0 0.0
  %4293 = vmatpush1.msra.mxu0 0.0
  %4294 = vmatprep.subr.mxu0 0.0
  %4295 = vmatpush1.msra.mxu0 0.0
  %4296 = vmatprep.subr.mxu0 0.0
  %4297 = vmatpush1.msra.mxu0 0.0
  %4298 = vmatprep.subr.mxu0 0.0
  %4299 = vmatpush1.msra.mxu0 0.0
  %4300 = vmatprep.subr.mxu0 0.0
  %4301 = vmatpush1.msra.mxu0 0.0
  %4302 = vmatprep.subr.mxu0 0.0
  %4303 = vmatpush1.msra.mxu0 0.0
  %4304 = vmatprep.subr.mxu0 0.0
  %4305 = vmatpush1.msra.mxu0 0.0
  %4306 = vmatprep.subr.mxu0 0.0
  %4307 = vmatpush1.msra.mxu0 0.0
  %4308 = vmatprep.subr.mxu0 0.0
  %4309 = vmatpush1.msra.mxu0 0.0
  %4310 = vmatprep.subr.mxu0 0.0
  %4311 = vmatpush1.msra.mxu0 0.0
  %4312 = vmatprep.subr.mxu0 0.0
  %4313 = vmatpush1.msra.mxu0 0.0
  %4314 = vmatprep.subr.mxu0 0.0
  %4315 = vmatpush1.msra.mxu0 0.0
  %4316 = vmatprep.subr.mxu0 0.0
  %4317 = vmatpush1.msra.mxu0 0.0
  %4318 = vmatprep.subr.mxu0 0.0
  %4319 = vmatpush1.msra.mxu0 0.0
  %4320 = vmatprep.subr.mxu0 0.0
  %4321 = vmatpush1.msra.mxu0 0.0
  %4322 = vmatprep.subr.mxu0 0.0
  %4323 = vmatpush1.msra.mxu0 0.0
  %4324 = vmatprep.subr.mxu0 0.0
  %4325 = vmatpush1.msra.mxu0 0.0
  %4326 = vmatprep.subr.mxu0 0.0
  %4327 = vmatpush1.msra.mxu0 0.0
  %4328 = vmatprep.subr.mxu0 0.0
  %4329 = vmatpush1.msra.mxu0 0.0
  %4330 = vmatprep.subr.mxu0 0.0
  %4331 = vmatpush1.msra.mxu0 0.0
  %4332 = vmatprep.subr.mxu0 0.0
  %4333 = vmatpush1.msra.mxu0 0.0
  %4334 = vmatprep.subr.mxu0 0.0
  %4335 = vmatpush1.msra.mxu0 0.0
  %4336 = vmatprep.subr.mxu0 0.0
  %4337 = vmatpush1.msra.mxu0 0.0
  %4338 = vmatprep.subr.mxu0 0.0
  %4339 = vmatpush1.msra.mxu0 0.0
  %4340 = vmatprep.subr.mxu0 0.0
  %4341 = vmatpush1.msra.mxu0 0.0
  %4342 = vmatprep.subr.mxu0 0.0
  %4343 = vmatpush1.msra.mxu0 0.0
  %4344 = vmatprep.mubr.f32.mxu0 0.0
  %v4345 = vand.u32 %v4167, 4294901760
  %4346 = vmatmul.mubr.f32.gmra.mrb[0].mxu0 %v4345
  %v4347 = vpop.f32.mrb[0].mxu0
  %v4348 = vadd.f32 %v4247, %v4347
  %v4349 = vpop.f32.mrb[0].mxu0
  %4350 = vmatprep.mubr.f32.mxu0 0.0
  %v4351 = vand.u32 %v4169, 4294901760
  %4352 = vmatmul.mubr.f32.gmra.mrb[0].mxu0 %v4351
  %v4353 = vpop.f32.mrb[0].mxu0
  %v4354 = vadd.f32 %v4257, %v4353
  %v4355 = vpop.f32.mrb[0].mxu0
  %4356 = vdwg.mxu0
  %4357 = vmatprep.subr.mxu0 0.0
  %v4358 = vand.u32 %v4126, 4294901760
  %v4359 = vsub.f32 %v4126, %v4358
  %4360 = vmatpush1.msra.mxu0 %v4359
  %4361 = vmatprep.subr.mxu0 0.0
  %v4362 = vand.u32 %v4127, 4294901760
  %v4363 = vsub.f32 %v4127, %v4362
  %4364 = vmatpush1.msra.mxu0 %v4363
  %4365 = vmatprep.subr.mxu0 0.0
  %v4366 = vand.u32 %v4128, 4294901760
  %v4367 = vsub.f32 %v4128, %v4366
  %4368 = vmatpush1.msra.mxu0 %v4367
  %4369 = vmatprep.subr.mxu0 0.0
  %v4370 = vand.u32 %v4129, 4294901760
  %v4371 = vsub.f32 %v4129, %v4370
  %4372 = vmatpush1.msra.mxu0 %v4371
  %4373 = vmatprep.subr.mxu0 0.0
  %4374 = vmatpush1.msra.mxu0 0.0
  %4375 = vmatprep.subr.mxu0 0.0
  %4376 = vmatpush1.msra.mxu0 0.0
  %4377 = vmatprep.subr.mxu0 0.0
  %4378 = vmatpush1.msra.mxu0 0.0
  %4379 = vmatprep.subr.mxu0 0.0
  %4380 = vmatpush1.msra.mxu0 0.0
  %4381 = vmatprep.subr.mxu0 0.0
  %4382 = vmatpush1.msra.mxu0 0.0
  %4383 = vmatprep.subr.mxu0 0.0
  %4384 = vmatpush1.msra.mxu0 0.0
  %4385 = vmatprep.subr.mxu0 0.0
  %4386 = vmatpush1.msra.mxu0 0.0
  %4387 = vmatprep.subr.mxu0 0.0
  %4388 = vmatpush1.msra.mxu0 0.0
  %4389 = vmatprep.subr.mxu0 0.0
  %4390 = vmatpush1.msra.mxu0 0.0
  %4391 = vmatprep.subr.mxu0 0.0
  %4392 = vmatpush1.msra.mxu0 0.0
  %4393 = vmatprep.subr.mxu0 0.0
  %4394 = vmatpush1.msra.mxu0 0.0
  %4395 = vmatprep.subr.mxu0 0.0
  %4396 = vmatpush1.msra.mxu0 0.0
  %4397 = vmatprep.subr.mxu0 0.0
  %4398 = vmatpush1.msra.mxu0 0.0
  %4399 = vmatprep.subr.mxu0 0.0
  %4400 = vmatpush1.msra.mxu0 0.0
  %4401 = vmatprep.subr.mxu0 0.0
  %4402 = vmatpush1.msra.mxu0 0.0
  %4403 = vmatprep.subr.mxu0 0.0
  %4404 = vmatpush1.msra.mxu0 0.0
  %4405 = vmatprep.subr.mxu0 0.0
  %4406 = vmatpush1.msra.mxu0 0.0
  %4407 = vmatprep.subr.mxu0 0.0
  %4408 = vmatpush1.msra.mxu0 0.0
  %4409 = vmatprep.subr.mxu0 0.0
  %4410 = vmatpush1.msra.mxu0 0.0
  %4411 = vmatprep.subr.mxu0 0.0
  %4412 = vmatpush1.msra.mxu0 0.0
  %4413 = vmatprep.subr.mxu0 0.0
  %4414 = vmatpush1.msra.mxu0 0.0
  %4415 = vmatprep.subr.mxu0 0.0
  %4416 = vmatpush1.msra.mxu0 0.0
  %4417 = vmatprep.subr.mxu0 0.0
  %4418 = vmatpush1.msra.mxu0 0.0
  %4419 = vmatprep.subr.mxu0 0.0
  %4420 = vmatpush1.msra.mxu0 0.0
  %4421 = vmatprep.subr.mxu0 0.0
  %4422 = vmatpush1.msra.mxu0 0.0
  %4423 = vmatprep.subr.mxu0 0.0
  %4424 = vmatpush1.msra.mxu0 0.0
  %4425 = vmatprep.subr.mxu0 0.0
  %4426 = vmatpush1.msra.mxu0 0.0
  %4427 = vmatprep.subr.mxu0 0.0
  %4428 = vmatpush1.msra.mxu0 0.0
  %4429 = vmatprep.mubr.f32.mxu0 0.0
  %v4430 = vand.u32 %v4167, 4294901760
  %v4431 = vsub.f32 %v4167, %v4430
  %4432 = vmatmul.mubr.f32.gmra.mrb[0].mxu0 %v4431
  %v4433 = vpop.f32.mrb[0].mxu0
  %v4434 = vadd.f32 %v4348, %v4433
  %v4435 = vpop.f32.mrb[0].mxu0
  %4436 = vmatprep.mubr.f32.mxu0 0.0
  %v4437 = vand.u32 %v4169, 4294901760
  %v4438 = vsub.f32 %v4169, %v4437
  %4439 = vmatmul.mubr.f32.gmra.mrb[0].mxu0 %v4438
  %v4440 = vpop.f32.mrb[0].mxu0
  %v4441 = vadd.f32 %v4354, %v4440
  %v4442 = vpop.f32.mrb[0].mxu0
  %4443 = vdwg.mxu0
  %4444 = vmatprep.subr.mxu0 0.0
  %v4445 = vand.u32 %v4126, 4294901760
  %4446 = vmatpush1.msra.mxu0 %v4445
  %4447 = vmatprep.subr.mxu0 0.0
  %v4448 = vand.u32 %v4127, 4294901760
  %4449 = vmatpush1.msra.mxu0 %v4448
  %4450 = vmatprep.subr.mxu0 0.0
  %v4451 = vand.u32 %v4128, 4294901760
  %4452 = vmatpush1.msra.mxu0 %v4451
  %4453 = vmatprep.subr.mxu0 0.0
  %v4454 = vand.u32 %v4129, 4294901760
  %4455 = vmatpush1.msra.mxu0 %v4454
  %4456 = vmatprep.subr.mxu0 0.0
  %4457 = vmatpush1.msra.mxu0 0.0
  %4458 = vmatprep.subr.mxu0 0.0
  %4459 = vmatpush1.msra.mxu0 0.0
  %4460 = vmatprep.subr.mxu0 0.0
  %4461 = vmatpush1.msra.mxu0 0.0
  %4462 = vmatprep.subr.mxu0 0.0
  %4463 = vmatpush1.msra.mxu0 0.0
  %4464 = vmatprep.subr.mxu0 0.0
  %4465 = vmatpush1.msra.mxu0 0.0
  %4466 = vmatprep.subr.mxu0 0.0
  %4467 = vmatpush1.msra.mxu0 0.0
  %4468 = vmatprep.subr.mxu0 0.0
  %4469 = vmatpush1.msra.mxu0 0.0
  %4470 = vmatprep.subr.mxu0 0.0
  %4471 = vmatpush1.msra.mxu0 0.0
  %4472 = vmatprep.subr.mxu0 0.0
  %4473 = vmatpush1.msra.mxu0 0.0
  %4474 = vmatprep.subr.mxu0 0.0
  %4475 = vmatpush1.msra.mxu0 0.0
  %4476 = vmatprep.subr.mxu0 0.0
  %4477 = vmatpush1.msra.mxu0 0.0
  %4478 = vmatprep.subr.mxu0 0.0
  %4479 = vmatpush1.msra.mxu0 0.0
  %4480 = vmatprep.subr.mxu0 0.0
  %4481 = vmatpush1.msra.mxu0 0.0
  %4482 = vmatprep.subr.mxu0 0.0
  %4483 = vmatpush1.msra.mxu0 0.0
  %4484 = vmatprep.subr.mxu0 0.0
  %4485 = vmatpush1.msra.mxu0 0.0
  %4486 = vmatprep.subr.mxu0 0.0
  %4487 = vmatpush1.msra.mxu0 0.0
  %4488 = vmatprep.subr.mxu0 0.0
  %4489 = vmatpush1.msra.mxu0 0.0
  %4490 = vmatprep.subr.mxu0 0.0
  %4491 = vmatpush1.msra.mxu0 0.0
  %4492 = vmatprep.subr.mxu0 0.0
  %4493 = vmatpush1.msra.mxu0 0.0
  %4494 = vmatprep.subr.mxu0 0.0
  %4495 = vmatpush1.msra.mxu0 0.0
  %4496 = vmatprep.subr.mxu0 0.0
  %4497 = vmatpush1.msra.mxu0 0.0
  %4498 = vmatprep.subr.mxu0 0.0
  %4499 = vmatpush1.msra.mxu0 0.0
  %4500 = vmatprep.subr.mxu0 0.0
  %4501 = vmatpush1.msra.mxu0 0.0
  %4502 = vmatprep.subr.mxu0 0.0
  %4503 = vmatpush1.msra.mxu0 0.0
  %4504 = vmatprep.subr.mxu0 0.0
  %4505 = vmatpush1.msra.mxu0 0.0
  %4506 = vmatprep.subr.mxu0 0.0
  %4507 = vmatpush1.msra.mxu0 0.0
  %4508 = vmatprep.subr.mxu0 0.0
  %4509 = vmatpush1.msra.mxu0 0.0
  %4510 = vmatprep.subr.mxu0 0.0
  %4511 = vmatpush1.msra.mxu0 0.0
  %4512 = vmatprep.mubr.f32.mxu0 0.0
  %v4513 = vand.u32 %v4167, 4294901760
  %v4514 = vsub.f32 %v4167, %v4513
  %v4515 = vand.u32 %v4514, 4294901760
  %4516 = vmatmul.mubr.f32.gmra.mrb[0].mxu0 %v4515
  %v4517 = vpop.f32.mrb[0].mxu0
  %v4518 = vadd.f32 %v4434, %v4517
  %v4519 = vpop.f32.mrb[0].mxu0
  %4520 = vmatprep.mubr.f32.mxu0 0.0
  %v4521 = vand.u32 %v4169, 4294901760
  %v4522 = vsub.f32 %v4169, %v4521
  %v4523 = vand.u32 %v4522, 4294901760
  %4524 = vmatmul.mubr.f32.gmra.mrb[0].mxu0 %v4523
  %v4525 = vpop.f32.mrb[0].mxu0
  %v4526 = vadd.f32 %v4441, %v4525
  %v4527 = vpop.f32.mrb[0].mxu0
  %4528 = vdwg.mxu0
  %4529 = vmatprep.subr.mxu0 0.0
  %v4530 = vand.u32 %v4126, 4294901760
  %v4531 = vsub.f32 %v4126, %v4530
  %v4532 = vand.u32 %v4531, 4294901760
  %4533 = vmatpush1.msra.mxu0 %v4532
  %4534 = vmatprep.subr.mxu0 0.0
  %v4535 = vand.u32 %v4127, 4294901760
  %v4536 = vsub.f32 %v4127, %v4535
  %v4537 = vand.u32 %v4536, 4294901760
  %4538 = vmatpush1.msra.mxu0 %v4537
  %4539 = vmatprep.subr.mxu0 0.0
  %v4540 = vand.u32 %v4128, 4294901760
  %v4541 = vsub.f32 %v4128, %v4540
  %v4542 = vand.u32 %v4541, 4294901760
  %4543 = vmatpush1.msra.mxu0 %v4542
  %4544 = vmatprep.subr.mxu0 0.0
  %v4545 = vand.u32 %v4129, 4294901760
  %v4546 = vsub.f32 %v4129, %v4545
  %v4547 = vand.u32 %v4546, 4294901760
  %4548 = vmatpush1.msra.mxu0 %v4547
  %4549 = vmatprep.subr.mxu0 0.0
  %4550 = vmatpush1.msra.mxu0 0.0
  %4551 = vmatprep.subr.mxu0 0.0
  %4552 = vmatpush1.msra.mxu0 0.0
  %4553 = vmatprep.subr.mxu0 0.0
  %4554 = vmatpush1.msra.mxu0 0.0
  %4555 = vmatprep.subr.mxu0 0.0
  %4556 = vmatpush1.msra.mxu0 0.0
  %4557 = vmatprep.subr.mxu0 0.0
  %4558 = vmatpush1.msra.mxu0 0.0
  %4559 = vmatprep.subr.mxu0 0.0
  %4560 = vmatpush1.msra.mxu0 0.0
  %4561 = vmatprep.subr.mxu0 0.0
  %4562 = vmatpush1.msra.mxu0 0.0
  %4563 = vmatprep.subr.mxu0 0.0
  %4564 = vmatpush1.msra.mxu0 0.0
  %4565 = vmatprep.subr.mxu0 0.0
  %4566 = vmatpush1.msra.mxu0 0.0
  %4567 = vmatprep.subr.mxu0 0.0
  %4568 = vmatpush1.msra.mxu0 0.0
  %4569 = vmatprep.subr.mxu0 0.0
  %4570 = vmatpush1.msra.mxu0 0.0
  %4571 = vmatprep.subr.mxu0 0.0
  %4572 = vmatpush1.msra.mxu0 0.0
  %4573 = vmatprep.subr.mxu0 0.0
  %4574 = vmatpush1.msra.mxu0 0.0
  %4575 = vmatprep.subr.mxu0 0.0
  %4576 = vmatpush1.msra.mxu0 0.0
  %4577 = vmatprep.subr.mxu0 0.0
  %4578 = vmatpush1.msra.mxu0 0.0
  %4579 = vmatprep.subr.mxu0 0.0
  %4580 = vmatpush1.msra.mxu0 0.0
  %4581 = vmatprep.subr.mxu0 0.0
  %4582 = vmatpush1.msra.mxu0 0.0
  %4583 = vmatprep.subr.mxu0 0.0
  %4584 = vmatpush1.msra.mxu0 0.0
  %4585 = vmatprep.subr.mxu0 0.0
  %4586 = vmatpush1.msra.mxu0 0.0
  %4587 = vmatprep.subr.mxu0 0.0
  %4588 = vmatpush1.msra.mxu0 0.0
  %4589 = vmatprep.subr.mxu0 0.0
  %4590 = vmatpush1.msra.mxu0 0.0
  %4591 = vmatprep.subr.mxu0 0.0
  %4592 = vmatpush1.msra.mxu0 0.0
  %4593 = vmatprep.subr.mxu0 0.0
  %4594 = vmatpush1.msra.mxu0 0.0
  %4595 = vmatprep.subr.mxu0 0.0
  %4596 = vmatpush1.msra.mxu0 0.0
  %4597 = vmatprep.subr.mxu0 0.0
  %4598 = vmatpush1.msra.mxu0 0.0
  %4599 = vmatprep.subr.mxu0 0.0
  %4600 = vmatpush1.msra.mxu0 0.0
  %4601 = vmatprep.subr.mxu0 0.0
  %4602 = vmatpush1.msra.mxu0 0.0
  %4603 = vmatprep.subr.mxu0 0.0
  %4604 = vmatpush1.msra.mxu0 0.0
  %4605 = vmatprep.mubr.f32.mxu0 0.0
  %v4606 = vand.u32 %v4167, 4294901760
  %4607 = vmatmul.mubr.f32.gmra.mrb[0].mxu0 %v4606
  %v4608 = vpop.f32.mrb[0].mxu0
  %v4609 = vadd.f32 %v4518, %v4608
  %v4610 = vpop.f32.mrb[0].mxu0
  %4611 = vmatprep.mubr.f32.mxu0 0.0
  %v4612 = vand.u32 %v4169, 4294901760
  %4613 = vmatmul.mubr.f32.gmra.mrb[0].mxu0 %v4612
  %v4614 = vpop.f32.mrb[0].mxu0
  %v4615 = vadd.f32 %v4526, %v4614
  %v4616 = vpop.f32.mrb[0].mxu0
  %4617 = vdwg.mxu0
  %4618 = vmatprep.subr.mxu0 0.0
  %v4619 = vand.u32 %v4126, 4294901760
  %4620 = vmatpush1.msra.mxu0 %v4619
  %4621 = vmatprep.subr.mxu0 0.0
  %v4622 = vand.u32 %v4127, 4294901760
  %4623 = vmatpush1.msra.mxu0 %v4622
  %4624 = vmatprep.subr.mxu0 0.0
  %v4625 = vand.u32 %v4128, 4294901760
  %4626 = vmatpush1.msra.mxu0 %v4625
  %4627 = vmatprep.subr.mxu0 0.0
  %v4628 = vand.u32 %v4129, 4294901760
  %4629 = vmatpush1.msra.mxu0 %v4628
  %4630 = vmatprep.subr.mxu0 0.0
  %4631 = vmatpush1.msra.mxu0 0.0
  %4632 = vmatprep.subr.mxu0 0.0
  %4633 = vmatpush1.msra.mxu0 0.0
  %4634 = vmatprep.subr.mxu0 0.0
  %4635 = vmatpush1.msra.mxu0 0.0
  %4636 = vmatprep.subr.mxu0 0.0
  %4637 = vmatpush1.msra.mxu0 0.0
  %4638 = vmatprep.subr.mxu0 0.0
  %4639 = vmatpush1.msra.mxu0 0.0
  %4640 = vmatprep.subr.mxu0 0.0
  %4641 = vmatpush1.msra.mxu0 0.0
  %4642 = vmatprep.subr.mxu0 0.0
  %4643 = vmatpush1.msra.mxu0 0.0
  %4644 = vmatprep.subr.mxu0 0.0
  %4645 = vmatpush1.msra.mxu0 0.0
  %4646 = vmatprep.subr.mxu0 0.0
  %4647 = vmatpush1.msra.mxu0 0.0
  %4648 = vmatprep.subr.mxu0 0.0
  %4649 = vmatpush1.msra.mxu0 0.0
  %4650 = vmatprep.subr.mxu0 0.0
  %4651 = vmatpush1.msra.mxu0 0.0
  %4652 = vmatprep.subr.mxu0 0.0
  %4653 = vmatpush1.msra.mxu0 0.0
  %4654 = vmatprep.subr.mxu0 0.0
  %4655 = vmatpush1.msra.mxu0 0.0
  %4656 = vmatprep.subr.mxu0 0.0
  %4657 = vmatpush1.msra.mxu0 0.0
  %4658 = vmatprep.subr.mxu0 0.0
  %4659 = vmatpush1.msra.mxu0 0.0
  %4660 = vmatprep.subr.mxu0 0.0
  %4661 = vmatpush1.msra.mxu0 0.0
  %4662 = vmatprep.subr.mxu0 0.0
  %4663 = vmatpush1.msra.mxu0 0.0
  %4664 = vmatprep.subr.mxu0 0.0
  %4665 = vmatpush1.msra.mxu0 0.0
  %4666 = vmatprep.subr.mxu0 0.0
  %4667 = vmatpush1.msra.mxu0 0.0
  %4668 = vmatprep.subr.mxu0 0.0
  %4669 = vmatpush1.msra.mxu0 0.0
  %4670 = vmatprep.subr.mxu0 0.0
  %4671 = vmatpush1.msra.mxu0 0.0
  %4672 = vmatprep.subr.mxu0 0.0
  %4673 = vmatpush1.msra.mxu0 0.0
  %4674 = vmatprep.subr.mxu0 0.0
  %4675 = vmatpush1.msra.mxu0 0.0
  %4676 = vmatprep.subr.mxu0 0.0
  %4677 = vmatpush1.msra.mxu0 0.0
  %4678 = vmatprep.subr.mxu0 0.0
  %4679 = vmatpush1.msra.mxu0 0.0
  %4680 = vmatprep.subr.mxu0 0.0
  %4681 = vmatpush1.msra.mxu0 0.0
  %4682 = vmatprep.subr.mxu0 0.0
  %4683 = vmatpush1.msra.mxu0 0.0
  %4684 = vmatprep.subr.mxu0 0.0
  %4685 = vmatpush1.msra.mxu0 0.0
  %4686 = vmatprep.mubr.f32.mxu0 0.0
  %v4687 = vand.u32 %v4167, 4294901760
  %4688 = vmatmul.mubr.f32.gmra.mrb[0].mxu0 %v4687
  %v4689 = vpop.f32.mrb[0].mxu0
  %v4690 = vadd.f32 %v4609, %v4689
  %v4691 = vpop.f32.mrb[0].mxu0
  %4692 = vmatprep.mubr.f32.mxu0 0.0
  %v4693 = vand.u32 %v4169, 4294901760
  %4694 = vmatmul.mubr.f32.gmra.mrb[0].mxu0 %v4693
  %v4695 = vpop.f32.mrb[0].mxu0
  %v4696 = vadd.f32 %v4615, %v4695
  %v4697 = vpop.f32.mrb[0].mxu0
  %4698 = vdwg.mxu0
  %4699 = vmax.xlane.f32.xlu0 %v4690
  %v4700 = vpop.xlane.xlu0 %4699
  %4701 = vmax.xlane.f32.xlu0 %v4696
  %v4702 = vpop.xlane.xlu0 %4701
  %v4703 = vsub.f32 %v4690, %v4700
  %v4704 = vsub.f32 %v4696, %v4702
  %v4705 = vmul.f32 %v4703, 1.442695
  %v4706 = vpow.pop %v4705
  %v4707 = vmul.f32 %v4704, 1.442695
  %v4708 = vpow.pop %v4707
  %4709 = vadd.xlane.f32.xlu0 %v4706
  %v4710 = vpop.xlane.xlu0 %4709
  %4711 = vadd.xlane.f32.xlu0 %v4708
  %v4712 = vpop.xlane.xlu0 %4711
  %v4713 = vrcp.pop %v4710
  %v4714 = vmul.f32 %v4706, %v4713
  %v4715 = vrcp.pop %v4712
  %v4716 = vmul.f32 %v4708, %v4715
  %4717 = vst [vmem:[%s6] sm:$0xff] %v4714
  %4718 = vst [vmem:[%s6 + $0x8] sm:$0xff] %v4716
  // Predicated region
  $region26: #{code2vec_forward.1} parent=0 // pred_check
    _
  $region27: #{code2vec_forward.1} parent=0 // pred_check_branch
    %4720 = sbr.rel (0) target = $region29
  $region28: #{code2vec_forward.1} parent=0 // pred_region
    _
  $region29: #{code2vec_forward.1} parent=0 // pred_fallthru
    _
  // Predicated region
  $region30: #{code2vec_forward.1} parent=0 // pred_check
    _
  $region31: #{code2vec_forward.1} parent=0 // pred_check_branch
    %4722 = sbr.rel (0) target = $region33
  $region32: #{code2vec_forward.1} parent=0 // pred_region
    _
  $region33: #{code2vec_forward.1} parent=0 // pred_fallthru
    _

</llo_original>
